<compile_context>
chip_gen: v5e
topology: v5e:2x2
jax: 0.10.0
libtpu: 0.0.40
codegen_flags: <defaults>
</compile_context>

<pallas_src>
import jax
import jax.numpy as jnp
import numpy as np
from jax import lax
from jax.experimental import pallas as pl
from jax.experimental.pallas import tpu as pltpu

KSIZE = 3   # conv kernel size (both convs)
FOLD = 8    # sublane fold of the output position grid: m = f*LBF + c


def _shift_m(a):
    """Given the (FOLD, LBF) fold of a signal s[m] (m = f*LBF + c), return the fold of s[m+1].

    Within a row the shift is a one-lane move; the last lane of row f takes the first element of
    row f+1.  The very last element (m = FOLD*LBF - 1) has no successor and becomes 0 -- it is
    only ever consumed at neutralized padded-tail positions.
    Built from aligned concats + offset slices only (no roll-direction assumptions).
    """
    rows, cols = a.shape
    zblk = jnp.zeros((rows, 128), a.dtype)
    # (i) within-row lane shift: lane c takes a[f, c+1]; the vacated last lane is fixed below.
    wide = jnp.concatenate([a, zblk], axis=1)                     # (rows, cols+128), aligned
    lane_shift = lax.slice(wide, (0, 1), (rows, cols + 1))        # (rows, cols)
    # (ii) boundary value for the last lane: a[f+1, 0], broadcast along lanes.
    head = lax.slice(a, (0, 0), (rows, 128))                      # first 128-lane column block
    head_tall = jnp.concatenate([head, zblk], axis=0)             # (2*rows, 128), aligned
    head_next = lax.slice(head_tall, (1, 0), (rows + 1, 128))     # a[f+1, 0:128] (0 for f=rows-1)
    boundary = jnp.broadcast_to(lax.slice(head_next, (0, 0), (rows, 1)), (rows, cols))
    lane_idx = lax.broadcasted_iota(jnp.int32, (rows, cols), 1)
    return jnp.where(lane_idx == cols - 1, boundary, lane_shift)


def _cnn_kernel(w1_ref, b1_ref, w2_ref, b2_ref, xp_ref, wf_ref, out_ref):
    """Fused conv1+relu+pool / conv2+relu+pool / fc1 for one sample.

    xp_ref : (16, FOLD, LBF) VMEM  phase planes, xp_ref[j][f, c] = x[16*(f*LBF + c) + j]
    wf_ref : (nc, FOLD, LBF) VMEM  fc1.weight folded along length, zero past lp2 (keep zero!)
    out_ref: (4*nc, FOLD, 1) VMEM  per-fold-row partial fc sums (row = c2*nc + cls)
    w1_ref : (6,)  SMEM  conv1.weight[co, 0, t]  at 3*co + t
    b1_ref : (2,)  SMEM  conv1.bias
    w2_ref : (24,) SMEM  conv2.weight[c2, ci, t] at (c2*2 + ci)*3 + t
    b2_ref : (4,)  SMEM  conv2.bias
    """
    nc = wf_ref.shape[0]

    # ---- stage A: conv1 (1->2, k=3, s=2) + ReLU + maxpool(2,2), phase-grouped ----
    # h1p[co][t][f, c] = h1[co, 4*m + t]  with m = f*LBF + c, t = 0..4
    h1p = [[], []]
    for t in range(4):
        p0 = xp_ref[4 * t]
        p1 = xp_ref[4 * t + 1]
        p2 = xp_ref[4 * t + 2]
        p3 = xp_ref[4 * t + 3]
        # phase 16 = x[16m + 16] = phase 0 shifted by one position m
        p4 = xp_ref[4 * t + 4] if t < 3 else _shift_m(xp_ref[0])
        for co in range(2):
            wa = w1_ref[3 * co + 0]
            wb = w1_ref[3 * co + 1]
            wc = w1_ref[3 * co + 2]
            ye = wa * p0 + wb * p1 + wc * p2          # conv1 at position 2*(4m+t)
            yo = wa * p2 + wb * p3 + wc * p4          # conv1 at position 2*(4m+t)+1
            # bias once after the pool max; relu(max(e,o)+b) == max(relu(e+b), relu(o+b))
            h1p[co].append(jnp.maximum(jnp.maximum(ye, yo) + b1_ref[co], 0.0))
    for co in range(2):
        h1p[co].append(_shift_m(h1p[co][0]))          # tap 4: h1[co, 4m+4] = h1[co, 4(m+1)]

    # ---- stage B: conv2 (2->4, k=3, s=2) + ReLU + maxpool(2,2) + fc1 (VPU reduce) ----
    for c2 in range(4):
        acc_e = None
        acc_o = None
        for ci in range(2):
            for t in range(KSIZE):
                w = w2_ref[(c2 * 2 + ci) * KSIZE + t]
                te = w * h1p[ci][t]                   # conv2 at position 2*(2m)   (taps 0,1,2)
                to = w * h1p[ci][t + 2]               # conv2 at position 2*(2m)+1 (taps 2,3,4)
                acc_e = te if acc_e is None else acc_e + te
                acc_o = to if acc_o is None else acc_o + to
        h2 = jnp.maximum(jnp.maximum(acc_e, acc_o) + b2_ref[c2], 0.0)      # (FOLD, LBF)
        # fc1: exact-f32 VPU multiply + lane reduction against zero-padded lane-dense weights.
        for cls in range(nc):
            col = jnp.sum(h2 * wf_ref[cls], axis=1, keepdims=True)          # (FOLD, 1)
            out_ref[c2 * nc + cls] = col


def _smem_spec():
    return pl.BlockSpec(memory_space=pltpu.MemorySpace.SMEM)


def cnn_forward(x, params):
    """x: (N, 1, L0) float32.  Returns (N, 4, num_classes) float32 (matches PyTorch forward)."""
    w1, b1, w2, b2, wfc, bfc = params
    n, cin0, l0 = x.shape
    assert cin0 == 1

    # PyTorch length arithmetic (VALID conv stride 2, pool k=2 stride 2).
    l1 = (l0 - KSIZE) // 2 + 1
    lp1 = (l1 - 2) // 2 + 1
    l2 = (lp1 - KSIZE) // 2 + 1
    lp2 = (l2 - 2) // 2 + 1
    nc, in_feat = wfc.shape
    assert lp2 == in_feat, "input length inconsistent with fc1.in_features"

    # Output-position grid m in [0, LB) folded as (FOLD, LBF); LB multiple of 8*128.
    LB = ((lp2 + FOLD * 128 - 1) // (FOLD * 128)) * (FOLD * 128)   # 10240
    LBF = LB // FOLD                                               # 1280
    LTOT = 16 * LB                                                 # 163840 >= l0
    assert l0 <= LTOT
    # valid positions only ever read valid upstream data (tap invariants)
    assert 4 * (lp2 - 1) + 4 < lp1 and 2 * (lp2 - 1) + 1 < l2

    f32 = jnp.float32

    # Single zero-redundancy de-interleave: x -> 16 phase planes, each folded (FOLD, LBF).
    xpad = jnp.pad(x[:, 0, :].astype(f32), ((0, 0), (0, LTOT - l0)))
    xr = xpad.reshape(n, FOLD, LBF, 16)            # flat = 16*(f*LBF + c) + j  ->  (f, c, j)
    xp = jnp.transpose(xr, (0, 3, 1, 2))           # (n, 16, FOLD, LBF); one XLA transpose pass

    # fc1 weight: lane-dense, folded along length, zero-padded past lp2.  The zero columns
    # neutralize the finite-garbage conv outputs of the padded tail -- keep them exactly zero.
    wf = jnp.pad(wfc.astype(f32), ((0, 0), (0, LB - lp2))).reshape(nc, FOLD, LBF)

    part = pl.pallas_call(
        _cnn_kernel,
        out_shape=jax.ShapeDtypeStruct((n, 4 * nc, FOLD, 1), f32),
        grid=(n,),
        in_specs=[_smem_spec(), _smem_spec(), _smem_spec(), _smem_spec(),
                  pl.BlockSpec((None, 16, FOLD, LBF), lambda i: (i, 0, 0, 0)),
                  pl.BlockSpec((nc, FOLD, LBF), lambda i: (0, 0, 0))],
        out_specs=pl.BlockSpec((None, 4 * nc, FOLD, 1), lambda i: (i, 0, 0, 0)),
        compiler_params=pltpu.CompilerParams(dimension_semantics=("parallel",)),
    )(w1.reshape(-1).astype(f32), b1.astype(f32),
      w2.reshape(-1).astype(f32), b2.astype(f32),
      xp, wf)

    # Tiny (n*4*nc*8 floats) finishing reduction + bias in the wrapper.
    return part.reshape(n, 4, nc, FOLD).sum(axis=-1) + bfc.astype(f32)


def reference_forward(x, params):
    """Pure-JAX reference mirroring the PyTorch forward (full f32 precision)."""
    w1, b1, w2, b2, wfc, bfc = params

    def conv1d(h, w, b, stride):
        y = lax.conv_general_dilated(
            h, w, window_strides=(stride,), padding="VALID",
            dimension_numbers=("NCH", "OIH", "NCH"),
            precision=lax.Precision.HIGHEST)
        return y + b[None, :, None]

    def pool(h):
        lp = (h.shape[-1] - 2) // 2 + 1
        return jnp.maximum(h[..., 0:2 * lp:2], h[..., 1:2 * lp:2])

    h = pool(jax.nn.relu(conv1d(x, w1, b1, 2)))
    h = pool(jax.nn.relu(conv1d(h, w2, b2, 2)))
    return jnp.einsum("ncl,ol->nco", h, wfc,
                      precision=lax.Precision.HIGHEST) + bfc


if __name__ == "__main__":
    key = jax.random.PRNGKey(0)
    ks = jax.random.split(key, 7)

    num_classes = 2
    batch = 2
    # Smallest input length consistent with fc1.in_features = 4*50*50 = 10000
    # (the PyTorch forward applies fc1 along the un-flattened length axis).
    seq_len = 160005

    x = jax.random.normal(ks[0], (batch, 1, seq_len), dtype=jnp.float32)

    # Deterministic parameter init (shapes from CNN.__init__)
    w1 = 0.2 * jax.random.normal(ks[1], (2, 1, 3), dtype=jnp.float32)               # conv1.weight
    b1 = 0.1 * jax.random.normal(ks[2], (2,), dtype=jnp.float32)                    # conv1.bias
    w2 = 0.2 * jax.random.normal(ks[3], (4, 2, 3), dtype=jnp.float32)               # conv2.weight
    b2 = 0.1 * jax.random.normal(ks[4], (4,), dtype=jnp.float32)                    # conv2.bias
    wfc = 0.02 * jax.random.normal(ks[5], (num_classes, 10000), dtype=jnp.float32)  # fc1.weight
    bfc = 0.1 * jax.random.normal(ks[6], (num_classes,), dtype=jnp.float32)         # fc1.bias
    params = (w1, b1, w2, b2, wfc, bfc)

    out = jax.block_until_ready(jax.jit(cnn_forward)(x, params))
    assert out.shape == (batch, 4, num_classes) and out.dtype == jnp.float32

    ref = jax.block_until_ready(jax.jit(reference_forward)(x, params))
    np.testing.assert_allclose(np.asarray(out), np.asarray(ref), rtol=1e-4, atol=1e-4)

    print("KERNEL_OK")
</pallas_src>

<mosaic_0001>
module attributes {stable_mosaic.version = 11 : i64} {
  func.func @_cnn_kernel(%arg0: i32, %arg1: memref<6xf32, #tpu.memory_space<smem>>, %arg2: memref<2xf32, #tpu.memory_space<smem>>, %arg3: memref<24xf32, #tpu.memory_space<smem>>, %arg4: memref<4xf32, #tpu.memory_space<smem>>, %arg5: memref<1x16x8x1280xf32, #tpu.memory_space<vmem>>, %arg6: memref<2x8x1280xf32, #tpu.memory_space<vmem>>, %arg7: memref<1x8x8x1xf32, #tpu.memory_space<vmem>>) attributes {dimension_semantics = [#tpu.dimension_semantics<parallel>], iteration_bounds = array<i64: 2>, scalar_prefetch = 0 : i64, scratch_operands = 0 : i64, tpu.core_type = #tpu.core_type<tc>, window_params = [{transform_indices = @transform_0, window_bounds = array<i64: 6>}, {transform_indices = @transform_1, window_bounds = array<i64: 2>}, {transform_indices = @transform_2, window_bounds = array<i64: 24>}, {transform_indices = @transform_3, window_bounds = array<i64: 4>}, {transform_indices = @transform_4, window_bounds = array<i64: 1, 16, 8, 1280>}, {pipeline_mode = #tpu.pipeline_mode<synchronous>, transform_indices = @transform_5, window_bounds = array<i64: 2, 8, 1280>}, {transform_indices = @transform_6, window_bounds = array<i64: 1, 8, 8, 1>}]} {
    %c0 = arith.constant 0 : index
    %c0_0 = arith.constant 0 : index
    %c0_1 = arith.constant 0 : index
    %c0_2 = arith.constant 0 : index
    %0 = vector.load %arg5[%c0, %c0_0, %c0_1, %c0_2] : memref<1x16x8x1280xf32, #tpu.memory_space<vmem>>, vector<1x1x8x1280xf32>
    %1 = vector.shape_cast %0 : vector<1x1x8x1280xf32> to vector<8x1280xf32>
    %c0_3 = arith.constant 0 : index
    %c1 = arith.constant 1 : index
    %c0_4 = arith.constant 0 : index
    %c0_5 = arith.constant 0 : index
    %2 = vector.load %arg5[%c0_3, %c1, %c0_4, %c0_5] : memref<1x16x8x1280xf32, #tpu.memory_space<vmem>>, vector<1x1x8x1280xf32>
    %3 = vector.shape_cast %2 : vector<1x1x8x1280xf32> to vector<8x1280xf32>
    %c0_6 = arith.constant 0 : index
    %c2 = arith.constant 2 : index
    %c0_7 = arith.constant 0 : index
    %c0_8 = arith.constant 0 : index
    %4 = vector.load %arg5[%c0_6, %c2, %c0_7, %c0_8] : memref<1x16x8x1280xf32, #tpu.memory_space<vmem>>, vector<1x1x8x1280xf32>
    %5 = vector.shape_cast %4 : vector<1x1x8x1280xf32> to vector<8x1280xf32>
    %c0_9 = arith.constant 0 : index
    %c3 = arith.constant 3 : index
    %c0_10 = arith.constant 0 : index
    %c0_11 = arith.constant 0 : index
    %6 = vector.load %arg5[%c0_9, %c3, %c0_10, %c0_11] : memref<1x16x8x1280xf32, #tpu.memory_space<vmem>>, vector<1x1x8x1280xf32>
    %7 = vector.shape_cast %6 : vector<1x1x8x1280xf32> to vector<8x1280xf32>
    %c0_12 = arith.constant 0 : index
    %c4 = arith.constant 4 : index
    %c0_13 = arith.constant 0 : index
    %c0_14 = arith.constant 0 : index
    %8 = vector.load %arg5[%c0_12, %c4, %c0_13, %c0_14] : memref<1x16x8x1280xf32, #tpu.memory_space<vmem>>, vector<1x1x8x1280xf32>
    %9 = vector.shape_cast %8 : vector<1x1x8x1280xf32> to vector<8x1280xf32>
    %c0_15 = arith.constant 0 : index
    %10 = memref.load %arg1[%c0_15] : memref<6xf32, #tpu.memory_space<smem>>
    %c1_16 = arith.constant 1 : index
    %11 = memref.load %arg1[%c1_16] : memref<6xf32, #tpu.memory_space<smem>>
    %c2_17 = arith.constant 2 : index
    %12 = memref.load %arg1[%c2_17] : memref<6xf32, #tpu.memory_space<smem>>
    %13 = vector.broadcast %10 : f32 to vector<8x1280xf32>
    %14 = arith.mulf %13, %1 : vector<8x1280xf32>
    %15 = vector.broadcast %11 : f32 to vector<8x1280xf32>
    %16 = arith.mulf %15, %3 : vector<8x1280xf32>
    %17 = arith.addf %14, %16 : vector<8x1280xf32>
    %18 = vector.broadcast %12 : f32 to vector<8x1280xf32>
    %19 = arith.mulf %18, %5 : vector<8x1280xf32>
    %20 = arith.addf %17, %19 : vector<8x1280xf32>
    %21 = vector.broadcast %10 : f32 to vector<8x1280xf32>
    %22 = arith.mulf %21, %5 : vector<8x1280xf32>
    %23 = vector.broadcast %11 : f32 to vector<8x1280xf32>
    %24 = arith.mulf %23, %7 : vector<8x1280xf32>
    %25 = arith.addf %22, %24 : vector<8x1280xf32>
    %26 = vector.broadcast %12 : f32 to vector<8x1280xf32>
    %27 = arith.mulf %26, %9 : vector<8x1280xf32>
    %28 = arith.addf %25, %27 : vector<8x1280xf32>
    %29 = arith.maximumf %20, %28 : vector<8x1280xf32>
    %c0_18 = arith.constant 0 : index
    %30 = memref.load %arg2[%c0_18] : memref<2xf32, #tpu.memory_space<smem>>
    %31 = vector.broadcast %30 : f32 to vector<8x1280xf32>
    %32 = arith.addf %29, %31 : vector<8x1280xf32>
    %cst = arith.constant 0.000000e+00 : f32
    %33 = vector.broadcast %cst : f32 to vector<8x1280xf32>
    %34 = arith.maximumf %32, %33 : vector<8x1280xf32>
    %c3_19 = arith.constant 3 : index
    %35 = memref.load %arg1[%c3_19] : memref<6xf32, #tpu.memory_space<smem>>
    %c4_20 = arith.constant 4 : index
    %36 = memref.load %arg1[%c4_20] : memref<6xf32, #tpu.memory_space<smem>>
    %c5 = arith.constant 5 : index
    %37 = memref.load %arg1[%c5] : memref<6xf32, #tpu.memory_space<smem>>
    %38 = vector.broadcast %35 : f32 to vector<8x1280xf32>
    %39 = arith.mulf %38, %1 : vector<8x1280xf32>
    %40 = vector.broadcast %36 : f32 to vector<8x1280xf32>
    %41 = arith.mulf %40, %3 : vector<8x1280xf32>
    %42 = arith.addf %39, %41 : vector<8x1280xf32>
    %43 = vector.broadcast %37 : f32 to vector<8x1280xf32>
    %44 = arith.mulf %43, %5 : vector<8x1280xf32>
    %45 = arith.addf %42, %44 : vector<8x1280xf32>
    %46 = vector.broadcast %35 : f32 to vector<8x1280xf32>
    %47 = arith.mulf %46, %5 : vector<8x1280xf32>
    %48 = vector.broadcast %36 : f32 to vector<8x1280xf32>
    %49 = arith.mulf %48, %7 : vector<8x1280xf32>
    %50 = arith.addf %47, %49 : vector<8x1280xf32>
    %51 = vector.broadcast %37 : f32 to vector<8x1280xf32>
    %52 = arith.mulf %51, %9 : vector<8x1280xf32>
    %53 = arith.addf %50, %52 : vector<8x1280xf32>
    %54 = arith.maximumf %45, %53 : vector<8x1280xf32>
    %c1_21 = arith.constant 1 : index
    %55 = memref.load %arg2[%c1_21] : memref<2xf32, #tpu.memory_space<smem>>
    %56 = vector.broadcast %55 : f32 to vector<8x1280xf32>
    %57 = arith.addf %54, %56 : vector<8x1280xf32>
    %cst_22 = arith.constant 0.000000e+00 : f32
    %58 = vector.broadcast %cst_22 : f32 to vector<8x1280xf32>
    %59 = arith.maximumf %57, %58 : vector<8x1280xf32>
    %c0_23 = arith.constant 0 : index
    %c4_24 = arith.constant 4 : index
    %c0_25 = arith.constant 0 : index
    %c0_26 = arith.constant 0 : index
    %60 = vector.load %arg5[%c0_23, %c4_24, %c0_25, %c0_26] : memref<1x16x8x1280xf32, #tpu.memory_space<vmem>>, vector<1x1x8x1280xf32>
    %61 = vector.shape_cast %60 : vector<1x1x8x1280xf32> to vector<8x1280xf32>
    %c0_27 = arith.constant 0 : index
    %c5_28 = arith.constant 5 : index
    %c0_29 = arith.constant 0 : index
    %c0_30 = arith.constant 0 : index
    %62 = vector.load %arg5[%c0_27, %c5_28, %c0_29, %c0_30] : memref<1x16x8x1280xf32, #tpu.memory_space<vmem>>, vector<1x1x8x1280xf32>
    %63 = vector.shape_cast %62 : vector<1x1x8x1280xf32> to vector<8x1280xf32>
    %c0_31 = arith.constant 0 : index
    %c6 = arith.constant 6 : index
    %c0_32 = arith.constant 0 : index
    %c0_33 = arith.constant 0 : index
    %64 = vector.load %arg5[%c0_31, %c6, %c0_32, %c0_33] : memref<1x16x8x1280xf32, #tpu.memory_space<vmem>>, vector<1x1x8x1280xf32>
    %65 = vector.shape_cast %64 : vector<1x1x8x1280xf32> to vector<8x1280xf32>
    %c0_34 = arith.constant 0 : index
    %c7 = arith.constant 7 : index
    %c0_35 = arith.constant 0 : index
    %c0_36 = arith.constant 0 : index
    %66 = vector.load %arg5[%c0_34, %c7, %c0_35, %c0_36] : memref<1x16x8x1280xf32, #tpu.memory_space<vmem>>, vector<1x1x8x1280xf32>
    %67 = vector.shape_cast %66 : vector<1x1x8x1280xf32> to vector<8x1280xf32>
    %c0_37 = arith.constant 0 : index
    %c8 = arith.constant 8 : index
    %c0_38 = arith.constant 0 : index
    %c0_39 = arith.constant 0 : index
    %68 = vector.load %arg5[%c0_37, %c8, %c0_38, %c0_39] : memref<1x16x8x1280xf32, #tpu.memory_space<vmem>>, vector<1x1x8x1280xf32>
    %69 = vector.shape_cast %68 : vector<1x1x8x1280xf32> to vector<8x1280xf32>
    %c0_40 = arith.constant 0 : index
    %70 = memref.load %arg1[%c0_40] : memref<6xf32, #tpu.memory_space<smem>>
    %c1_41 = arith.constant 1 : index
    %71 = memref.load %arg1[%c1_41] : memref<6xf32, #tpu.memory_space<smem>>
    %c2_42 = arith.constant 2 : index
    %72 = memref.load %arg1[%c2_42] : memref<6xf32, #tpu.memory_space<smem>>
    %73 = vector.broadcast %70 : f32 to vector<8x1280xf32>
    %74 = arith.mulf %73, %61 : vector<8x1280xf32>
    %75 = vector.broadcast %71 : f32 to vector<8x1280xf32>
    %76 = arith.mulf %75, %63 : vector<8x1280xf32>
    %77 = arith.addf %74, %76 : vector<8x1280xf32>
    %78 = vector.broadcast %72 : f32 to vector<8x1280xf32>
    %79 = arith.mulf %78, %65 : vector<8x1280xf32>
    %80 = arith.addf %77, %79 : vector<8x1280xf32>
    %81 = vector.broadcast %70 : f32 to vector<8x1280xf32>
    %82 = arith.mulf %81, %65 : vector<8x1280xf32>
    %83 = vector.broadcast %71 : f32 to vector<8x1280xf32>
    %84 = arith.mulf %83, %67 : vector<8x1280xf32>
    %85 = arith.addf %82, %84 : vector<8x1280xf32>
    %86 = vector.broadcast %72 : f32 to vector<8x1280xf32>
    %87 = arith.mulf %86, %69 : vector<8x1280xf32>
    %88 = arith.addf %85, %87 : vector<8x1280xf32>
    %89 = arith.maximumf %80, %88 : vector<8x1280xf32>
    %c0_43 = arith.constant 0 : index
    %90 = memref.load %arg2[%c0_43] : memref<2xf32, #tpu.memory_space<smem>>
    %91 = vector.broadcast %90 : f32 to vector<8x1280xf32>
    %92 = arith.addf %89, %91 : vector<8x1280xf32>
    %cst_44 = arith.constant 0.000000e+00 : f32
    %93 = vector.broadcast %cst_44 : f32 to vector<8x1280xf32>
    %94 = arith.maximumf %92, %93 : vector<8x1280xf32>
    %c3_45 = arith.constant 3 : index
    %95 = memref.load %arg1[%c3_45] : memref<6xf32, #tpu.memory_space<smem>>
    %c4_46 = arith.constant 4 : index
    %96 = memref.load %arg1[%c4_46] : memref<6xf32, #tpu.memory_space<smem>>
    %c5_47 = arith.constant 5 : index
    %97 = memref.load %arg1[%c5_47] : memref<6xf32, #tpu.memory_space<smem>>
    %98 = vector.broadcast %95 : f32 to vector<8x1280xf32>
    %99 = arith.mulf %98, %61 : vector<8x1280xf32>
    %100 = vector.broadcast %96 : f32 to vector<8x1280xf32>
    %101 = arith.mulf %100, %63 : vector<8x1280xf32>
    %102 = arith.addf %99, %101 : vector<8x1280xf32>
    %103 = vector.broadcast %97 : f32 to vector<8x1280xf32>
    %104 = arith.mulf %103, %65 : vector<8x1280xf32>
    %105 = arith.addf %102, %104 : vector<8x1280xf32>
    %106 = vector.broadcast %95 : f32 to vector<8x1280xf32>
    %107 = arith.mulf %106, %65 : vector<8x1280xf32>
    %108 = vector.broadcast %96 : f32 to vector<8x1280xf32>
    %109 = arith.mulf %108, %67 : vector<8x1280xf32>
    %110 = arith.addf %107, %109 : vector<8x1280xf32>
    %111 = vector.broadcast %97 : f32 to vector<8x1280xf32>
    %112 = arith.mulf %111, %69 : vector<8x1280xf32>
    %113 = arith.addf %110, %112 : vector<8x1280xf32>
    %114 = arith.maximumf %105, %113 : vector<8x1280xf32>
    %c1_48 = arith.constant 1 : index
    %115 = memref.load %arg2[%c1_48] : memref<2xf32, #tpu.memory_space<smem>>
    %116 = vector.broadcast %115 : f32 to vector<8x1280xf32>
    %117 = arith.addf %114, %116 : vector<8x1280xf32>
    %cst_49 = arith.constant 0.000000e+00 : f32
    %118 = vector.broadcast %cst_49 : f32 to vector<8x1280xf32>
    %119 = arith.maximumf %117, %118 : vector<8x1280xf32>
    %c0_50 = arith.constant 0 : index
    %c8_51 = arith.constant 8 : index
    %c0_52 = arith.constant 0 : index
    %c0_53 = arith.constant 0 : index
    %120 = vector.load %arg5[%c0_50, %c8_51, %c0_52, %c0_53] : memref<1x16x8x1280xf32, #tpu.memory_space<vmem>>, vector<1x1x8x1280xf32>
    %121 = vector.shape_cast %120 : vector<1x1x8x1280xf32> to vector<8x1280xf32>
    %c0_54 = arith.constant 0 : index
    %c9 = arith.constant 9 : index
    %c0_55 = arith.constant 0 : index
    %c0_56 = arith.constant 0 : index
    %122 = vector.load %arg5[%c0_54, %c9, %c0_55, %c0_56] : memref<1x16x8x1280xf32, #tpu.memory_space<vmem>>, vector<1x1x8x1280xf32>
    %123 = vector.shape_cast %122 : vector<1x1x8x1280xf32> to vector<8x1280xf32>
    %c0_57 = arith.constant 0 : index
    %c10 = arith.constant 10 : index
    %c0_58 = arith.constant 0 : index
    %c0_59 = arith.constant 0 : index
    %124 = vector.load %arg5[%c0_57, %c10, %c0_58, %c0_59] : memref<1x16x8x1280xf32, #tpu.memory_space<vmem>>, vector<1x1x8x1280xf32>
    %125 = vector.shape_cast %124 : vector<1x1x8x1280xf32> to vector<8x1280xf32>
    %c0_60 = arith.constant 0 : index
    %c11 = arith.constant 11 : index
    %c0_61 = arith.constant 0 : index
    %c0_62 = arith.constant 0 : index
    %126 = vector.load %arg5[%c0_60, %c11, %c0_61, %c0_62] : memref<1x16x8x1280xf32, #tpu.memory_space<vmem>>, vector<1x1x8x1280xf32>
    %127 = vector.shape_cast %126 : vector<1x1x8x1280xf32> to vector<8x1280xf32>
    %c0_63 = arith.constant 0 : index
    %c12 = arith.constant 12 : index
    %c0_64 = arith.constant 0 : index
    %c0_65 = arith.constant 0 : index
    %128 = vector.load %arg5[%c0_63, %c12, %c0_64, %c0_65] : memref<1x16x8x1280xf32, #tpu.memory_space<vmem>>, vector<1x1x8x1280xf32>
    %129 = vector.shape_cast %128 : vector<1x1x8x1280xf32> to vector<8x1280xf32>
    %c0_66 = arith.constant 0 : index
    %130 = memref.load %arg1[%c0_66] : memref<6xf32, #tpu.memory_space<smem>>
    %c1_67 = arith.constant 1 : index
    %131 = memref.load %arg1[%c1_67] : memref<6xf32, #tpu.memory_space<smem>>
    %c2_68 = arith.constant 2 : index
    %132 = memref.load %arg1[%c2_68] : memref<6xf32, #tpu.memory_space<smem>>
    %133 = vector.broadcast %130 : f32 to vector<8x1280xf32>
    %134 = arith.mulf %133, %121 : vector<8x1280xf32>
    %135 = vector.broadcast %131 : f32 to vector<8x1280xf32>
    %136 = arith.mulf %135, %123 : vector<8x1280xf32>
    %137 = arith.addf %134, %136 : vector<8x1280xf32>
    %138 = vector.broadcast %132 : f32 to vector<8x1280xf32>
    %139 = arith.mulf %138, %125 : vector<8x1280xf32>
    %140 = arith.addf %137, %139 : vector<8x1280xf32>
    %141 = vector.broadcast %130 : f32 to vector<8x1280xf32>
    %142 = arith.mulf %141, %125 : vector<8x1280xf32>
    %143 = vector.broadcast %131 : f32 to vector<8x1280xf32>
    %144 = arith.mulf %143, %127 : vector<8x1280xf32>
    %145 = arith.addf %142, %144 : vector<8x1280xf32>
    %146 = vector.broadcast %132 : f32 to vector<8x1280xf32>
    %147 = arith.mulf %146, %129 : vector<8x1280xf32>
    %148 = arith.addf %145, %147 : vector<8x1280xf32>
    %149 = arith.maximumf %140, %148 : vector<8x1280xf32>
    %c0_69 = arith.constant 0 : index
    %150 = memref.load %arg2[%c0_69] : memref<2xf32, #tpu.memory_space<smem>>
    %151 = vector.broadcast %150 : f32 to vector<8x1280xf32>
    %152 = arith.addf %149, %151 : vector<8x1280xf32>
    %cst_70 = arith.constant 0.000000e+00 : f32
    %153 = vector.broadcast %cst_70 : f32 to vector<8x1280xf32>
    %154 = arith.maximumf %152, %153 : vector<8x1280xf32>
    %c3_71 = arith.constant 3 : index
    %155 = memref.load %arg1[%c3_71] : memref<6xf32, #tpu.memory_space<smem>>
    %c4_72 = arith.constant 4 : index
    %156 = memref.load %arg1[%c4_72] : memref<6xf32, #tpu.memory_space<smem>>
    %c5_73 = arith.constant 5 : index
    %157 = memref.load %arg1[%c5_73] : memref<6xf32, #tpu.memory_space<smem>>
    %158 = vector.broadcast %155 : f32 to vector<8x1280xf32>
    %159 = arith.mulf %158, %121 : vector<8x1280xf32>
    %160 = vector.broadcast %156 : f32 to vector<8x1280xf32>
    %161 = arith.mulf %160, %123 : vector<8x1280xf32>
    %162 = arith.addf %159, %161 : vector<8x1280xf32>
    %163 = vector.broadcast %157 : f32 to vector<8x1280xf32>
    %164 = arith.mulf %163, %125 : vector<8x1280xf32>
    %165 = arith.addf %162, %164 : vector<8x1280xf32>
    %166 = vector.broadcast %155 : f32 to vector<8x1280xf32>
    %167 = arith.mulf %166, %125 : vector<8x1280xf32>
    %168 = vector.broadcast %156 : f32 to vector<8x1280xf32>
    %169 = arith.mulf %168, %127 : vector<8x1280xf32>
    %170 = arith.addf %167, %169 : vector<8x1280xf32>
    %171 = vector.broadcast %157 : f32 to vector<8x1280xf32>
    %172 = arith.mulf %171, %129 : vector<8x1280xf32>
    %173 = arith.addf %170, %172 : vector<8x1280xf32>
    %174 = arith.maximumf %165, %173 : vector<8x1280xf32>
    %c1_74 = arith.constant 1 : index
    %175 = memref.load %arg2[%c1_74] : memref<2xf32, #tpu.memory_space<smem>>
    %176 = vector.broadcast %175 : f32 to vector<8x1280xf32>
    %177 = arith.addf %174, %176 : vector<8x1280xf32>
    %cst_75 = arith.constant 0.000000e+00 : f32
    %178 = vector.broadcast %cst_75 : f32 to vector<8x1280xf32>
    %179 = arith.maximumf %177, %178 : vector<8x1280xf32>
    %c0_76 = arith.constant 0 : index
    %c12_77 = arith.constant 12 : index
    %c0_78 = arith.constant 0 : index
    %c0_79 = arith.constant 0 : index
    %180 = vector.load %arg5[%c0_76, %c12_77, %c0_78, %c0_79] : memref<1x16x8x1280xf32, #tpu.memory_space<vmem>>, vector<1x1x8x1280xf32>
    %181 = vector.shape_cast %180 : vector<1x1x8x1280xf32> to vector<8x1280xf32>
    %c0_80 = arith.constant 0 : index
    %c13 = arith.constant 13 : index
    %c0_81 = arith.constant 0 : index
    %c0_82 = arith.constant 0 : index
    %182 = vector.load %arg5[%c0_80, %c13, %c0_81, %c0_82] : memref<1x16x8x1280xf32, #tpu.memory_space<vmem>>, vector<1x1x8x1280xf32>
    %183 = vector.shape_cast %182 : vector<1x1x8x1280xf32> to vector<8x1280xf32>
    %c0_83 = arith.constant 0 : index
    %c14 = arith.constant 14 : index
    %c0_84 = arith.constant 0 : index
    %c0_85 = arith.constant 0 : index
    %184 = vector.load %arg5[%c0_83, %c14, %c0_84, %c0_85] : memref<1x16x8x1280xf32, #tpu.memory_space<vmem>>, vector<1x1x8x1280xf32>
    %185 = vector.shape_cast %184 : vector<1x1x8x1280xf32> to vector<8x1280xf32>
    %c0_86 = arith.constant 0 : index
    %c15 = arith.constant 15 : index
    %c0_87 = arith.constant 0 : index
    %c0_88 = arith.constant 0 : index
    %186 = vector.load %arg5[%c0_86, %c15, %c0_87, %c0_88] : memref<1x16x8x1280xf32, #tpu.memory_space<vmem>>, vector<1x1x8x1280xf32>
    %187 = vector.shape_cast %186 : vector<1x1x8x1280xf32> to vector<8x1280xf32>
    %c0_89 = arith.constant 0 : index
    %c0_90 = arith.constant 0 : index
    %c0_91 = arith.constant 0 : index
    %c0_92 = arith.constant 0 : index
    %188 = vector.load %arg5[%c0_89, %c0_90, %c0_91, %c0_92] : memref<1x16x8x1280xf32, #tpu.memory_space<vmem>>, vector<1x1x8x1280xf32>
    %189 = vector.shape_cast %188 : vector<1x1x8x1280xf32> to vector<8x1280xf32>
    %cst_93 = arith.constant 0.000000e+00 : f32
    %190 = vector.broadcast %cst_93 : f32 to vector<8x128xf32>
    %191 = tpu.concatenate %189, %190 in 1 : vector<8x1280xf32>, vector<8x128xf32> -> vector<8x1408xf32>
    %192 = vector.extract_strided_slice %191 {offsets = [0, 1], sizes = [8, 1280], strides = [1, 1]} : vector<8x1408xf32> to vector<8x1280xf32>
    %193 = vector.extract_strided_slice %189 {offsets = [0, 0], sizes = [8, 128], strides = [1, 1]} : vector<8x1280xf32> to vector<8x128xf32>
    %194 = tpu.concatenate %193, %190 in 0 : vector<8x128xf32>, vector<8x128xf32> -> vector<16x128xf32>
    %195 = vector.extract_strided_slice %194 {offsets = [1, 0], sizes = [8, 128], strides = [1, 1]} : vector<16x128xf32> to vector<8x128xf32>
    %196 = vector.extract_strided_slice %195 {offsets = [0, 0], sizes = [8, 1], strides = [1, 1]} : vector<8x128xf32> to vector<8x1xf32>
    %197 = vector.shape_cast %196 : vector<8x1xf32> to vector<8x1xf32>
    %198 = vector.broadcast %197 : vector<8x1xf32> to vector<8x1280xf32>
    %199 = tpu.iota {dimensions = array<i32: 1>} : vector<8x1280xi32>
    %c1279_i32 = arith.constant 1279 : i32
    %200 = vector.broadcast %c1279_i32 : i32 to vector<8x1280xi32>
    %201 = arith.cmpi eq, %199, %200 : vector<8x1280xi32>
    %202 = arith.select %201, %198, %192 : vector<8x1280xi1>, vector<8x1280xf32>
    %c0_94 = arith.constant 0 : index
    %203 = memref.load %arg1[%c0_94] : memref<6xf32, #tpu.memory_space<smem>>
    %c1_95 = arith.constant 1 : index
    %204 = memref.load %arg1[%c1_95] : memref<6xf32, #tpu.memory_space<smem>>
    %c2_96 = arith.constant 2 : index
    %205 = memref.load %arg1[%c2_96] : memref<6xf32, #tpu.memory_space<smem>>
    %206 = vector.broadcast %203 : f32 to vector<8x1280xf32>
    %207 = arith.mulf %206, %181 : vector<8x1280xf32>
    %208 = vector.broadcast %204 : f32 to vector<8x1280xf32>
    %209 = arith.mulf %208, %183 : vector<8x1280xf32>
    %210 = arith.addf %207, %209 : vector<8x1280xf32>
    %211 = vector.broadcast %205 : f32 to vector<8x1280xf32>
    %212 = arith.mulf %211, %185 : vector<8x1280xf32>
    %213 = arith.addf %210, %212 : vector<8x1280xf32>
    %214 = vector.broadcast %203 : f32 to vector<8x1280xf32>
    %215 = arith.mulf %214, %185 : vector<8x1280xf32>
    %216 = vector.broadcast %204 : f32 to vector<8x1280xf32>
    %217 = arith.mulf %216, %187 : vector<8x1280xf32>
    %218 = arith.addf %215, %217 : vector<8x1280xf32>
    %219 = vector.broadcast %205 : f32 to vector<8x1280xf32>
    %220 = arith.mulf %219, %202 : vector<8x1280xf32>
    %221 = arith.addf %218, %220 : vector<8x1280xf32>
    %222 = arith.maximumf %213, %221 : vector<8x1280xf32>
    %c0_97 = arith.constant 0 : index
    %223 = memref.load %arg2[%c0_97] : memref<2xf32, #tpu.memory_space<smem>>
    %224 = vector.broadcast %223 : f32 to vector<8x1280xf32>
    %225 = arith.addf %222, %224 : vector<8x1280xf32>
    %cst_98 = arith.constant 0.000000e+00 : f32
    %226 = vector.broadcast %cst_98 : f32 to vector<8x1280xf32>
    %227 = arith.maximumf %225, %226 : vector<8x1280xf32>
    %c3_99 = arith.constant 3 : index
    %228 = memref.load %arg1[%c3_99] : memref<6xf32, #tpu.memory_space<smem>>
    %c4_100 = arith.constant 4 : index
    %229 = memref.load %arg1[%c4_100] : memref<6xf32, #tpu.memory_space<smem>>
    %c5_101 = arith.constant 5 : index
    %230 = memref.load %arg1[%c5_101] : memref<6xf32, #tpu.memory_space<smem>>
    %231 = vector.broadcast %228 : f32 to vector<8x1280xf32>
    %232 = arith.mulf %231, %181 : vector<8x1280xf32>
    %233 = vector.broadcast %229 : f32 to vector<8x1280xf32>
    %234 = arith.mulf %233, %183 : vector<8x1280xf32>
    %235 = arith.addf %232, %234 : vector<8x1280xf32>
    %236 = vector.broadcast %230 : f32 to vector<8x1280xf32>
    %237 = arith.mulf %236, %185 : vector<8x1280xf32>
    %238 = arith.addf %235, %237 : vector<8x1280xf32>
    %239 = vector.broadcast %228 : f32 to vector<8x1280xf32>
    %240 = arith.mulf %239, %185 : vector<8x1280xf32>
    %241 = vector.broadcast %229 : f32 to vector<8x1280xf32>
    %242 = arith.mulf %241, %187 : vector<8x1280xf32>
    %243 = arith.addf %240, %242 : vector<8x1280xf32>
    %244 = vector.broadcast %230 : f32 to vector<8x1280xf32>
    %245 = arith.mulf %244, %202 : vector<8x1280xf32>
    %246 = arith.addf %243, %245 : vector<8x1280xf32>
    %247 = arith.maximumf %238, %246 : vector<8x1280xf32>
    %c1_102 = arith.constant 1 : index
    %248 = memref.load %arg2[%c1_102] : memref<2xf32, #tpu.memory_space<smem>>
    %249 = vector.broadcast %248 : f32 to vector<8x1280xf32>
    %250 = arith.addf %247, %249 : vector<8x1280xf32>
    %cst_103 = arith.constant 0.000000e+00 : f32
    %251 = vector.broadcast %cst_103 : f32 to vector<8x1280xf32>
    %252 = arith.maximumf %250, %251 : vector<8x1280xf32>
    %cst_104 = arith.constant 0.000000e+00 : f32
    %253 = vector.broadcast %cst_104 : f32 to vector<8x128xf32>
    %254 = tpu.concatenate %34, %253 in 1 : vector<8x1280xf32>, vector<8x128xf32> -> vector<8x1408xf32>
    %255 = vector.extract_strided_slice %254 {offsets = [0, 1], sizes = [8, 1280], strides = [1, 1]} : vector<8x1408xf32> to vector<8x1280xf32>
    %256 = vector.extract_strided_slice %34 {offsets = [0, 0], sizes = [8, 128], strides = [1, 1]} : vector<8x1280xf32> to vector<8x128xf32>
    %257 = tpu.concatenate %256, %253 in 0 : vector<8x128xf32>, vector<8x128xf32> -> vector<16x128xf32>
    %258 = vector.extract_strided_slice %257 {offsets = [1, 0], sizes = [8, 128], strides = [1, 1]} : vector<16x128xf32> to vector<8x128xf32>
    %259 = vector.extract_strided_slice %258 {offsets = [0, 0], sizes = [8, 1], strides = [1, 1]} : vector<8x128xf32> to vector<8x1xf32>
    %260 = vector.shape_cast %259 : vector<8x1xf32> to vector<8x1xf32>
    %261 = vector.broadcast %260 : vector<8x1xf32> to vector<8x1280xf32>
    %262 = tpu.iota {dimensions = array<i32: 1>} : vector<8x1280xi32>
    %c1279_i32_105 = arith.constant 1279 : i32
    %263 = vector.broadcast %c1279_i32_105 : i32 to vector<8x1280xi32>
    %264 = arith.cmpi eq, %262, %263 : vector<8x1280xi32>
    %265 = arith.select %264, %261, %255 : vector<8x1280xi1>, vector<8x1280xf32>
    %cst_106 = arith.constant 0.000000e+00 : f32
    %266 = vector.broadcast %cst_106 : f32 to vector<8x128xf32>
    %267 = tpu.concatenate %59, %266 in 1 : vector<8x1280xf32>, vector<8x128xf32> -> vector<8x1408xf32>
    %268 = vector.extract_strided_slice %267 {offsets = [0, 1], sizes = [8, 1280], strides = [1, 1]} : vector<8x1408xf32> to vector<8x1280xf32>
    %269 = vector.extract_strided_slice %59 {offsets = [0, 0], sizes = [8, 128], strides = [1, 1]} : vector<8x1280xf32> to vector<8x128xf32>
    %270 = tpu.concatenate %269, %266 in 0 : vector<8x128xf32>, vector<8x128xf32> -> vector<16x128xf32>
    %271 = vector.extract_strided_slice %270 {offsets = [1, 0], sizes = [8, 128], strides = [1, 1]} : vector<16x128xf32> to vector<8x128xf32>
    %272 = vector.extract_strided_slice %271 {offsets = [0, 0], sizes = [8, 1], strides = [1, 1]} : vector<8x128xf32> to vector<8x1xf32>
    %273 = vector.shape_cast %272 : vector<8x1xf32> to vector<8x1xf32>
    %274 = vector.broadcast %273 : vector<8x1xf32> to vector<8x1280xf32>
    %275 = tpu.iota {dimensions = array<i32: 1>} : vector<8x1280xi32>
    %c1279_i32_107 = arith.constant 1279 : i32
    %276 = vector.broadcast %c1279_i32_107 : i32 to vector<8x1280xi32>
    %277 = arith.cmpi eq, %275, %276 : vector<8x1280xi32>
    %278 = arith.select %277, %274, %268 : vector<8x1280xi1>, vector<8x1280xf32>
    %c0_108 = arith.constant 0 : index
    %279 = memref.load %arg3[%c0_108] : memref<24xf32, #tpu.memory_space<smem>>
    %280 = vector.broadcast %279 : f32 to vector<8x1280xf32>
    %281 = arith.mulf %280, %34 : vector<8x1280xf32>
    %282 = vector.broadcast %279 : f32 to vector<8x1280xf32>
    %283 = arith.mulf %282, %154 : vector<8x1280xf32>
    %c1_109 = arith.constant 1 : index
    %284 = memref.load %arg3[%c1_109] : memref<24xf32, #tpu.memory_space<smem>>
    %285 = vector.broadcast %284 : f32 to vector<8x1280xf32>
    %286 = arith.mulf %285, %94 : vector<8x1280xf32>
    %287 = vector.broadcast %284 : f32 to vector<8x1280xf32>
    %288 = arith.mulf %287, %227 : vector<8x1280xf32>
    %289 = arith.addf %281, %286 : vector<8x1280xf32>
    %290 = arith.addf %283, %288 : vector<8x1280xf32>
    %c2_110 = arith.constant 2 : index
    %291 = memref.load %arg3[%c2_110] : memref<24xf32, #tpu.memory_space<smem>>
    %292 = vector.broadcast %291 : f32 to vector<8x1280xf32>
    %293 = arith.mulf %292, %154 : vector<8x1280xf32>
    %294 = vector.broadcast %291 : f32 to vector<8x1280xf32>
    %295 = arith.mulf %294, %265 : vector<8x1280xf32>
    %296 = arith.addf %289, %293 : vector<8x1280xf32>
    %297 = arith.addf %290, %295 : vector<8x1280xf32>
    %c3_111 = arith.constant 3 : index
    %298 = memref.load %arg3[%c3_111] : memref<24xf32, #tpu.memory_space<smem>>
    %299 = vector.broadcast %298 : f32 to vector<8x1280xf32>
    %300 = arith.mulf %299, %59 : vector<8x1280xf32>
    %301 = vector.broadcast %298 : f32 to vector<8x1280xf32>
    %302 = arith.mulf %301, %179 : vector<8x1280xf32>
    %303 = arith.addf %296, %300 : vector<8x1280xf32>
    %304 = arith.addf %297, %302 : vector<8x1280xf32>
    %c4_112 = arith.constant 4 : index
    %305 = memref.load %arg3[%c4_112] : memref<24xf32, #tpu.memory_space<smem>>
    %306 = vector.broadcast %305 : f32 to vector<8x1280xf32>
    %307 = arith.mulf %306, %119 : vector<8x1280xf32>
    %308 = vector.broadcast %305 : f32 to vector<8x1280xf32>
    %309 = arith.mulf %308, %252 : vector<8x1280xf32>
    %310 = arith.addf %303, %307 : vector<8x1280xf32>
    %311 = arith.addf %304, %309 : vector<8x1280xf32>
    %c5_113 = arith.constant 5 : index
    %312 = memref.load %arg3[%c5_113] : memref<24xf32, #tpu.memory_space<smem>>
    %313 = vector.broadcast %312 : f32 to vector<8x1280xf32>
    %314 = arith.mulf %313, %179 : vector<8x1280xf32>
    %315 = vector.broadcast %312 : f32 to vector<8x1280xf32>
    %316 = arith.mulf %315, %278 : vector<8x1280xf32>
    %317 = arith.addf %310, %314 : vector<8x1280xf32>
    %318 = arith.addf %311, %316 : vector<8x1280xf32>
    %319 = arith.maximumf %317, %318 : vector<8x1280xf32>
    %c0_114 = arith.constant 0 : index
    %320 = memref.load %arg4[%c0_114] : memref<4xf32, #tpu.memory_space<smem>>
    %321 = vector.broadcast %320 : f32 to vector<8x1280xf32>
    %322 = arith.addf %319, %321 : vector<8x1280xf32>
    %cst_115 = arith.constant 0.000000e+00 : f32
    %323 = vector.broadcast %cst_115 : f32 to vector<8x1280xf32>
    %324 = arith.maximumf %322, %323 : vector<8x1280xf32>
    %c0_116 = arith.constant 0 : index
    %c0_117 = arith.constant 0 : index
    %c0_118 = arith.constant 0 : index
    %325 = vector.load %arg6[%c0_116, %c0_117, %c0_118] : memref<2x8x1280xf32, #tpu.memory_space<vmem>>, vector<1x8x1280xf32>
    %326 = vector.shape_cast %325 : vector<1x8x1280xf32> to vector<8x1280xf32>
    %327 = arith.mulf %324, %326 : vector<8x1280xf32>
    %cst_119 = arith.constant dense<0.000000e+00> : vector<8xf32>
    %328 = vector.multi_reduction <add>, %327, %cst_119 [1] : vector<8x1280xf32> to vector<8xf32>
    %329 = vector.shape_cast %328 : vector<8xf32> to vector<8x1xf32>
    %c0_120 = arith.constant 0 : index
    %c0_121 = arith.constant 0 : index
    %c0_122 = arith.constant 0 : index
    %c0_123 = arith.constant 0 : index
    %330 = vector.load %arg7[%c0_120, %c0_121, %c0_122, %c0_123] : memref<1x8x8x1xf32, #tpu.memory_space<vmem>>, vector<1x1x8x1xf32>
    %331 = vector.shape_cast %330 : vector<1x1x8x1xf32> to vector<8x1xf32>
    %332 = vector.shape_cast %329 : vector<8x1xf32> to vector<1x1x8x1xf32>
    tpu.vector_store %arg7[%c0_120, %c0_121, %c0_122, %c0_123], %332 {strides = array<i32>} : memref<1x8x8x1xf32, #tpu.memory_space<vmem>>, vector<1x1x8x1xf32>,
    %c1_124 = arith.constant 1 : index
    %c0_125 = arith.constant 0 : index
    %c0_126 = arith.constant 0 : index
    %333 = vector.load %arg6[%c1_124, %c0_125, %c0_126] : memref<2x8x1280xf32, #tpu.memory_space<vmem>>, vector<1x8x1280xf32>
    %334 = vector.shape_cast %333 : vector<1x8x1280xf32> to vector<8x1280xf32>
    %335 = arith.mulf %324, %334 : vector<8x1280xf32>
    %cst_127 = arith.constant dense<0.000000e+00> : vector<8xf32>
    %336 = vector.multi_reduction <add>, %335, %cst_127 [1] : vector<8x1280xf32> to vector<8xf32>
    %337 = vector.shape_cast %336 : vector<8xf32> to vector<8x1xf32>
    %c0_128 = arith.constant 0 : index
    %c1_129 = arith.constant 1 : index
    %c0_130 = arith.constant 0 : index
    %c0_131 = arith.constant 0 : index
    %338 = vector.load %arg7[%c0_128, %c1_129, %c0_130, %c0_131] : memref<1x8x8x1xf32, #tpu.memory_space<vmem>>, vector<1x1x8x1xf32>
    %339 = vector.shape_cast %338 : vector<1x1x8x1xf32> to vector<8x1xf32>
    %340 = vector.shape_cast %337 : vector<8x1xf32> to vector<1x1x8x1xf32>
    tpu.vector_store %arg7[%c0_128, %c1_129, %c0_130, %c0_131], %340 {strides = array<i32>} : memref<1x8x8x1xf32, #tpu.memory_space<vmem>>, vector<1x1x8x1xf32>,
    %c6_132 = arith.constant 6 : index
    %341 = memref.load %arg3[%c6_132] : memref<24xf32, #tpu.memory_space<smem>>
    %342 = vector.broadcast %341 : f32 to vector<8x1280xf32>
    %343 = arith.mulf %342, %34 : vector<8x1280xf32>
    %344 = vector.broadcast %341 : f32 to vector<8x1280xf32>
    %345 = arith.mulf %344, %154 : vector<8x1280xf32>
    %c7_133 = arith.constant 7 : index
    %346 = memref.load %arg3[%c7_133] : memref<24xf32, #tpu.memory_space<smem>>
    %347 = vector.broadcast %346 : f32 to vector<8x1280xf32>
    %348 = arith.mulf %347, %94 : vector<8x1280xf32>
    %349 = vector.broadcast %346 : f32 to vector<8x1280xf32>
    %350 = arith.mulf %349, %227 : vector<8x1280xf32>
    %351 = arith.addf %343, %348 : vector<8x1280xf32>
    %352 = arith.addf %345, %350 : vector<8x1280xf32>
    %c8_134 = arith.constant 8 : index
    %353 = memref.load %arg3[%c8_134] : memref<24xf32, #tpu.memory_space<smem>>
    %354 = vector.broadcast %353 : f32 to vector<8x1280xf32>
    %355 = arith.mulf %354, %154 : vector<8x1280xf32>
    %356 = vector.broadcast %353 : f32 to vector<8x1280xf32>
    %357 = arith.mulf %356, %265 : vector<8x1280xf32>
    %358 = arith.addf %351, %355 : vector<8x1280xf32>
    %359 = arith.addf %352, %357 : vector<8x1280xf32>
    %c9_135 = arith.constant 9 : index
    %360 = memref.load %arg3[%c9_135] : memref<24xf32, #tpu.memory_space<smem>>
    %361 = vector.broadcast %360 : f32 to vector<8x1280xf32>
    %362 = arith.mulf %361, %59 : vector<8x1280xf32>
    %363 = vector.broadcast %360 : f32 to vector<8x1280xf32>
    %364 = arith.mulf %363, %179 : vector<8x1280xf32>
    %365 = arith.addf %358, %362 : vector<8x1280xf32>
    %366 = arith.addf %359, %364 : vector<8x1280xf32>
    %c10_136 = arith.constant 10 : index
    %367 = memref.load %arg3[%c10_136] : memref<24xf32, #tpu.memory_space<smem>>
    %368 = vector.broadcast %367 : f32 to vector<8x1280xf32>
    %369 = arith.mulf %368, %119 : vector<8x1280xf32>
    %370 = vector.broadcast %367 : f32 to vector<8x1280xf32>
    %371 = arith.mulf %370, %252 : vector<8x1280xf32>
    %372 = arith.addf %365, %369 : vector<8x1280xf32>
    %373 = arith.addf %366, %371 : vector<8x1280xf32>
    %c11_137 = arith.constant 11 : index
    %374 = memref.load %arg3[%c11_137] : memref<24xf32, #tpu.memory_space<smem>>
    %375 = vector.broadcast %374 : f32 to vector<8x1280xf32>
    %376 = arith.mulf %375, %179 : vector<8x1280xf32>
    %377 = vector.broadcast %374 : f32 to vector<8x1280xf32>
    %378 = arith.mulf %377, %278 : vector<8x1280xf32>
    %379 = arith.addf %372, %376 : vector<8x1280xf32>
    %380 = arith.addf %373, %378 : vector<8x1280xf32>
    %381 = arith.maximumf %379, %380 : vector<8x1280xf32>
    %c1_138 = arith.constant 1 : index
    %382 = memref.load %arg4[%c1_138] : memref<4xf32, #tpu.memory_space<smem>>
    %383 = vector.broadcast %382 : f32 to vector<8x1280xf32>
    %384 = arith.addf %381, %383 : vector<8x1280xf32>
    %cst_139 = arith.constant 0.000000e+00 : f32
    %385 = vector.broadcast %cst_139 : f32 to vector<8x1280xf32>
    %386 = arith.maximumf %384, %385 : vector<8x1280xf32>
    %c0_140 = arith.constant 0 : index
    %c0_141 = arith.constant 0 : index
    %c0_142 = arith.constant 0 : index
    %387 = vector.load %arg6[%c0_140, %c0_141, %c0_142] : memref<2x8x1280xf32, #tpu.memory_space<vmem>>, vector<1x8x1280xf32>
    %388 = vector.shape_cast %387 : vector<1x8x1280xf32> to vector<8x1280xf32>
    %389 = arith.mulf %386, %388 : vector<8x1280xf32>
    %cst_143 = arith.constant dense<0.000000e+00> : vector<8xf32>
    %390 = vector.multi_reduction <add>, %389, %cst_143 [1] : vector<8x1280xf32> to vector<8xf32>
    %391 = vector.shape_cast %390 : vector<8xf32> to vector<8x1xf32>
    %c0_144 = arith.constant 0 : index
    %c2_145 = arith.constant 2 : index
    %c0_146 = arith.constant 0 : index
    %c0_147 = arith.constant 0 : index
    %392 = vector.load %arg7[%c0_144, %c2_145, %c0_146, %c0_147] : memref<1x8x8x1xf32, #tpu.memory_space<vmem>>, vector<1x1x8x1xf32>
    %393 = vector.shape_cast %392 : vector<1x1x8x1xf32> to vector<8x1xf32>
    %394 = vector.shape_cast %391 : vector<8x1xf32> to vector<1x1x8x1xf32>
    tpu.vector_store %arg7[%c0_144, %c2_145, %c0_146, %c0_147], %394 {strides = array<i32>} : memref<1x8x8x1xf32, #tpu.memory_space<vmem>>, vector<1x1x8x1xf32>,
    %c1_148 = arith.constant 1 : index
    %c0_149 = arith.constant 0 : index
    %c0_150 = arith.constant 0 : index
    %395 = vector.load %arg6[%c1_148, %c0_149, %c0_150] : memref<2x8x1280xf32, #tpu.memory_space<vmem>>, vector<1x8x1280xf32>
    %396 = vector.shape_cast %395 : vector<1x8x1280xf32> to vector<8x1280xf32>
    %397 = arith.mulf %386, %396 : vector<8x1280xf32>
    %cst_151 = arith.constant dense<0.000000e+00> : vector<8xf32>
    %398 = vector.multi_reduction <add>, %397, %cst_151 [1] : vector<8x1280xf32> to vector<8xf32>
    %399 = vector.shape_cast %398 : vector<8xf32> to vector<8x1xf32>
    %c0_152 = arith.constant 0 : index
    %c3_153 = arith.constant 3 : index
    %c0_154 = arith.constant 0 : index
    %c0_155 = arith.constant 0 : index
    %400 = vector.load %arg7[%c0_152, %c3_153, %c0_154, %c0_155] : memref<1x8x8x1xf32, #tpu.memory_space<vmem>>, vector<1x1x8x1xf32>
    %401 = vector.shape_cast %400 : vector<1x1x8x1xf32> to vector<8x1xf32>
    %402 = vector.shape_cast %399 : vector<8x1xf32> to vector<1x1x8x1xf32>
    tpu.vector_store %arg7[%c0_152, %c3_153, %c0_154, %c0_155], %402 {strides = array<i32>} : memref<1x8x8x1xf32, #tpu.memory_space<vmem>>, vector<1x1x8x1xf32>,
    %c12_156 = arith.constant 12 : index
    %403 = memref.load %arg3[%c12_156] : memref<24xf32, #tpu.memory_space<smem>>
    %404 = vector.broadcast %403 : f32 to vector<8x1280xf32>
    %405 = arith.mulf %404, %34 : vector<8x1280xf32>
    %406 = vector.broadcast %403 : f32 to vector<8x1280xf32>
    %407 = arith.mulf %406, %154 : vector<8x1280xf32>
    %c13_157 = arith.constant 13 : index
    %408 = memref.load %arg3[%c13_157] : memref<24xf32, #tpu.memory_space<smem>>
    %409 = vector.broadcast %408 : f32 to vector<8x1280xf32>
    %410 = arith.mulf %409, %94 : vector<8x1280xf32>
    %411 = vector.broadcast %408 : f32 to vector<8x1280xf32>
    %412 = arith.mulf %411, %227 : vector<8x1280xf32>
    %413 = arith.addf %405, %410 : vector<8x1280xf32>
    %414 = arith.addf %407, %412 : vector<8x1280xf32>
    %c14_158 = arith.constant 14 : index
    %415 = memref.load %arg3[%c14_158] : memref<24xf32, #tpu.memory_space<smem>>
    %416 = vector.broadcast %415 : f32 to vector<8x1280xf32>
    %417 = arith.mulf %416, %154 : vector<8x1280xf32>
    %418 = vector.broadcast %415 : f32 to vector<8x1280xf32>
    %419 = arith.mulf %418, %265 : vector<8x1280xf32>
    %420 = arith.addf %413, %417 : vector<8x1280xf32>
    %421 = arith.addf %414, %419 : vector<8x1280xf32>
    %c15_159 = arith.constant 15 : index
    %422 = memref.load %arg3[%c15_159] : memref<24xf32, #tpu.memory_space<smem>>
    %423 = vector.broadcast %422 : f32 to vector<8x1280xf32>
    %424 = arith.mulf %423, %59 : vector<8x1280xf32>
    %425 = vector.broadcast %422 : f32 to vector<8x1280xf32>
    %426 = arith.mulf %425, %179 : vector<8x1280xf32>
    %427 = arith.addf %420, %424 : vector<8x1280xf32>
    %428 = arith.addf %421, %426 : vector<8x1280xf32>
    %c16 = arith.constant 16 : index
    %429 = memref.load %arg3[%c16] : memref<24xf32, #tpu.memory_space<smem>>
    %430 = vector.broadcast %429 : f32 to vector<8x1280xf32>
    %431 = arith.mulf %430, %119 : vector<8x1280xf32>
    %432 = vector.broadcast %429 : f32 to vector<8x1280xf32>
    %433 = arith.mulf %432, %252 : vector<8x1280xf32>
    %434 = arith.addf %427, %431 : vector<8x1280xf32>
    %435 = arith.addf %428, %433 : vector<8x1280xf32>
    %c17 = arith.constant 17 : index
    %436 = memref.load %arg3[%c17] : memref<24xf32, #tpu.memory_space<smem>>
    %437 = vector.broadcast %436 : f32 to vector<8x1280xf32>
    %438 = arith.mulf %437, %179 : vector<8x1280xf32>
    %439 = vector.broadcast %436 : f32 to vector<8x1280xf32>
    %440 = arith.mulf %439, %278 : vector<8x1280xf32>
    %441 = arith.addf %434, %438 : vector<8x1280xf32>
    %442 = arith.addf %435, %440 : vector<8x1280xf32>
    %443 = arith.maximumf %441, %442 : vector<8x1280xf32>
    %c2_160 = arith.constant 2 : index
    %444 = memref.load %arg4[%c2_160] : memref<4xf32, #tpu.memory_space<smem>>
    %445 = vector.broadcast %444 : f32 to vector<8x1280xf32>
    %446 = arith.addf %443, %445 : vector<8x1280xf32>
    %cst_161 = arith.constant 0.000000e+00 : f32
    %447 = vector.broadcast %cst_161 : f32 to vector<8x1280xf32>
    %448 = arith.maximumf %446, %447 : vector<8x1280xf32>
    %c0_162 = arith.constant 0 : index
    %c0_163 = arith.constant 0 : index
    %c0_164 = arith.constant 0 : index
    %449 = vector.load %arg6[%c0_162, %c0_163, %c0_164] : memref<2x8x1280xf32, #tpu.memory_space<vmem>>, vector<1x8x1280xf32>
    %450 = vector.shape_cast %449 : vector<1x8x1280xf32> to vector<8x1280xf32>
    %451 = arith.mulf %448, %450 : vector<8x1280xf32>
    %cst_165 = arith.constant dense<0.000000e+00> : vector<8xf32>
    %452 = vector.multi_reduction <add>, %451, %cst_165 [1] : vector<8x1280xf32> to vector<8xf32>
    %453 = vector.shape_cast %452 : vector<8xf32> to vector<8x1xf32>
    %c0_166 = arith.constant 0 : index
    %c4_167 = arith.constant 4 : index
    %c0_168 = arith.constant 0 : index
    %c0_169 = arith.constant 0 : index
    %454 = vector.load %arg7[%c0_166, %c4_167, %c0_168, %c0_169] : memref<1x8x8x1xf32, #tpu.memory_space<vmem>>, vector<1x1x8x1xf32>
    %455 = vector.shape_cast %454 : vector<1x1x8x1xf32> to vector<8x1xf32>
    %456 = vector.shape_cast %453 : vector<8x1xf32> to vector<1x1x8x1xf32>
    tpu.vector_store %arg7[%c0_166, %c4_167, %c0_168, %c0_169], %456 {strides = array<i32>} : memref<1x8x8x1xf32, #tpu.memory_space<vmem>>, vector<1x1x8x1xf32>,
    %c1_170 = arith.constant 1 : index
    %c0_171 = arith.constant 0 : index
    %c0_172 = arith.constant 0 : index
    %457 = vector.load %arg6[%c1_170, %c0_171, %c0_172] : memref<2x8x1280xf32, #tpu.memory_space<vmem>>, vector<1x8x1280xf32>
    %458 = vector.shape_cast %457 : vector<1x8x1280xf32> to vector<8x1280xf32>
    %459 = arith.mulf %448, %458 : vector<8x1280xf32>
    %cst_173 = arith.constant dense<0.000000e+00> : vector<8xf32>
    %460 = vector.multi_reduction <add>, %459, %cst_173 [1] : vector<8x1280xf32> to vector<8xf32>
    %461 = vector.shape_cast %460 : vector<8xf32> to vector<8x1xf32>
    %c0_174 = arith.constant 0 : index
    %c5_175 = arith.constant 5 : index
    %c0_176 = arith.constant 0 : index
    %c0_177 = arith.constant 0 : index
    %462 = vector.load %arg7[%c0_174, %c5_175, %c0_176, %c0_177] : memref<1x8x8x1xf32, #tpu.memory_space<vmem>>, vector<1x1x8x1xf32>
    %463 = vector.shape_cast %462 : vector<1x1x8x1xf32> to vector<8x1xf32>
    %464 = vector.shape_cast %461 : vector<8x1xf32> to vector<1x1x8x1xf32>
    tpu.vector_store %arg7[%c0_174, %c5_175, %c0_176, %c0_177], %464 {strides = array<i32>} : memref<1x8x8x1xf32, #tpu.memory_space<vmem>>, vector<1x1x8x1xf32>,
    %c18 = arith.constant 18 : index
    %465 = memref.load %arg3[%c18] : memref<24xf32, #tpu.memory_space<smem>>
    %466 = vector.broadcast %465 : f32 to vector<8x1280xf32>
    %467 = arith.mulf %466, %34 : vector<8x1280xf32>
    %468 = vector.broadcast %465 : f32 to vector<8x1280xf32>
    %469 = arith.mulf %468, %154 : vector<8x1280xf32>
    %c19 = arith.constant 19 : index
    %470 = memref.load %arg3[%c19] : memref<24xf32, #tpu.memory_space<smem>>
    %471 = vector.broadcast %470 : f32 to vector<8x1280xf32>
    %472 = arith.mulf %471, %94 : vector<8x1280xf32>
    %473 = vector.broadcast %470 : f32 to vector<8x1280xf32>
    %474 = arith.mulf %473, %227 : vector<8x1280xf32>
    %475 = arith.addf %467, %472 : vector<8x1280xf32>
    %476 = arith.addf %469, %474 : vector<8x1280xf32>
    %c20 = arith.constant 20 : index
    %477 = memref.load %arg3[%c20] : memref<24xf32, #tpu.memory_space<smem>>
    %478 = vector.broadcast %477 : f32 to vector<8x1280xf32>
    %479 = arith.mulf %478, %154 : vector<8x1280xf32>
    %480 = vector.broadcast %477 : f32 to vector<8x1280xf32>
    %481 = arith.mulf %480, %265 : vector<8x1280xf32>
    %482 = arith.addf %475, %479 : vector<8x1280xf32>
    %483 = arith.addf %476, %481 : vector<8x1280xf32>
    %c21 = arith.constant 21 : index
    %484 = memref.load %arg3[%c21] : memref<24xf32, #tpu.memory_space<smem>>
    %485 = vector.broadcast %484 : f32 to vector<8x1280xf32>
    %486 = arith.mulf %485, %59 : vector<8x1280xf32>
    %487 = vector.broadcast %484 : f32 to vector<8x1280xf32>
    %488 = arith.mulf %487, %179 : vector<8x1280xf32>
    %489 = arith.addf %482, %486 : vector<8x1280xf32>
    %490 = arith.addf %483, %488 : vector<8x1280xf32>
    %c22 = arith.constant 22 : index
    %491 = memref.load %arg3[%c22] : memref<24xf32, #tpu.memory_space<smem>>
    %492 = vector.broadcast %491 : f32 to vector<8x1280xf32>
    %493 = arith.mulf %492, %119 : vector<8x1280xf32>
    %494 = vector.broadcast %491 : f32 to vector<8x1280xf32>
    %495 = arith.mulf %494, %252 : vector<8x1280xf32>
    %496 = arith.addf %489, %493 : vector<8x1280xf32>
    %497 = arith.addf %490, %495 : vector<8x1280xf32>
    %c23 = arith.constant 23 : index
    %498 = memref.load %arg3[%c23] : memref<24xf32, #tpu.memory_space<smem>>
    %499 = vector.broadcast %498 : f32 to vector<8x1280xf32>
    %500 = arith.mulf %499, %179 : vector<8x1280xf32>
    %501 = vector.broadcast %498 : f32 to vector<8x1280xf32>
    %502 = arith.mulf %501, %278 : vector<8x1280xf32>
    %503 = arith.addf %496, %500 : vector<8x1280xf32>
    %504 = arith.addf %497, %502 : vector<8x1280xf32>
    %505 = arith.maximumf %503, %504 : vector<8x1280xf32>
    %c3_178 = arith.constant 3 : index
    %506 = memref.load %arg4[%c3_178] : memref<4xf32, #tpu.memory_space<smem>>
    %507 = vector.broadcast %506 : f32 to vector<8x1280xf32>
    %508 = arith.addf %505, %507 : vector<8x1280xf32>
    %cst_179 = arith.constant 0.000000e+00 : f32
    %509 = vector.broadcast %cst_179 : f32 to vector<8x1280xf32>
    %510 = arith.maximumf %508, %509 : vector<8x1280xf32>
    %c0_180 = arith.constant 0 : index
    %c0_181 = arith.constant 0 : index
    %c0_182 = arith.constant 0 : index
    %511 = vector.load %arg6[%c0_180, %c0_181, %c0_182] : memref<2x8x1280xf32, #tpu.memory_space<vmem>>, vector<1x8x1280xf32>
    %512 = vector.shape_cast %511 : vector<1x8x1280xf32> to vector<8x1280xf32>
    %513 = arith.mulf %510, %512 : vector<8x1280xf32>
    %cst_183 = arith.constant dense<0.000000e+00> : vector<8xf32>
    %514 = vector.multi_reduction <add>, %513, %cst_183 [1] : vector<8x1280xf32> to vector<8xf32>
    %515 = vector.shape_cast %514 : vector<8xf32> to vector<8x1xf32>
    %c0_184 = arith.constant 0 : index
    %c6_185 = arith.constant 6 : index
    %c0_186 = arith.constant 0 : index
    %c0_187 = arith.constant 0 : index
    %516 = vector.load %arg7[%c0_184, %c6_185, %c0_186, %c0_187] : memref<1x8x8x1xf32, #tpu.memory_space<vmem>>, vector<1x1x8x1xf32>
    %517 = vector.shape_cast %516 : vector<1x1x8x1xf32> to vector<8x1xf32>
    %518 = vector.shape_cast %515 : vector<8x1xf32> to vector<1x1x8x1xf32>
    tpu.vector_store %arg7[%c0_184, %c6_185, %c0_186, %c0_187], %518 {strides = array<i32>} : memref<1x8x8x1xf32, #tpu.memory_space<vmem>>, vector<1x1x8x1xf32>,
    %c1_188 = arith.constant 1 : index
    %c0_189 = arith.constant 0 : index
    %c0_190 = arith.constant 0 : index
    %519 = vector.load %arg6[%c1_188, %c0_189, %c0_190] : memref<2x8x1280xf32, #tpu.memory_space<vmem>>, vector<1x8x1280xf32>
    %520 = vector.shape_cast %519 : vector<1x8x1280xf32> to vector<8x1280xf32>
    %521 = arith.mulf %510, %520 : vector<8x1280xf32>
    %cst_191 = arith.constant dense<0.000000e+00> : vector<8xf32>
    %522 = vector.multi_reduction <add>, %521, %cst_191 [1] : vector<8x1280xf32> to vector<8xf32>
    %523 = vector.shape_cast %522 : vector<8xf32> to vector<8x1xf32>
    %c0_192 = arith.constant 0 : index
    %c7_193 = arith.constant 7 : index
    %c0_194 = arith.constant 0 : index
    %c0_195 = arith.constant 0 : index
    %524 = vector.load %arg7[%c0_192, %c7_193, %c0_194, %c0_195] : memref<1x8x8x1xf32, #tpu.memory_space<vmem>>, vector<1x1x8x1xf32>
    %525 = vector.shape_cast %524 : vector<1x1x8x1xf32> to vector<8x1xf32>
    %526 = vector.shape_cast %523 : vector<8x1xf32> to vector<1x1x8x1xf32>
    tpu.vector_store %arg7[%c0_192, %c7_193, %c0_194, %c0_195], %526 {strides = array<i32>} : memref<1x8x8x1xf32, #tpu.memory_space<vmem>>, vector<1x1x8x1xf32>,
    return
  }
  func.func @transform_0(%arg0: i32) -> i32 {
    %c0_i32 = arith.constant 0 : i32
    %c0_i32_0 = arith.constant 0 : i32
    return %c0_i32 : i32
  }
  func.func @transform_1(%arg0: i32) -> i32 {
    %c0_i32 = arith.constant 0 : i32
    %c0_i32_0 = arith.constant 0 : i32
    return %c0_i32 : i32
  }
  func.func @transform_2(%arg0: i32) -> i32 {
    %c0_i32 = arith.constant 0 : i32
    %c0_i32_0 = arith.constant 0 : i32
    return %c0_i32 : i32
  }
  func.func @transform_3(%arg0: i32) -> i32 {
    %c0_i32 = arith.constant 0 : i32
    %c0_i32_0 = arith.constant 0 : i32
    return %c0_i32 : i32
  }
  func.func @transform_4(%arg0: i32) -> (i32, i32, i32, i32) {
    %c0_i32 = arith.constant 0 : i32
    %c0_i32_0 = arith.constant 0 : i32
    %c0_i32_1 = arith.constant 0 : i32
    %c0_i32_2 = arith.constant 0 : i32
    return %arg0, %c0_i32, %c0_i32_0, %c0_i32_1 : i32, i32, i32, i32
  }
  func.func @transform_5(%arg0: i32) -> (i32, i32, i32) {
    %c0_i32 = arith.constant 0 : i32
    %c0_i32_0 = arith.constant 0 : i32
    %c0_i32_1 = arith.constant 0 : i32
    %c0_i32_2 = arith.constant 0 : i32
    return %c0_i32, %c0_i32_0, %c0_i32_1 : i32, i32, i32
  }
  func.func @transform_6(%arg0: i32) -> (i32, i32, i32, i32) {
    %c0_i32 = arith.constant 0 : i32
    %c0_i32_0 = arith.constant 0 : i32
    %c0_i32_1 = arith.constant 0 : i32
    %c0_i32_2 = arith.constant 0 : i32
    return %arg0, %c0_i32, %c0_i32_0, %c0_i32_1 : i32, i32, i32, i32
  }
}

</mosaic_0001>

<llo_original>
// kernel: cnn_forward.1
$region0: #{cnn_forward.1}
  #allocation0 [shape = 'u32[]', space=smem, size = 0x4, offset = 0x4, fixed_abs, tag = 'smem constant byte address 0x4 - core index']
  #allocation1 [shape = 'u32[72,128]{1,0:T(1,128)}', space=vmem, size = 0x9000, scoped, tag = 'internal scratch']
  %s0 = inlined_call_operand.vmem [shape: f32[6], index: 0, kind: input, shape index: {}]
  %s1 = inlined_call_operand.vmem [shape: f32[2], index: 1, kind: input, shape index: {}]
  %s2 = inlined_call_operand.vmem [shape: f32[24], index: 2, kind: input, shape index: {}]
  %s3 = inlined_call_operand.vmem [shape: f32[4], index: 3, kind: input, shape index: {}]
  %s4 = inlined_call_operand.vmem [shape: f32[2,16,8,1280], index: 4, kind: input, shape index: {}]
  %s5 = inlined_call_operand.vmem [shape: f32[2,8,1280], index: 5, kind: input, shape index: {}]
  %s6 = inlined_call_operand.vmem [shape: f32[2,8,8,1], index: 6, kind: output, shape index: {}]
  %s7 = sld [smem:[#allocation0]]
  $region73: #{cnn_forward.1} parent=0
    _
  %s9 = ssub.s32 1, %s7
  %s10 = scalar_select 0, %s9, %s7
  $region1: #{cnn_forward.1} parent=0
    #allocation2 [shape = 'u8[512]{0}', space=smem, size = 0x200, scoped, tag = 'input window, operand 0, single buffered']
    #allocation3 [shape = 's32[2]{0}', space=sflag, size = 0x8, scoped, tag = 'scoped memory for cnn_forward.1']
    #allocation4 [shape = 'u8[512]{0}', space=smem, size = 0x200, scoped, tag = 'input window, operand 1, single buffered']
    #allocation5 [shape = 's32[1]{0}', space=sflag, size = 0x4, scoped, tag = 'scoped memory for cnn_forward.1']
    #allocation6 [shape = 'u8[512]{0}', space=smem, size = 0x200, scoped, tag = 'input window, operand 2, single buffered']
    #allocation7 [shape = 'u8[512]{0}', space=smem, size = 0x200, scoped, tag = 'input window, operand 3, single buffered']
    #allocation8 [shape = 's32[1]{0}', space=sflag, size = 0x4, scoped, tag = 'scoped memory for cnn_forward.1']
    %11 = vsyncpa [#allocation3], 0
    %12 = vsyncpa [#allocation5], 0
    %13 = vsyncpa [#allocation8], 0
    loop: start=0, step=1, limit=4
    $region2: #{cnn_forward.1} parent=1 // loop_pre_header
      _
    $region3: #{cnn_forward.1} parent=1 // loop_header
      %s15 = sphi 0, %s19
      %p16 = scmp.ge.s32.totalorder %s15, 4
      %s23 = sphi 0, %s23
      %s25 = sphi 0, %s23
      %s26 = sphi 0, %s25
      %s40 = sphi 0, %s26
      %s44 = sphi 0, %s44
      %s46 = sphi 0, %s44
      %s47 = sphi 0, %s46
      %s61 = sphi 0, %s47
      %s65 = sphi 0, %s65
      %s67 = sphi 0, %s65
      %s68 = sphi 0, %s67
      %s82 = sphi 0, %s68
      %s86 = sphi 0, %s86
      %s88 = sphi 0, %s86
      %s89 = sphi 0, %s88
      %s103 = sphi 0, %s89
      %s109 = sphi 0, %s111
      %s112 = sphi 0, %s109
      %s113 = sphi 0, %s112
      %s129 = sphi 0, %s113
      %s133 = sphi 0, %s133
      %s135 = sphi 0, %s133
      %s136 = sphi 0, %s135
      %s150 = sphi 0, %s136
      %s156 = sphi 0, %s158
      %s159 = sphi 0, %s156
      %s160 = sphi 0, %s159
      %s176 = sphi 0, %s160
    $region4: #{cnn_forward.1} parent=1 // loop_header_branch
      %18 = sbr.rel (%p16) target = $region8
    $region5: #{cnn_forward.1} parent=1 // loop_body
      %s20 = ssub.s32 %s15, 1
      %s21 = ssub.s32 %s15, 2
      %s22 = sadd.s32 %s15, 1
      %s24 = sadd.s32 %s23, 1
      %p27 = scmp.eq.s32.totalorder %s15, 1
      %p28 = scmp.ne.s32.totalorder %s23, %s25
      %p29 = scmp.eq.s32.totalorder %s15, 0
      %p30 = por %p28, %p29
      %p31 = scmp.ne.s32.totalorder %s23, %s25
      %p32 = scmp.eq.s32.totalorder %s20, 1
      %p33 = por %p31, %p32
      %p34 = scmp.ne.s32.totalorder %s25, %s26
      %p35 = scmp.eq.s32.totalorder %s20, 0
      %p36 = por %p34, %p35
      %p37 = scmp.ne.s32.totalorder %s25, %s26
      %p38 = scmp.eq.s32.totalorder %s21, 1
      %p39 = por %p37, %p38
      %p41 = scmp.ne.s32.totalorder %s26, %s40
      %p42 = scmp.eq.s32.totalorder %s21, 0
      %p43 = por %p41, %p42
      %s45 = sadd.s32 %s44, 1
      %p48 = scmp.eq.s32.totalorder %s15, 1
      %p49 = scmp.ne.s32.totalorder %s44, %s46
      %p50 = scmp.eq.s32.totalorder %s15, 0
      %p51 = por %p49, %p50
      %p52 = scmp.ne.s32.totalorder %s44, %s46
      %p53 = scmp.eq.s32.totalorder %s20, 1
      %p54 = por %p52, %p53
      %p55 = scmp.ne.s32.totalorder %s46, %s47
      %p56 = scmp.eq.s32.totalorder %s20, 0
      %p57 = por %p55, %p56
      %p58 = scmp.ne.s32.totalorder %s46, %s47
      %p59 = scmp.eq.s32.totalorder %s21, 1
      %p60 = por %p58, %p59
      %p62 = scmp.ne.s32.totalorder %s47, %s61
      %p63 = scmp.eq.s32.totalorder %s21, 0
      %p64 = por %p62, %p63
      %s66 = sadd.s32 %s65, 1
      %p69 = scmp.eq.s32.totalorder %s15, 1
      %p70 = scmp.ne.s32.totalorder %s65, %s67
      %p71 = scmp.eq.s32.totalorder %s15, 0
      %p72 = por %p70, %p71
      %p73 = scmp.ne.s32.totalorder %s65, %s67
      %p74 = scmp.eq.s32.totalorder %s20, 1
      %p75 = por %p73, %p74
      %p76 = scmp.ne.s32.totalorder %s67, %s68
      %p77 = scmp.eq.s32.totalorder %s20, 0
      %p78 = por %p76, %p77
      %p79 = scmp.ne.s32.totalorder %s67, %s68
      %p80 = scmp.eq.s32.totalorder %s21, 1
      %p81 = por %p79, %p80
      %p83 = scmp.ne.s32.totalorder %s68, %s82
      %p84 = scmp.eq.s32.totalorder %s21, 0
      %p85 = por %p83, %p84
      %s87 = sadd.s32 %s86, 1
      %p90 = scmp.eq.s32.totalorder %s15, 1
      %p91 = scmp.ne.s32.totalorder %s86, %s88
      %p92 = scmp.eq.s32.totalorder %s15, 0
      %p93 = por %p91, %p92
      %p94 = scmp.ne.s32.totalorder %s86, %s88
      %p95 = scmp.eq.s32.totalorder %s20, 1
      %p96 = por %p94, %p95
      %p97 = scmp.ne.s32.totalorder %s88, %s89
      %p98 = scmp.eq.s32.totalorder %s20, 0
      %p99 = por %p97, %p98
      %p100 = scmp.ne.s32.totalorder %s88, %s89
      %p101 = scmp.eq.s32.totalorder %s21, 1
      %p102 = por %p100, %p101
      %p104 = scmp.ne.s32.totalorder %s89, %s103
      %p105 = scmp.eq.s32.totalorder %s21, 0
      %p106 = por %p104, %p105
      %s107 = ssub.s32 %s15, %s22
      %p108 = scmp.eq.s32.totalorder %s107, 0
      %s110 = sadd.s32 %s109, 1
      %s111 = scalar_select %p108, %s109, %s110
      %p114 = pneg %p108
      %p115 = scmp.eq.s32.totalorder %s15, 1
      %p116 = por %p114, %p115
      %p117 = scmp.ne.s32.totalorder %s109, %s112
      %p118 = scmp.eq.s32.totalorder %s15, 0
      %p119 = por %p117, %p118
      %p120 = scmp.ne.s32.totalorder %s109, %s112
      %p121 = scmp.eq.s32.totalorder %s20, 1
      %p122 = por %p120, %p121
      %p123 = scmp.ne.s32.totalorder %s112, %s113
      %p124 = scmp.eq.s32.totalorder %s20, 0
      %p125 = por %p123, %p124
      %p126 = scmp.ne.s32.totalorder %s112, %s113
      %p127 = scmp.eq.s32.totalorder %s21, 1
      %p128 = por %p126, %p127
      %p130 = scmp.ne.s32.totalorder %s113, %s129
      %p131 = scmp.eq.s32.totalorder %s21, 0
      %p132 = por %p130, %p131
      %s134 = sadd.s32 %s133, 1
      %p137 = scmp.eq.s32.totalorder %s15, 1
      %p138 = scmp.ne.s32.totalorder %s133, %s135
      %p139 = scmp.eq.s32.totalorder %s15, 0
      %p140 = por %p138, %p139
      %p141 = scmp.ne.s32.totalorder %s133, %s135
      %p142 = scmp.eq.s32.totalorder %s20, 1
      %p143 = por %p141, %p142
      %p144 = scmp.ne.s32.totalorder %s135, %s136
      %p145 = scmp.eq.s32.totalorder %s20, 0
      %p146 = por %p144, %p145
      %p147 = scmp.ne.s32.totalorder %s135, %s136
      %p148 = scmp.eq.s32.totalorder %s21, 1
      %p149 = por %p147, %p148
      %p151 = scmp.ne.s32.totalorder %s136, %s150
      %p152 = scmp.eq.s32.totalorder %s21, 0
      %p153 = por %p151, %p152
      %s154 = ssub.s32 %s15, %s22
      %p155 = scmp.eq.s32.totalorder %s154, 0
      %s157 = sadd.s32 %s156, 1
      %s158 = scalar_select %p155, %s156, %s157
      %p161 = pneg %p155
      %p162 = scmp.eq.s32.totalorder %s15, 1
      %p163 = por %p161, %p162
      %p164 = scmp.ne.s32.totalorder %s156, %s159
      %p165 = scmp.eq.s32.totalorder %s15, 0
      %p166 = por %p164, %p165
      %p167 = scmp.ne.s32.totalorder %s156, %s159
      %p168 = scmp.eq.s32.totalorder %s20, 1
      %p169 = por %p167, %p168
      %p170 = scmp.ne.s32.totalorder %s159, %s160
      %p171 = scmp.eq.s32.totalorder %s20, 0
      %p172 = por %p170, %p171
      %p173 = scmp.ne.s32.totalorder %s159, %s160
      %p174 = scmp.eq.s32.totalorder %s21, 1
      %p175 = por %p173, %p174
      %p177 = scmp.ne.s32.totalorder %s160, %s176
      %p178 = scmp.eq.s32.totalorder %s21, 0
      %p179 = por %p177, %p178
      %p180 = scmp.le.s32.totalorder 1, %s15
      %p181 = scmp.lt.s32.totalorder %s15, 3
      %p182 = pnand %p180, %p181
      %p183 = pneg %p182
      // Predicated region
      $region9: #{cnn_forward.1} parent=5 // pred_check
        _
      $region10: #{cnn_forward.1} parent=5 // pred_check_branch
        %185 = sbr.rel (%p182) target = $region12
      $region11: #{cnn_forward.1} parent=5 // pred_region
        %s186 = ssub.s32 %s15, 1
        // Predicated region
        $region13: #{cnn_forward.1} parent=11 // pred_check
          %p187 = pneg %p36
        $region14: #{cnn_forward.1} parent=11 // pred_check_branch
          %189 = sbr.rel (%p187) target = $region16
        $region15: #{cnn_forward.1} parent=11 // pred_region
          %191 = vsyncadd [#allocation3], 0
          %s193 = sshll.u32 %s0, 4
          %s194 = int_to_ptr.vmem [resolvable:$true] %s193
          %196 = dma.vmem_to_smem %s194, 16, [#allocation2], [#allocation3]
        $region16: #{cnn_forward.1} parent=11 // pred_fallthru
          _
        // Predicated region
        $region17: #{cnn_forward.1} parent=11 // pred_check
          %p197 = pneg %p57
        $region18: #{cnn_forward.1} parent=11 // pred_check_branch
          %199 = sbr.rel (%p197) target = $region20
        $region19: #{cnn_forward.1} parent=11 // pred_region
          %201 = vsyncadd [#allocation5], 0
          %s203 = sshll.u32 %s1, 4
          %s204 = int_to_ptr.vmem [resolvable:$true] %s203
          %206 = dma.vmem_to_smem %s204, 16, [#allocation4], [#allocation5]
        $region20: #{cnn_forward.1} parent=11 // pred_fallthru
          _
        // Predicated region
        $region21: #{cnn_forward.1} parent=11 // pred_check
          %p207 = pneg %p78
        $region22: #{cnn_forward.1} parent=11 // pred_check_branch
          %209 = sbr.rel (%p207) target = $region24
        $region23: #{cnn_forward.1} parent=11 // pred_region
          %211 = vsyncadd [#allocation5], 0
          %s213 = sshll.u32 %s2, 4
          %s214 = int_to_ptr.vmem [resolvable:$true] %s213
          %216 = dma.vmem_to_smem %s214, 16, [#allocation6], [#allocation5]
        $region24: #{cnn_forward.1} parent=11 // pred_fallthru
          _
        // Predicated region
        $region25: #{cnn_forward.1} parent=11 // pred_check
          %p217 = pneg %p99
        $region26: #{cnn_forward.1} parent=11 // pred_check_branch
          %219 = sbr.rel (%p217) target = $region28
        $region27: #{cnn_forward.1} parent=11 // pred_region
          %221 = vsyncadd [#allocation8], 0
          %s223 = sshll.u32 %s3, 4
          %s224 = int_to_ptr.vmem [resolvable:$true] %s223
          %226 = dma.vmem_to_smem %s224, 16, [#allocation7], [#allocation8]
        $region28: #{cnn_forward.1} parent=11 // pred_fallthru
          _
        // Predicated region
        $region29: #{cnn_forward.1} parent=11 // pred_check
          %p227 = pneg %p146
        $region30: #{cnn_forward.1} parent=11 // pred_check_branch
          %229 = sbr.rel (%p227) target = $region32
        $region31: #{cnn_forward.1} parent=11 // pred_region
          _
        $region32: #{cnn_forward.1} parent=11 // pred_fallthru
          _
      $region12: #{cnn_forward.1} parent=5 // pred_fallthru
        _
      %p230 = scmp.lt.s32.totalorder %s15, 2
      // Predicated region
      $region33: #{cnn_forward.1} parent=5 // pred_check
        %p231 = pneg %p230
      $region34: #{cnn_forward.1} parent=5 // pred_check_branch
        %233 = sbr.rel (%p231) target = $region36
      $region35: #{cnn_forward.1} parent=5 // pred_region
        // Predicated region
        $region37: #{cnn_forward.1} parent=35 // pred_check
          %p234 = pneg %p119
        $region38: #{cnn_forward.1} parent=35 // pred_check_branch
          %236 = sbr.rel (%p234) target = $region40
        $region39: #{cnn_forward.1} parent=35 // pred_region
          %p237 = scmp.lt.s32.totalorder %s15, 1
          %s238 = scalar_select %p237, %s15, 1
          %s239 = smul.addr %s238, 160
          %s240 = smul.addr %s239, 8
          %s241 = scalar_lea.vmem %s4, %s240
        $region40: #{cnn_forward.1} parent=35 // pred_fallthru
          _
      $region36: #{cnn_forward.1} parent=5 // pred_fallthru
        _
      %p242 = scmp.le.s32.totalorder 1, %s15
      %p243 = scmp.lt.s32.totalorder %s15, 3
      %p244 = pnand %p242, %p243
      %p245 = pneg %p244
      // Predicated region
      $region41: #{cnn_forward.1} parent=5 // pred_check
        _
      $region42: #{cnn_forward.1} parent=5 // pred_check_branch
        %247 = sbr.rel (%p244) target = $region44
      $region43: #{cnn_forward.1} parent=5 // pred_region
        %s248 = ssub.s32 %s15, 1
        // Predicated region
        $region45: #{cnn_forward.1} parent=43 // pred_check
          %p249 = pneg %p36
        $region46: #{cnn_forward.1} parent=43 // pred_check_branch
          %251 = sbr.rel (%p249) target = $region48
        $region47: #{cnn_forward.1} parent=43 // pred_region
          %253 = dma.done [#allocation3], 16
        $region48: #{cnn_forward.1} parent=43 // pred_fallthru
          _
        // Predicated region
        $region49: #{cnn_forward.1} parent=43 // pred_check
          %p254 = pneg %p57
        $region50: #{cnn_forward.1} parent=43 // pred_check_branch
          %256 = sbr.rel (%p254) target = $region52
        $region51: #{cnn_forward.1} parent=43 // pred_region
          %258 = dma.done [#allocation5], 16
        $region52: #{cnn_forward.1} parent=43 // pred_fallthru
          _
        // Predicated region
        $region53: #{cnn_forward.1} parent=43 // pred_check
          %p259 = pneg %p78
        $region54: #{cnn_forward.1} parent=43 // pred_check_branch
          %261 = sbr.rel (%p259) target = $region56
        $region55: #{cnn_forward.1} parent=43 // pred_region
          %263 = dma.done [#allocation5], 16
        $region56: #{cnn_forward.1} parent=43 // pred_fallthru
          _
        // Predicated region
        $region57: #{cnn_forward.1} parent=43 // pred_check
          %p264 = pneg %p99
        $region58: #{cnn_forward.1} parent=43 // pred_check_branch
          %266 = sbr.rel (%p264) target = $region60
        $region59: #{cnn_forward.1} parent=43 // pred_region
          %268 = dma.done [#allocation8], 16
        $region60: #{cnn_forward.1} parent=43 // pred_fallthru
          _
        %269 = sfence
        %p270 = pneg %p36
        %p271 = pneg %p33
        %p272 = pneg %p57
        %p273 = pneg %p54
        %p274 = pneg %p78
        %p275 = pneg %p75
        %p276 = pneg %p99
        %p277 = pneg %p96
        %p278 = scmp.lt.s32.totalorder %s20, 1
        %s279 = scalar_select %p278, %s20, 1
        %s280 = smul.addr %s279, 160
        %s281 = smul.addr %s280, 8
        %s282 = scalar_lea.vmem %s4, %s281
        %p283 = pneg %p125
        %p284 = pneg %p122
        %p285 = pneg %p146
        %p286 = pneg %p143
        %p287 = pneg %p172
        %p288 = pneg %p169
        %p289 = scmp.lt.s32.totalorder %s20, 1
        %s290 = scalar_select %p289, %s20, 1
        %s291 = smul.addr %s290, 8
        %s292 = smul.addr %s291, 8
        %s293 = scalar_lea.vmem %s6, %s292
        %p294 = scmp.lt.s32.totalorder %s20, 1
        %s295 = scalar_select %p294, %s20, 1
        %s296 = smul.addr %s295, 160
        %s297 = smul.addr %s296, 8
        %s298 = scalar_lea.vmem %s4, %s297
        %p299 = scmp.lt.s32.totalorder %s20, 1
        %s300 = scalar_select %p299, %s20, 1
        %s301 = smul.addr %s300, 8
        %s302 = smul.addr %s301, 8
        %s303 = scalar_lea.vmem %s6, %s302
        %v304 = vld [vmem:[%s298] sm:$0xff]
        %v305 = vld [vmem:[%s298 + $0x8] sm:$0xff]
        %v306 = vld [vmem:[%s298 + $0x10] sm:$0xff]
        %v307 = vld [vmem:[%s298 + $0x18] sm:$0xff]
        %v308 = vld [vmem:[%s298 + $0x20] sm:$0xff]
        %v309 = vld [vmem:[%s298 + $0x28] sm:$0xff]
        %v310 = vld [vmem:[%s298 + $0x30] sm:$0xff]
        %v311 = vld [vmem:[%s298 + $0x38] sm:$0xff]
        %v312 = vld [vmem:[%s298 + $0x40] sm:$0xff]
        %v313 = vld [vmem:[%s298 + $0x48] sm:$0xff]
        %s314 = scalar_lea.vmem %s298, 80
        %v315 = vld [vmem:[%s314] sm:$0xff]
        %v316 = vld [vmem:[%s314 + $0x8] sm:$0xff]
        %v317 = vld [vmem:[%s314 + $0x10] sm:$0xff]
        %v318 = vld [vmem:[%s314 + $0x18] sm:$0xff]
        %v319 = vld [vmem:[%s314 + $0x20] sm:$0xff]
        %v320 = vld [vmem:[%s314 + $0x28] sm:$0xff]
        %v321 = vld [vmem:[%s314 + $0x30] sm:$0xff]
        %v322 = vld [vmem:[%s314 + $0x38] sm:$0xff]
        %v323 = vld [vmem:[%s314 + $0x40] sm:$0xff]
        %v324 = vld [vmem:[%s314 + $0x48] sm:$0xff]
        %s325 = scalar_lea.vmem %s298, 160
        %v326 = vld [vmem:[%s325] sm:$0xff]
        %v327 = vld [vmem:[%s325 + $0x8] sm:$0xff]
        %v328 = vld [vmem:[%s325 + $0x10] sm:$0xff]
        %v329 = vld [vmem:[%s325 + $0x18] sm:$0xff]
        %v330 = vld [vmem:[%s325 + $0x20] sm:$0xff]
        %v331 = vld [vmem:[%s325 + $0x28] sm:$0xff]
        %v332 = vld [vmem:[%s325 + $0x30] sm:$0xff]
        %v333 = vld [vmem:[%s325 + $0x38] sm:$0xff]
        %v334 = vld [vmem:[%s325 + $0x40] sm:$0xff]
        %v335 = vld [vmem:[%s325 + $0x48] sm:$0xff]
        %s336 = scalar_lea.vmem %s298, 240
        %v337 = vld [vmem:[%s336] sm:$0xff]
        %v338 = vld [vmem:[%s336 + $0x8] sm:$0xff]
        %v339 = vld [vmem:[%s336 + $0x10] sm:$0xff]
        %v340 = vld [vmem:[%s336 + $0x18] sm:$0xff]
        %v341 = vld [vmem:[%s336 + $0x20] sm:$0xff]
        %v342 = vld [vmem:[%s336 + $0x28] sm:$0xff]
        %v343 = vld [vmem:[%s336 + $0x30] sm:$0xff]
        %v344 = vld [vmem:[%s336 + $0x38] sm:$0xff]
        %v345 = vld [vmem:[%s336 + $0x40] sm:$0xff]
        %v346 = vld [vmem:[%s336 + $0x48] sm:$0xff]
        %s347 = scalar_lea.vmem %s298, 320
        %v348 = vld [vmem:[%s347] sm:$0xff]
        %v349 = vld [vmem:[%s347 + $0x8] sm:$0xff]
        %v350 = vld [vmem:[%s347 + $0x10] sm:$0xff]
        %v351 = vld [vmem:[%s347 + $0x18] sm:$0xff]
        %v352 = vld [vmem:[%s347 + $0x20] sm:$0xff]
        %v353 = vld [vmem:[%s347 + $0x28] sm:$0xff]
        %v354 = vld [vmem:[%s347 + $0x30] sm:$0xff]
        %v355 = vld [vmem:[%s347 + $0x38] sm:$0xff]
        %v356 = vld [vmem:[%s347 + $0x40] sm:$0xff]
        %v357 = vld [vmem:[%s347 + $0x48] sm:$0xff]
        %s358 = sld [smem:[#allocation2]]
        %s359 = sld [smem:[#allocation2 + $0x1]]
        %s360 = sld [smem:[#allocation2 + $0x2]]
        %v361 = vstv %s358
        %v362 = vmul.f32 %v361, %v304
        %v363 = vmul.f32 %v361, %v305
        %v364 = vmul.f32 %v361, %v306
        %v365 = vmul.f32 %v361, %v307
        %v366 = vmul.f32 %v361, %v308
        %v367 = vmul.f32 %v361, %v309
        %v368 = vmul.f32 %v361, %v310
        %v369 = vmul.f32 %v361, %v311
        %v370 = vmul.f32 %v361, %v312
        %v371 = vmul.f32 %v361, %v313
        %v372 = vstv %s359
        %v373 = vmul.f32 %v372, %v315
        %v374 = vmul.f32 %v372, %v316
        %v375 = vmul.f32 %v372, %v317
        %v376 = vmul.f32 %v372, %v318
        %v377 = vmul.f32 %v372, %v319
        %v378 = vmul.f32 %v372, %v320
        %v379 = vmul.f32 %v372, %v321
        %v380 = vmul.f32 %v372, %v322
        %v381 = vmul.f32 %v372, %v323
        %v382 = vmul.f32 %v372, %v324
        %v383 = vadd.f32 %v362, %v373
        %v384 = vadd.f32 %v363, %v374
        %v385 = vadd.f32 %v364, %v375
        %v386 = vadd.f32 %v365, %v376
        %v387 = vadd.f32 %v366, %v377
        %v388 = vadd.f32 %v367, %v378
        %v389 = vadd.f32 %v368, %v379
        %v390 = vadd.f32 %v369, %v380
        %v391 = vadd.f32 %v370, %v381
        %v392 = vadd.f32 %v371, %v382
        %v393 = vstv %s360
        %v394 = vmul.f32 %v393, %v326
        %v395 = vmul.f32 %v393, %v327
        %v396 = vmul.f32 %v393, %v328
        %v397 = vmul.f32 %v393, %v329
        %v398 = vmul.f32 %v393, %v330
        %v399 = vmul.f32 %v393, %v331
        %v400 = vmul.f32 %v393, %v332
        %v401 = vmul.f32 %v393, %v333
        %v402 = vmul.f32 %v393, %v334
        %v403 = vmul.f32 %v393, %v335
        %v404 = vadd.f32 %v383, %v394
        %v405 = vadd.f32 %v384, %v395
        %v406 = vadd.f32 %v385, %v396
        %v407 = vadd.f32 %v386, %v397
        %v408 = vadd.f32 %v387, %v398
        %v409 = vadd.f32 %v388, %v399
        %v410 = vadd.f32 %v389, %v400
        %v411 = vadd.f32 %v390, %v401
        %v412 = vadd.f32 %v391, %v402
        %v413 = vadd.f32 %v392, %v403
        %v414 = vmul.f32 %v361, %v326
        %v415 = vmul.f32 %v361, %v327
        %v416 = vmul.f32 %v361, %v328
        %v417 = vmul.f32 %v361, %v329
        %v418 = vmul.f32 %v361, %v330
        %v419 = vmul.f32 %v361, %v331
        %v420 = vmul.f32 %v361, %v332
        %v421 = vmul.f32 %v361, %v333
        %v422 = vmul.f32 %v361, %v334
        %v423 = vmul.f32 %v361, %v335
        %v424 = vmul.f32 %v372, %v337
        %v425 = vmul.f32 %v372, %v338
        %v426 = vmul.f32 %v372, %v339
        %v427 = vmul.f32 %v372, %v340
        %v428 = vmul.f32 %v372, %v341
        %v429 = vmul.f32 %v372, %v342
        %v430 = vmul.f32 %v372, %v343
        %v431 = vmul.f32 %v372, %v344
        %v432 = vmul.f32 %v372, %v345
        %v433 = vmul.f32 %v372, %v346
        %v434 = vadd.f32 %v414, %v424
        %v435 = vadd.f32 %v415, %v425
        %v436 = vadd.f32 %v416, %v426
        %v437 = vadd.f32 %v417, %v427
        %v438 = vadd.f32 %v418, %v428
        %v439 = vadd.f32 %v419, %v429
        %v440 = vadd.f32 %v420, %v430
        %v441 = vadd.f32 %v421, %v431
        %v442 = vadd.f32 %v422, %v432
        %v443 = vadd.f32 %v423, %v433
        %v444 = vmul.f32 %v393, %v348
        %v445 = vmul.f32 %v393, %v349
        %v446 = vmul.f32 %v393, %v350
        %v447 = vmul.f32 %v393, %v351
        %v448 = vmul.f32 %v393, %v352
        %v449 = vmul.f32 %v393, %v353
        %v450 = vmul.f32 %v393, %v354
        %v451 = vmul.f32 %v393, %v355
        %v452 = vmul.f32 %v393, %v356
        %v453 = vmul.f32 %v393, %v357
        %v454 = vadd.f32 %v434, %v444
        %v455 = vadd.f32 %v435, %v445
        %v456 = vadd.f32 %v436, %v446
        %v457 = vadd.f32 %v437, %v447
        %v458 = vadd.f32 %v438, %v448
        %v459 = vadd.f32 %v439, %v449
        %v460 = vadd.f32 %v440, %v450
        %v461 = vadd.f32 %v441, %v451
        %v462 = vadd.f32 %v442, %v452
        %v463 = vadd.f32 %v443, %v453
        %v464 = vmax.f32 %v404, %v454
        %v465 = vmax.f32 %v405, %v455
        %v466 = vmax.f32 %v406, %v456
        %v467 = vmax.f32 %v407, %v457
        %v468 = vmax.f32 %v408, %v458
        %v469 = vmax.f32 %v409, %v459
        %v470 = vmax.f32 %v410, %v460
        %v471 = vmax.f32 %v411, %v461
        %v472 = vmax.f32 %v412, %v462
        %v473 = vmax.f32 %v413, %v463
        %s474 = sld [smem:[#allocation4]]
        %v475 = vstv %s474
        %v476 = vadd.f32 %v464, %v475
        %v477 = vadd.f32 %v465, %v475
        %v478 = vadd.f32 %v466, %v475
        %v479 = vadd.f32 %v467, %v475
        %v480 = vadd.f32 %v468, %v475
        %v481 = vadd.f32 %v469, %v475
        %v482 = vadd.f32 %v470, %v475
        %v483 = vadd.f32 %v471, %v475
        %v484 = vadd.f32 %v472, %v475
        %v485 = vadd.f32 %v473, %v475
        %v486 = vmax.f32 %v476, 0.0
        %v487 = vmax.f32 %v477, 0.0
        %v488 = vmax.f32 %v478, 0.0
        %v489 = vmax.f32 %v479, 0.0
        %v490 = vmax.f32 %v480, 0.0
        %v491 = vmax.f32 %v481, 0.0
        %v492 = vmax.f32 %v482, 0.0
        %v493 = vmax.f32 %v483, 0.0
        %v494 = vmax.f32 %v484, 0.0
        %v495 = vmax.f32 %v485, 0.0
        %s496 = sld [smem:[#allocation2 + $0x3]]
        %s497 = sld [smem:[#allocation2 + $0x4]]
        %s498 = sld [smem:[#allocation2 + $0x5]]
        %v499 = vstv %s496
        %v500 = vmul.f32 %v499, %v304
        %v501 = vmul.f32 %v499, %v305
        %v502 = vmul.f32 %v499, %v306
        %v503 = vmul.f32 %v499, %v307
        %v504 = vmul.f32 %v499, %v308
        %v505 = vmul.f32 %v499, %v309
        %v506 = vmul.f32 %v499, %v310
        %v507 = vmul.f32 %v499, %v311
        %v508 = vmul.f32 %v499, %v312
        %v509 = vmul.f32 %v499, %v313
        %v510 = vstv %s497
        %v511 = vmul.f32 %v510, %v315
        %v512 = vmul.f32 %v510, %v316
        %v513 = vmul.f32 %v510, %v317
        %v514 = vmul.f32 %v510, %v318
        %v515 = vmul.f32 %v510, %v319
        %v516 = vmul.f32 %v510, %v320
        %v517 = vmul.f32 %v510, %v321
        %v518 = vmul.f32 %v510, %v322
        %v519 = vmul.f32 %v510, %v323
        %v520 = vmul.f32 %v510, %v324
        %v521 = vadd.f32 %v500, %v511
        %v522 = vadd.f32 %v501, %v512
        %v523 = vadd.f32 %v502, %v513
        %v524 = vadd.f32 %v503, %v514
        %v525 = vadd.f32 %v504, %v515
        %v526 = vadd.f32 %v505, %v516
        %v527 = vadd.f32 %v506, %v517
        %v528 = vadd.f32 %v507, %v518
        %v529 = vadd.f32 %v508, %v519
        %v530 = vadd.f32 %v509, %v520
        %v531 = vstv %s498
        %v532 = vmul.f32 %v531, %v326
        %v533 = vmul.f32 %v531, %v327
        %v534 = vmul.f32 %v531, %v328
        %v535 = vmul.f32 %v531, %v329
        %v536 = vmul.f32 %v531, %v330
        %v537 = vmul.f32 %v531, %v331
        %v538 = vmul.f32 %v531, %v332
        %v539 = vmul.f32 %v531, %v333
        %v540 = vmul.f32 %v531, %v334
        %v541 = vmul.f32 %v531, %v335
        %v542 = vadd.f32 %v521, %v532
        %v543 = vadd.f32 %v522, %v533
        %v544 = vadd.f32 %v523, %v534
        %v545 = vadd.f32 %v524, %v535
        %v546 = vadd.f32 %v525, %v536
        %v547 = vadd.f32 %v526, %v537
        %v548 = vadd.f32 %v527, %v538
        %v549 = vadd.f32 %v528, %v539
        %v550 = vadd.f32 %v529, %v540
        %v551 = vadd.f32 %v530, %v541
        %v552 = vmul.f32 %v499, %v326
        %v553 = vmul.f32 %v499, %v327
        %v554 = vmul.f32 %v499, %v328
        %v555 = vmul.f32 %v499, %v329
        %v556 = vmul.f32 %v499, %v330
        %v557 = vmul.f32 %v499, %v331
        %v558 = vmul.f32 %v499, %v332
        %v559 = vmul.f32 %v499, %v333
        %v560 = vmul.f32 %v499, %v334
        %v561 = vmul.f32 %v499, %v335
        %v562 = vmul.f32 %v510, %v337
        %v563 = vmul.f32 %v510, %v338
        %v564 = vmul.f32 %v510, %v339
        %v565 = vmul.f32 %v510, %v340
        %v566 = vmul.f32 %v510, %v341
        %v567 = vmul.f32 %v510, %v342
        %v568 = vmul.f32 %v510, %v343
        %v569 = vmul.f32 %v510, %v344
        %v570 = vmul.f32 %v510, %v345
        %v571 = vmul.f32 %v510, %v346
        %v572 = vadd.f32 %v552, %v562
        %v573 = vadd.f32 %v553, %v563
        %v574 = vadd.f32 %v554, %v564
        %v575 = vadd.f32 %v555, %v565
        %v576 = vadd.f32 %v556, %v566
        %v577 = vadd.f32 %v557, %v567
        %v578 = vadd.f32 %v558, %v568
        %v579 = vadd.f32 %v559, %v569
        %v580 = vadd.f32 %v560, %v570
        %v581 = vadd.f32 %v561, %v571
        %v582 = vmul.f32 %v531, %v348
        %v583 = vmul.f32 %v531, %v349
        %v584 = vmul.f32 %v531, %v350
        %v585 = vmul.f32 %v531, %v351
        %v586 = vmul.f32 %v531, %v352
        %v587 = vmul.f32 %v531, %v353
        %v588 = vmul.f32 %v531, %v354
        %v589 = vmul.f32 %v531, %v355
        %v590 = vmul.f32 %v531, %v356
        %v591 = vmul.f32 %v531, %v357
        %v592 = vadd.f32 %v572, %v582
        %v593 = vadd.f32 %v573, %v583
        %v594 = vadd.f32 %v574, %v584
        %v595 = vadd.f32 %v575, %v585
        %v596 = vadd.f32 %v576, %v586
        %v597 = vadd.f32 %v577, %v587
        %v598 = vadd.f32 %v578, %v588
        %v599 = vadd.f32 %v579, %v589
        %v600 = vadd.f32 %v580, %v590
        %v601 = vadd.f32 %v581, %v591
        %v602 = vmax.f32 %v542, %v592
        %v603 = vmax.f32 %v543, %v593
        %v604 = vmax.f32 %v544, %v594
        %v605 = vmax.f32 %v545, %v595
        %v606 = vmax.f32 %v546, %v596
        %v607 = vmax.f32 %v547, %v597
        %v608 = vmax.f32 %v548, %v598
        %v609 = vmax.f32 %v549, %v599
        %v610 = vmax.f32 %v550, %v600
        %v611 = vmax.f32 %v551, %v601
        %s612 = sld [smem:[#allocation4 + $0x1]]
        %v613 = vstv %s612
        %v614 = vadd.f32 %v602, %v613
        %v615 = vadd.f32 %v603, %v613
        %v616 = vadd.f32 %v604, %v613
        %v617 = vadd.f32 %v605, %v613
        %v618 = vadd.f32 %v606, %v613
        %v619 = vadd.f32 %v607, %v613
        %v620 = vadd.f32 %v608, %v613
        %v621 = vadd.f32 %v609, %v613
        %v622 = vadd.f32 %v610, %v613
        %v623 = vadd.f32 %v611, %v613
        %v624 = vmax.f32 %v614, 0.0
        %v625 = vmax.f32 %v615, 0.0
        %v626 = vmax.f32 %v616, 0.0
        %v627 = vmax.f32 %v617, 0.0
        %v628 = vmax.f32 %v618, 0.0
        %v629 = vmax.f32 %v619, 0.0
        %v630 = vmax.f32 %v620, 0.0
        %v631 = vmax.f32 %v621, 0.0
        %v632 = vmax.f32 %v622, 0.0
        %v633 = vmax.f32 %v623, 0.0
        %s634 = scalar_lea.vmem %s298, 400
        %v635 = vld [vmem:[%s634] sm:$0xff]
        %v636 = vld [vmem:[%s634 + $0x8] sm:$0xff]
        %v637 = vld [vmem:[%s634 + $0x10] sm:$0xff]
        %v638 = vld [vmem:[%s634 + $0x18] sm:$0xff]
        %v639 = vld [vmem:[%s634 + $0x20] sm:$0xff]
        %v640 = vld [vmem:[%s634 + $0x28] sm:$0xff]
        %v641 = vld [vmem:[%s634 + $0x30] sm:$0xff]
        %v642 = vld [vmem:[%s634 + $0x38] sm:$0xff]
        %v643 = vld [vmem:[%s634 + $0x40] sm:$0xff]
        %v644 = vld [vmem:[%s634 + $0x48] sm:$0xff]
        %s645 = scalar_lea.vmem %s298, 480
        %v646 = vld [vmem:[%s645] sm:$0xff]
        %v647 = vld [vmem:[%s645 + $0x8] sm:$0xff]
        %v648 = vld [vmem:[%s645 + $0x10] sm:$0xff]
        %v649 = vld [vmem:[%s645 + $0x18] sm:$0xff]
        %v650 = vld [vmem:[%s645 + $0x20] sm:$0xff]
        %v651 = vld [vmem:[%s645 + $0x28] sm:$0xff]
        %v652 = vld [vmem:[%s645 + $0x30] sm:$0xff]
        %v653 = vld [vmem:[%s645 + $0x38] sm:$0xff]
        %v654 = vld [vmem:[%s645 + $0x40] sm:$0xff]
        %v655 = vld [vmem:[%s645 + $0x48] sm:$0xff]
        %s656 = scalar_lea.vmem %s298, 560
        %v657 = vld [vmem:[%s656] sm:$0xff]
        %v658 = vld [vmem:[%s656 + $0x8] sm:$0xff]
        %v659 = vld [vmem:[%s656 + $0x10] sm:$0xff]
        %v660 = vld [vmem:[%s656 + $0x18] sm:$0xff]
        %v661 = vld [vmem:[%s656 + $0x20] sm:$0xff]
        %v662 = vld [vmem:[%s656 + $0x28] sm:$0xff]
        %v663 = vld [vmem:[%s656 + $0x30] sm:$0xff]
        %v664 = vld [vmem:[%s656 + $0x38] sm:$0xff]
        %v665 = vld [vmem:[%s656 + $0x40] sm:$0xff]
        %v666 = vld [vmem:[%s656 + $0x48] sm:$0xff]
        %s667 = scalar_lea.vmem %s298, 640
        %v668 = vld [vmem:[%s667] sm:$0xff]
        %v669 = vld [vmem:[%s667 + $0x8] sm:$0xff]
        %v670 = vld [vmem:[%s667 + $0x10] sm:$0xff]
        %v671 = vld [vmem:[%s667 + $0x18] sm:$0xff]
        %v672 = vld [vmem:[%s667 + $0x20] sm:$0xff]
        %v673 = vld [vmem:[%s667 + $0x28] sm:$0xff]
        %v674 = vld [vmem:[%s667 + $0x30] sm:$0xff]
        %v675 = vld [vmem:[%s667 + $0x38] sm:$0xff]
        %v676 = vld [vmem:[%s667 + $0x40] sm:$0xff]
        %v677 = vld [vmem:[%s667 + $0x48] sm:$0xff]
        %v678 = vmul.f32 %v361, %v348
        %v679 = vmul.f32 %v361, %v349
        %v680 = vmul.f32 %v361, %v350
        %v681 = vmul.f32 %v361, %v351
        %v682 = vmul.f32 %v361, %v352
        %v683 = vmul.f32 %v361, %v353
        %v684 = vmul.f32 %v361, %v354
        %v685 = vmul.f32 %v361, %v355
        %v686 = vmul.f32 %v361, %v356
        %v687 = vmul.f32 %v361, %v357
        %v688 = vmul.f32 %v372, %v635
        %v689 = vmul.f32 %v372, %v636
        %v690 = vmul.f32 %v372, %v637
        %v691 = vmul.f32 %v372, %v638
        %v692 = vmul.f32 %v372, %v639
        %v693 = vmul.f32 %v372, %v640
        %v694 = vmul.f32 %v372, %v641
        %v695 = vmul.f32 %v372, %v642
        %v696 = vmul.f32 %v372, %v643
        %v697 = vmul.f32 %v372, %v644
        %v698 = vadd.f32 %v678, %v688
        %v699 = vadd.f32 %v679, %v689
        %v700 = vadd.f32 %v680, %v690
        %v701 = vadd.f32 %v681, %v691
        %v702 = vadd.f32 %v682, %v692
        %v703 = vadd.f32 %v683, %v693
        %v704 = vadd.f32 %v684, %v694
        %v705 = vadd.f32 %v685, %v695
        %v706 = vadd.f32 %v686, %v696
        %v707 = vadd.f32 %v687, %v697
        %v708 = vmul.f32 %v393, %v646
        %v709 = vmul.f32 %v393, %v647
        %v710 = vmul.f32 %v393, %v648
        %v711 = vmul.f32 %v393, %v649
        %v712 = vmul.f32 %v393, %v650
        %v713 = vmul.f32 %v393, %v651
        %v714 = vmul.f32 %v393, %v652
        %v715 = vmul.f32 %v393, %v653
        %v716 = vmul.f32 %v393, %v654
        %v717 = vmul.f32 %v393, %v655
        %v718 = vadd.f32 %v698, %v708
        %v719 = vadd.f32 %v699, %v709
        %v720 = vadd.f32 %v700, %v710
        %v721 = vadd.f32 %v701, %v711
        %v722 = vadd.f32 %v702, %v712
        %v723 = vadd.f32 %v703, %v713
        %v724 = vadd.f32 %v704, %v714
        %v725 = vadd.f32 %v705, %v715
        %v726 = vadd.f32 %v706, %v716
        %v727 = vadd.f32 %v707, %v717
        %v728 = vmul.f32 %v361, %v646
        %v729 = vmul.f32 %v361, %v647
        %v730 = vmul.f32 %v361, %v648
        %v731 = vmul.f32 %v361, %v649
        %v732 = vmul.f32 %v361, %v650
        %v733 = vmul.f32 %v361, %v651
        %v734 = vmul.f32 %v361, %v652
        %v735 = vmul.f32 %v361, %v653
        %v736 = vmul.f32 %v361, %v654
        %v737 = vmul.f32 %v361, %v655
        %v738 = vmul.f32 %v372, %v657
        %v739 = vmul.f32 %v372, %v658
        %v740 = vmul.f32 %v372, %v659
        %v741 = vmul.f32 %v372, %v660
        %v742 = vmul.f32 %v372, %v661
        %v743 = vmul.f32 %v372, %v662
        %v744 = vmul.f32 %v372, %v663
        %v745 = vmul.f32 %v372, %v664
        %v746 = vmul.f32 %v372, %v665
        %v747 = vmul.f32 %v372, %v666
        %v748 = vadd.f32 %v728, %v738
        %v749 = vadd.f32 %v729, %v739
        %v750 = vadd.f32 %v730, %v740
        %v751 = vadd.f32 %v731, %v741
        %v752 = vadd.f32 %v732, %v742
        %v753 = vadd.f32 %v733, %v743
        %v754 = vadd.f32 %v734, %v744
        %v755 = vadd.f32 %v735, %v745
        %v756 = vadd.f32 %v736, %v746
        %v757 = vadd.f32 %v737, %v747
        %v758 = vmul.f32 %v393, %v668
        %v759 = vmul.f32 %v393, %v669
        %v760 = vmul.f32 %v393, %v670
        %v761 = vmul.f32 %v393, %v671
        %v762 = vmul.f32 %v393, %v672
        %v763 = vmul.f32 %v393, %v673
        %v764 = vmul.f32 %v393, %v674
        %v765 = vmul.f32 %v393, %v675
        %v766 = vmul.f32 %v393, %v676
        %v767 = vmul.f32 %v393, %v677
        %v768 = vadd.f32 %v748, %v758
        %v769 = vadd.f32 %v749, %v759
        %v770 = vadd.f32 %v750, %v760
        %v771 = vadd.f32 %v751, %v761
        %v772 = vadd.f32 %v752, %v762
        %v773 = vadd.f32 %v753, %v763
        %v774 = vadd.f32 %v754, %v764
        %v775 = vadd.f32 %v755, %v765
        %v776 = vadd.f32 %v756, %v766
        %v777 = vadd.f32 %v757, %v767
        %v778 = vmax.f32 %v718, %v768
        %v779 = vmax.f32 %v719, %v769
        %v780 = vmax.f32 %v720, %v770
        %v781 = vmax.f32 %v721, %v771
        %v782 = vmax.f32 %v722, %v772
        %v783 = vmax.f32 %v723, %v773
        %v784 = vmax.f32 %v724, %v774
        %v785 = vmax.f32 %v725, %v775
        %v786 = vmax.f32 %v726, %v776
        %v787 = vmax.f32 %v727, %v777
        %v788 = vadd.f32 %v778, %v475
        %v789 = vadd.f32 %v779, %v475
        %v790 = vadd.f32 %v780, %v475
        %v791 = vadd.f32 %v781, %v475
        %v792 = vadd.f32 %v782, %v475
        %v793 = vadd.f32 %v783, %v475
        %v794 = vadd.f32 %v784, %v475
        %v795 = vadd.f32 %v785, %v475
        %v796 = vadd.f32 %v786, %v475
        %v797 = vadd.f32 %v787, %v475
        %v798 = vmax.f32 %v788, 0.0
        %v799 = vmax.f32 %v789, 0.0
        %v800 = vmax.f32 %v790, 0.0
        %v801 = vmax.f32 %v791, 0.0
        %v802 = vmax.f32 %v792, 0.0
        %v803 = vmax.f32 %v793, 0.0
        %v804 = vmax.f32 %v794, 0.0
        %v805 = vmax.f32 %v795, 0.0
        %v806 = vmax.f32 %v796, 0.0
        %v807 = vmax.f32 %v797, 0.0
        %v808 = vmul.f32 %v499, %v348
        %v809 = vmul.f32 %v499, %v349
        %v810 = vmul.f32 %v499, %v350
        %v811 = vmul.f32 %v499, %v351
        %v812 = vmul.f32 %v499, %v352
        %v813 = vmul.f32 %v499, %v353
        %v814 = vmul.f32 %v499, %v354
        %v815 = vmul.f32 %v499, %v355
        %v816 = vmul.f32 %v499, %v356
        %v817 = vmul.f32 %v499, %v357
        %v818 = vmul.f32 %v510, %v635
        %v819 = vmul.f32 %v510, %v636
        %v820 = vmul.f32 %v510, %v637
        %v821 = vmul.f32 %v510, %v638
        %v822 = vmul.f32 %v510, %v639
        %v823 = vmul.f32 %v510, %v640
        %v824 = vmul.f32 %v510, %v641
        %v825 = vmul.f32 %v510, %v642
        %v826 = vmul.f32 %v510, %v643
        %v827 = vmul.f32 %v510, %v644
        %v828 = vadd.f32 %v808, %v818
        %v829 = vadd.f32 %v809, %v819
        %v830 = vadd.f32 %v810, %v820
        %v831 = vadd.f32 %v811, %v821
        %v832 = vadd.f32 %v812, %v822
        %v833 = vadd.f32 %v813, %v823
        %v834 = vadd.f32 %v814, %v824
        %v835 = vadd.f32 %v815, %v825
        %v836 = vadd.f32 %v816, %v826
        %v837 = vadd.f32 %v817, %v827
        %v838 = vmul.f32 %v531, %v646
        %v839 = vmul.f32 %v531, %v647
        %v840 = vmul.f32 %v531, %v648
        %v841 = vmul.f32 %v531, %v649
        %v842 = vmul.f32 %v531, %v650
        %v843 = vmul.f32 %v531, %v651
        %v844 = vmul.f32 %v531, %v652
        %v845 = vmul.f32 %v531, %v653
        %v846 = vmul.f32 %v531, %v654
        %v847 = vmul.f32 %v531, %v655
        %v848 = vadd.f32 %v828, %v838
        %v849 = vadd.f32 %v829, %v839
        %v850 = vadd.f32 %v830, %v840
        %v851 = vadd.f32 %v831, %v841
        %v852 = vadd.f32 %v832, %v842
        %v853 = vadd.f32 %v833, %v843
        %v854 = vadd.f32 %v834, %v844
        %v855 = vadd.f32 %v835, %v845
        %v856 = vadd.f32 %v836, %v846
        %v857 = vadd.f32 %v837, %v847
        %v858 = vmul.f32 %v499, %v646
        %v859 = vmul.f32 %v499, %v647
        %v860 = vmul.f32 %v499, %v648
        %v861 = vmul.f32 %v499, %v649
        %v862 = vmul.f32 %v499, %v650
        %v863 = vmul.f32 %v499, %v651
        %v864 = vmul.f32 %v499, %v652
        %v865 = vmul.f32 %v499, %v653
        %v866 = vmul.f32 %v499, %v654
        %v867 = vmul.f32 %v499, %v655
        %v868 = vmul.f32 %v510, %v657
        %v869 = vmul.f32 %v510, %v658
        %v870 = vmul.f32 %v510, %v659
        %v871 = vmul.f32 %v510, %v660
        %v872 = vmul.f32 %v510, %v661
        %v873 = vmul.f32 %v510, %v662
        %v874 = vmul.f32 %v510, %v663
        %v875 = vmul.f32 %v510, %v664
        %v876 = vmul.f32 %v510, %v665
        %v877 = vmul.f32 %v510, %v666
        %v878 = vadd.f32 %v858, %v868
        %v879 = vadd.f32 %v859, %v869
        %v880 = vadd.f32 %v860, %v870
        %v881 = vadd.f32 %v861, %v871
        %v882 = vadd.f32 %v862, %v872
        %v883 = vadd.f32 %v863, %v873
        %v884 = vadd.f32 %v864, %v874
        %v885 = vadd.f32 %v865, %v875
        %v886 = vadd.f32 %v866, %v876
        %v887 = vadd.f32 %v867, %v877
        %v888 = vmul.f32 %v531, %v668
        %v889 = vmul.f32 %v531, %v669
        %v890 = vmul.f32 %v531, %v670
        %v891 = vmul.f32 %v531, %v671
        %v892 = vmul.f32 %v531, %v672
        %v893 = vmul.f32 %v531, %v673
        %v894 = vmul.f32 %v531, %v674
        %v895 = vmul.f32 %v531, %v675
        %v896 = vmul.f32 %v531, %v676
        %v897 = vmul.f32 %v531, %v677
        %v898 = vadd.f32 %v878, %v888
        %v899 = vadd.f32 %v879, %v889
        %v900 = vadd.f32 %v880, %v890
        %v901 = vadd.f32 %v881, %v891
        %v902 = vadd.f32 %v882, %v892
        %v903 = vadd.f32 %v883, %v893
        %v904 = vadd.f32 %v884, %v894
        %v905 = vadd.f32 %v885, %v895
        %v906 = vadd.f32 %v886, %v896
        %v907 = vadd.f32 %v887, %v897
        %v908 = vmax.f32 %v848, %v898
        %v909 = vmax.f32 %v849, %v899
        %v910 = vmax.f32 %v850, %v900
        %v911 = vmax.f32 %v851, %v901
        %v912 = vmax.f32 %v852, %v902
        %v913 = vmax.f32 %v853, %v903
        %v914 = vmax.f32 %v854, %v904
        %v915 = vmax.f32 %v855, %v905
        %v916 = vmax.f32 %v856, %v906
        %v917 = vmax.f32 %v857, %v907
        %v918 = vadd.f32 %v908, %v613
        %v919 = vadd.f32 %v909, %v613
        %v920 = vadd.f32 %v910, %v613
        %v921 = vadd.f32 %v911, %v613
        %v922 = vadd.f32 %v912, %v613
        %v923 = vadd.f32 %v913, %v613
        %v924 = vadd.f32 %v914, %v613
        %v925 = vadd.f32 %v915, %v613
        %v926 = vadd.f32 %v916, %v613
        %v927 = vadd.f32 %v917, %v613
        %v928 = vmax.f32 %v918, 0.0
        %v929 = vmax.f32 %v919, 0.0
        %v930 = vmax.f32 %v920, 0.0
        %v931 = vmax.f32 %v921, 0.0
        %v932 = vmax.f32 %v922, 0.0
        %v933 = vmax.f32 %v923, 0.0
        %v934 = vmax.f32 %v924, 0.0
        %v935 = vmax.f32 %v925, 0.0
        %v936 = vmax.f32 %v926, 0.0
        %v937 = vmax.f32 %v927, 0.0
        %s938 = scalar_lea.vmem %s298, 720
        %v939 = vld [vmem:[%s938] sm:$0xff]
        %v940 = vld [vmem:[%s938 + $0x8] sm:$0xff]
        %v941 = vld [vmem:[%s938 + $0x10] sm:$0xff]
        %v942 = vld [vmem:[%s938 + $0x18] sm:$0xff]
        %v943 = vld [vmem:[%s938 + $0x20] sm:$0xff]
        %v944 = vld [vmem:[%s938 + $0x28] sm:$0xff]
        %v945 = vld [vmem:[%s938 + $0x30] sm:$0xff]
        %v946 = vld [vmem:[%s938 + $0x38] sm:$0xff]
        %v947 = vld [vmem:[%s938 + $0x40] sm:$0xff]
        %v948 = vld [vmem:[%s938 + $0x48] sm:$0xff]
        %s949 = scalar_lea.vmem %s298, 800
        %v950 = vld [vmem:[%s949] sm:$0xff]
        %v951 = vld [vmem:[%s949 + $0x8] sm:$0xff]
        %v952 = vld [vmem:[%s949 + $0x10] sm:$0xff]
        %v953 = vld [vmem:[%s949 + $0x18] sm:$0xff]
        %v954 = vld [vmem:[%s949 + $0x20] sm:$0xff]
        %v955 = vld [vmem:[%s949 + $0x28] sm:$0xff]
        %v956 = vld [vmem:[%s949 + $0x30] sm:$0xff]
        %v957 = vld [vmem:[%s949 + $0x38] sm:$0xff]
        %v958 = vld [vmem:[%s949 + $0x40] sm:$0xff]
        %v959 = vld [vmem:[%s949 + $0x48] sm:$0xff]
        %s960 = scalar_lea.vmem %s298, 880
        %v961 = vld [vmem:[%s960] sm:$0xff]
        %v962 = vld [vmem:[%s960 + $0x8] sm:$0xff]
        %v963 = vld [vmem:[%s960 + $0x10] sm:$0xff]
        %v964 = vld [vmem:[%s960 + $0x18] sm:$0xff]
        %v965 = vld [vmem:[%s960 + $0x20] sm:$0xff]
        %v966 = vld [vmem:[%s960 + $0x28] sm:$0xff]
        %v967 = vld [vmem:[%s960 + $0x30] sm:$0xff]
        %v968 = vld [vmem:[%s960 + $0x38] sm:$0xff]
        %v969 = vld [vmem:[%s960 + $0x40] sm:$0xff]
        %v970 = vld [vmem:[%s960 + $0x48] sm:$0xff]
        %s971 = scalar_lea.vmem %s298, 960
        %v972 = vld [vmem:[%s971] sm:$0xff]
        %v973 = vld [vmem:[%s971 + $0x8] sm:$0xff]
        %v974 = vld [vmem:[%s971 + $0x10] sm:$0xff]
        %v975 = vld [vmem:[%s971 + $0x18] sm:$0xff]
        %v976 = vld [vmem:[%s971 + $0x20] sm:$0xff]
        %v977 = vld [vmem:[%s971 + $0x28] sm:$0xff]
        %v978 = vld [vmem:[%s971 + $0x30] sm:$0xff]
        %v979 = vld [vmem:[%s971 + $0x38] sm:$0xff]
        %v980 = vld [vmem:[%s971 + $0x40] sm:$0xff]
        %v981 = vld [vmem:[%s971 + $0x48] sm:$0xff]
        %v982 = vmul.f32 %v361, %v668
        %v983 = vmul.f32 %v361, %v669
        %v984 = vmul.f32 %v361, %v670
        %v985 = vmul.f32 %v361, %v671
        %v986 = vmul.f32 %v361, %v672
        %v987 = vmul.f32 %v361, %v673
        %v988 = vmul.f32 %v361, %v674
        %v989 = vmul.f32 %v361, %v675
        %v990 = vmul.f32 %v361, %v676
        %v991 = vmul.f32 %v361, %v677
        %v992 = vmul.f32 %v372, %v939
        %v993 = vmul.f32 %v372, %v940
        %v994 = vmul.f32 %v372, %v941
        %v995 = vmul.f32 %v372, %v942
        %v996 = vmul.f32 %v372, %v943
        %v997 = vmul.f32 %v372, %v944
        %v998 = vmul.f32 %v372, %v945
        %v999 = vmul.f32 %v372, %v946
        %v1000 = vmul.f32 %v372, %v947
        %v1001 = vmul.f32 %v372, %v948
        %v1002 = vadd.f32 %v982, %v992
        %v1003 = vadd.f32 %v983, %v993
        %v1004 = vadd.f32 %v984, %v994
        %v1005 = vadd.f32 %v985, %v995
        %v1006 = vadd.f32 %v986, %v996
        %v1007 = vadd.f32 %v987, %v997
        %v1008 = vadd.f32 %v988, %v998
        %v1009 = vadd.f32 %v989, %v999
        %v1010 = vadd.f32 %v990, %v1000
        %v1011 = vadd.f32 %v991, %v1001
        %v1012 = vmul.f32 %v393, %v950
        %v1013 = vmul.f32 %v393, %v951
        %v1014 = vmul.f32 %v393, %v952
        %v1015 = vmul.f32 %v393, %v953
        %v1016 = vmul.f32 %v393, %v954
        %v1017 = vmul.f32 %v393, %v955
        %v1018 = vmul.f32 %v393, %v956
        %v1019 = vmul.f32 %v393, %v957
        %v1020 = vmul.f32 %v393, %v958
        %v1021 = vmul.f32 %v393, %v959
        %v1022 = vadd.f32 %v1002, %v1012
        %v1023 = vadd.f32 %v1003, %v1013
        %v1024 = vadd.f32 %v1004, %v1014
        %v1025 = vadd.f32 %v1005, %v1015
        %v1026 = vadd.f32 %v1006, %v1016
        %v1027 = vadd.f32 %v1007, %v1017
        %v1028 = vadd.f32 %v1008, %v1018
        %v1029 = vadd.f32 %v1009, %v1019
        %v1030 = vadd.f32 %v1010, %v1020
        %v1031 = vadd.f32 %v1011, %v1021
        %v1032 = vmul.f32 %v361, %v950
        %v1033 = vmul.f32 %v361, %v951
        %v1034 = vmul.f32 %v361, %v952
        %v1035 = vmul.f32 %v361, %v953
        %v1036 = vmul.f32 %v361, %v954
        %v1037 = vmul.f32 %v361, %v955
        %v1038 = vmul.f32 %v361, %v956
        %v1039 = vmul.f32 %v361, %v957
        %v1040 = vmul.f32 %v361, %v958
        %v1041 = vmul.f32 %v361, %v959
        %v1042 = vmul.f32 %v372, %v961
        %v1043 = vmul.f32 %v372, %v962
        %v1044 = vmul.f32 %v372, %v963
        %v1045 = vmul.f32 %v372, %v964
        %v1046 = vmul.f32 %v372, %v965
        %v1047 = vmul.f32 %v372, %v966
        %v1048 = vmul.f32 %v372, %v967
        %v1049 = vmul.f32 %v372, %v968
        %v1050 = vmul.f32 %v372, %v969
        %v1051 = vmul.f32 %v372, %v970
        %v1052 = vadd.f32 %v1032, %v1042
        %v1053 = vadd.f32 %v1033, %v1043
        %v1054 = vadd.f32 %v1034, %v1044
        %v1055 = vadd.f32 %v1035, %v1045
        %v1056 = vadd.f32 %v1036, %v1046
        %v1057 = vadd.f32 %v1037, %v1047
        %v1058 = vadd.f32 %v1038, %v1048
        %v1059 = vadd.f32 %v1039, %v1049
        %v1060 = vadd.f32 %v1040, %v1050
        %v1061 = vadd.f32 %v1041, %v1051
        %v1062 = vmul.f32 %v393, %v972
        %v1063 = vmul.f32 %v393, %v973
        %v1064 = vmul.f32 %v393, %v974
        %v1065 = vmul.f32 %v393, %v975
        %v1066 = vmul.f32 %v393, %v976
        %v1067 = vmul.f32 %v393, %v977
        %v1068 = vmul.f32 %v393, %v978
        %v1069 = vmul.f32 %v393, %v979
        %v1070 = vmul.f32 %v393, %v980
        %v1071 = vmul.f32 %v393, %v981
        %v1072 = vadd.f32 %v1052, %v1062
        %v1073 = vadd.f32 %v1053, %v1063
        %v1074 = vadd.f32 %v1054, %v1064
        %v1075 = vadd.f32 %v1055, %v1065
        %v1076 = vadd.f32 %v1056, %v1066
        %v1077 = vadd.f32 %v1057, %v1067
        %v1078 = vadd.f32 %v1058, %v1068
        %v1079 = vadd.f32 %v1059, %v1069
        %v1080 = vadd.f32 %v1060, %v1070
        %v1081 = vadd.f32 %v1061, %v1071
        %v1082 = vmax.f32 %v1022, %v1072
        %v1083 = vmax.f32 %v1023, %v1073
        %v1084 = vmax.f32 %v1024, %v1074
        %v1085 = vmax.f32 %v1025, %v1075
        %v1086 = vmax.f32 %v1026, %v1076
        %v1087 = vmax.f32 %v1027, %v1077
        %v1088 = vmax.f32 %v1028, %v1078
        %v1089 = vmax.f32 %v1029, %v1079
        %v1090 = vmax.f32 %v1030, %v1080
        %v1091 = vmax.f32 %v1031, %v1081
        %v1092 = vadd.f32 %v1082, %v475
        %v1093 = vadd.f32 %v1083, %v475
        %v1094 = vadd.f32 %v1084, %v475
        %v1095 = vadd.f32 %v1085, %v475
        %v1096 = vadd.f32 %v1086, %v475
        %v1097 = vadd.f32 %v1087, %v475
        %v1098 = vadd.f32 %v1088, %v475
        %v1099 = vadd.f32 %v1089, %v475
        %v1100 = vadd.f32 %v1090, %v475
        %v1101 = vadd.f32 %v1091, %v475
        %v1102 = vmax.f32 %v1092, 0.0
        %v1103 = vmax.f32 %v1093, 0.0
        %v1104 = vmax.f32 %v1094, 0.0
        %v1105 = vmax.f32 %v1095, 0.0
        %v1106 = vmax.f32 %v1096, 0.0
        %v1107 = vmax.f32 %v1097, 0.0
        %v1108 = vmax.f32 %v1098, 0.0
        %v1109 = vmax.f32 %v1099, 0.0
        %v1110 = vmax.f32 %v1100, 0.0
        %v1111 = vmax.f32 %v1101, 0.0
        %v1112 = vmul.f32 %v499, %v668
        %v1113 = vmul.f32 %v499, %v669
        %v1114 = vmul.f32 %v499, %v670
        %v1115 = vmul.f32 %v499, %v671
        %v1116 = vmul.f32 %v499, %v672
        %v1117 = vmul.f32 %v499, %v673
        %v1118 = vmul.f32 %v499, %v674
        %v1119 = vmul.f32 %v499, %v675
        %v1120 = vmul.f32 %v499, %v676
        %v1121 = vmul.f32 %v499, %v677
        %v1122 = vmul.f32 %v510, %v939
        %v1123 = vmul.f32 %v510, %v940
        %v1124 = vmul.f32 %v510, %v941
        %v1125 = vmul.f32 %v510, %v942
        %v1126 = vmul.f32 %v510, %v943
        %v1127 = vmul.f32 %v510, %v944
        %v1128 = vmul.f32 %v510, %v945
        %v1129 = vmul.f32 %v510, %v946
        %v1130 = vmul.f32 %v510, %v947
        %v1131 = vmul.f32 %v510, %v948
        %v1132 = vadd.f32 %v1112, %v1122
        %v1133 = vadd.f32 %v1113, %v1123
        %v1134 = vadd.f32 %v1114, %v1124
        %v1135 = vadd.f32 %v1115, %v1125
        %v1136 = vadd.f32 %v1116, %v1126
        %v1137 = vadd.f32 %v1117, %v1127
        %v1138 = vadd.f32 %v1118, %v1128
        %v1139 = vadd.f32 %v1119, %v1129
        %v1140 = vadd.f32 %v1120, %v1130
        %v1141 = vadd.f32 %v1121, %v1131
        %v1142 = vmul.f32 %v531, %v950
        %v1143 = vmul.f32 %v531, %v951
        %v1144 = vmul.f32 %v531, %v952
        %v1145 = vmul.f32 %v531, %v953
        %v1146 = vmul.f32 %v531, %v954
        %v1147 = vmul.f32 %v531, %v955
        %v1148 = vmul.f32 %v531, %v956
        %v1149 = vmul.f32 %v531, %v957
        %v1150 = vmul.f32 %v531, %v958
        %v1151 = vmul.f32 %v531, %v959
        %v1152 = vadd.f32 %v1132, %v1142
        %v1153 = vadd.f32 %v1133, %v1143
        %v1154 = vadd.f32 %v1134, %v1144
        %v1155 = vadd.f32 %v1135, %v1145
        %v1156 = vadd.f32 %v1136, %v1146
        %v1157 = vadd.f32 %v1137, %v1147
        %v1158 = vadd.f32 %v1138, %v1148
        %v1159 = vadd.f32 %v1139, %v1149
        %v1160 = vadd.f32 %v1140, %v1150
        %v1161 = vadd.f32 %v1141, %v1151
        %v1162 = vmul.f32 %v499, %v950
        %v1163 = vmul.f32 %v499, %v951
        %v1164 = vmul.f32 %v499, %v952
        %v1165 = vmul.f32 %v499, %v953
        %v1166 = vmul.f32 %v499, %v954
        %v1167 = vmul.f32 %v499, %v955
        %v1168 = vmul.f32 %v499, %v956
        %v1169 = vmul.f32 %v499, %v957
        %v1170 = vmul.f32 %v499, %v958
        %v1171 = vmul.f32 %v499, %v959
        %v1172 = vmul.f32 %v510, %v961
        %v1173 = vmul.f32 %v510, %v962
        %v1174 = vmul.f32 %v510, %v963
        %v1175 = vmul.f32 %v510, %v964
        %v1176 = vmul.f32 %v510, %v965
        %v1177 = vmul.f32 %v510, %v966
        %v1178 = vmul.f32 %v510, %v967
        %v1179 = vmul.f32 %v510, %v968
        %v1180 = vmul.f32 %v510, %v969
        %v1181 = vmul.f32 %v510, %v970
        %v1182 = vadd.f32 %v1162, %v1172
        %v1183 = vadd.f32 %v1163, %v1173
        %v1184 = vadd.f32 %v1164, %v1174
        %v1185 = vadd.f32 %v1165, %v1175
        %v1186 = vadd.f32 %v1166, %v1176
        %v1187 = vadd.f32 %v1167, %v1177
        %v1188 = vadd.f32 %v1168, %v1178
        %v1189 = vadd.f32 %v1169, %v1179
        %v1190 = vadd.f32 %v1170, %v1180
        %v1191 = vadd.f32 %v1171, %v1181
        %v1192 = vmul.f32 %v531, %v972
        %v1193 = vmul.f32 %v531, %v973
        %v1194 = vmul.f32 %v531, %v974
        %v1195 = vmul.f32 %v531, %v975
        %v1196 = vmul.f32 %v531, %v976
        %v1197 = vmul.f32 %v531, %v977
        %v1198 = vmul.f32 %v531, %v978
        %v1199 = vmul.f32 %v531, %v979
        %v1200 = vmul.f32 %v531, %v980
        %v1201 = vmul.f32 %v531, %v981
        %v1202 = vadd.f32 %v1182, %v1192
        %v1203 = vadd.f32 %v1183, %v1193
        %v1204 = vadd.f32 %v1184, %v1194
        %v1205 = vadd.f32 %v1185, %v1195
        %v1206 = vadd.f32 %v1186, %v1196
        %v1207 = vadd.f32 %v1187, %v1197
        %v1208 = vadd.f32 %v1188, %v1198
        %v1209 = vadd.f32 %v1189, %v1199
        %v1210 = vadd.f32 %v1190, %v1200
        %v1211 = vadd.f32 %v1191, %v1201
        %v1212 = vmax.f32 %v1152, %v1202
        %v1213 = vmax.f32 %v1153, %v1203
        %v1214 = vmax.f32 %v1154, %v1204
        %v1215 = vmax.f32 %v1155, %v1205
        %v1216 = vmax.f32 %v1156, %v1206
        %v1217 = vmax.f32 %v1157, %v1207
        %v1218 = vmax.f32 %v1158, %v1208
        %v1219 = vmax.f32 %v1159, %v1209
        %v1220 = vmax.f32 %v1160, %v1210
        %v1221 = vmax.f32 %v1161, %v1211
        %v1222 = vadd.f32 %v1212, %v613
        %v1223 = vadd.f32 %v1213, %v613
        %v1224 = vadd.f32 %v1214, %v613
        %v1225 = vadd.f32 %v1215, %v613
        %v1226 = vadd.f32 %v1216, %v613
        %v1227 = vadd.f32 %v1217, %v613
        %v1228 = vadd.f32 %v1218, %v613
        %v1229 = vadd.f32 %v1219, %v613
        %v1230 = vadd.f32 %v1220, %v613
        %v1231 = vadd.f32 %v1221, %v613
        %v1232 = vmax.f32 %v1222, 0.0
        %v1233 = vmax.f32 %v1223, 0.0
        %v1234 = vmax.f32 %v1224, 0.0
        %v1235 = vmax.f32 %v1225, 0.0
        %v1236 = vmax.f32 %v1226, 0.0
        %v1237 = vmax.f32 %v1227, 0.0
        %v1238 = vmax.f32 %v1228, 0.0
        %v1239 = vmax.f32 %v1229, 0.0
        %v1240 = vmax.f32 %v1230, 0.0
        %v1241 = vmax.f32 %v1231, 0.0
        %s1242 = scalar_lea.vmem %s298, 1040
        %v1243 = vld [vmem:[%s1242] sm:$0xff]
        %v1244 = vld [vmem:[%s1242 + $0x8] sm:$0xff]
        %v1245 = vld [vmem:[%s1242 + $0x10] sm:$0xff]
        %v1246 = vld [vmem:[%s1242 + $0x18] sm:$0xff]
        %v1247 = vld [vmem:[%s1242 + $0x20] sm:$0xff]
        %v1248 = vld [vmem:[%s1242 + $0x28] sm:$0xff]
        %v1249 = vld [vmem:[%s1242 + $0x30] sm:$0xff]
        %v1250 = vld [vmem:[%s1242 + $0x38] sm:$0xff]
        %v1251 = vld [vmem:[%s1242 + $0x40] sm:$0xff]
        %v1252 = vld [vmem:[%s1242 + $0x48] sm:$0xff]
        %s1253 = scalar_lea.vmem %s298, 1120
        %v1254 = vld [vmem:[%s1253] sm:$0xff]
        %v1255 = vld [vmem:[%s1253 + $0x8] sm:$0xff]
        %v1256 = vld [vmem:[%s1253 + $0x10] sm:$0xff]
        %v1257 = vld [vmem:[%s1253 + $0x18] sm:$0xff]
        %v1258 = vld [vmem:[%s1253 + $0x20] sm:$0xff]
        %v1259 = vld [vmem:[%s1253 + $0x28] sm:$0xff]
        %v1260 = vld [vmem:[%s1253 + $0x30] sm:$0xff]
        %v1261 = vld [vmem:[%s1253 + $0x38] sm:$0xff]
        %v1262 = vld [vmem:[%s1253 + $0x40] sm:$0xff]
        %v1263 = vld [vmem:[%s1253 + $0x48] sm:$0xff]
        %s1264 = scalar_lea.vmem %s298, 1200
        %v1265 = vld [vmem:[%s1264] sm:$0xff]
        %v1266 = vld [vmem:[%s1264 + $0x8] sm:$0xff]
        %v1267 = vld [vmem:[%s1264 + $0x10] sm:$0xff]
        %v1268 = vld [vmem:[%s1264 + $0x18] sm:$0xff]
        %v1269 = vld [vmem:[%s1264 + $0x20] sm:$0xff]
        %v1270 = vld [vmem:[%s1264 + $0x28] sm:$0xff]
        %v1271 = vld [vmem:[%s1264 + $0x30] sm:$0xff]
        %v1272 = vld [vmem:[%s1264 + $0x38] sm:$0xff]
        %v1273 = vld [vmem:[%s1264 + $0x40] sm:$0xff]
        %v1274 = vld [vmem:[%s1264 + $0x48] sm:$0xff]
        %1276 = vset.pattern.permute.xlu0 0
        %1277 = vperm.xlu0 %1276, %v304
        %v1278 = vpop.permute.xlu0 %1277
        %1281 = vset.pattern.permute.xlu0 0
        %1282 = vperm.xlu0 %1281, 0.0
        %v1283 = vpop.permute.xlu0 %1282
        %v1285 = vlaneseq
        %v1286 = vand.u32 %v1285, 127
        %v1287 = vadd.s32 %v1286, 128
        %v1288 = vadd.s32 %v1286, 256
        %v1289 = vadd.s32 %v1286, 384
        %v1290 = vadd.s32 %v1286, 512
        %v1291 = vadd.s32 %v1286, 640
        %v1292 = vadd.s32 %v1286, 768
        %v1293 = vadd.s32 %v1286, 896
        %v1294 = vadd.s32 %v1286, 1024
        %v1295 = vadd.s32 %v1286, 1152
        %vm1296 = vcmp.eq.s32.totalorder %v1286, 1279
        %vm1297 = vcmp.eq.s32.totalorder %v1287, 1279
        %vm1298 = vcmp.eq.s32.totalorder %v1288, 1279
        %vm1299 = vcmp.eq.s32.totalorder %v1289, 1279
        %vm1300 = vcmp.eq.s32.totalorder %v1290, 1279
        %vm1301 = vcmp.eq.s32.totalorder %v1291, 1279
        %vm1302 = vcmp.eq.s32.totalorder %v1292, 1279
        %vm1303 = vcmp.eq.s32.totalorder %v1293, 1279
        %vm1304 = vcmp.eq.s32.totalorder %v1294, 1279
        %vm1305 = vcmp.eq.s32.totalorder %v1295, 1279
        %v1315 = vrot.slane %v304, 7
        %v1316 = vrot.slane %v305, 7
        %v1317 = vrot.slane %v306, 7
        %v1318 = vrot.slane %v307, 7
        %v1319 = vrot.slane %v308, 7
        %v1320 = vrot.slane %v309, 7
        %v1321 = vrot.slane %v310, 7
        %v1322 = vrot.slane %v311, 7
        %v1323 = vrot.slane %v312, 7
        %v1324 = vrot.slane %v313, 7
        %v1325 = vrot.slane 0.0, 7
        %1326 = vrot.lane.b32.xlu0 %v1315, 127
        %v1327 = vpop.permute.xlu0 %1326
        %1328 = vrot.lane.b32.xlu0 %v1316, 127
        %v1329 = vpop.permute.xlu0 %1328
        %1330 = vrot.lane.b32.xlu0 %v1317, 127
        %v1331 = vpop.permute.xlu0 %1330
        %1332 = vrot.lane.b32.xlu0 %v1318, 127
        %v1333 = vpop.permute.xlu0 %1332
        %1334 = vrot.lane.b32.xlu0 %v1319, 127
        %v1335 = vpop.permute.xlu0 %1334
        %1336 = vrot.lane.b32.xlu0 %v1320, 127
        %v1337 = vpop.permute.xlu0 %1336
        %1338 = vrot.lane.b32.xlu0 %v1321, 127
        %v1339 = vpop.permute.xlu0 %1338
        %1340 = vrot.lane.b32.xlu0 %v1322, 127
        %v1341 = vpop.permute.xlu0 %1340
        %1342 = vrot.lane.b32.xlu0 %v1323, 127
        %v1343 = vpop.permute.xlu0 %1342
        %1344 = vrot.lane.b32.xlu0 %v1324, 127
        %v1345 = vpop.permute.xlu0 %1344
        %1346 = vrot.lane.b32.xlu0 %v1325, 127
        %v1347 = vpop.permute.xlu0 %1346
        %vm1348 = vcmask 1039360
        %v1349 = vsel %vm1348, %v1327, %v1329
        %v1350 = vsel %vm1348, %v1329, %v1331
        %v1351 = vsel %vm1348, %v1331, %v1333
        %v1352 = vsel %vm1348, %v1333, %v1335
        %v1353 = vsel %vm1348, %v1335, %v1337
        %v1354 = vsel %vm1348, %v1337, %v1339
        %v1355 = vsel %vm1348, %v1339, %v1341
        %v1356 = vsel %vm1348, %v1341, %v1343
        %v1357 = vsel %vm1348, %v1343, %v1345
        %v1358 = vsel %vm1348, %v1345, %v1347
        %v1369 = vsel %vm1296, %v1278, %v1349
        %v1370 = vsel %vm1297, %v1278, %v1350
        %v1371 = vsel %vm1298, %v1278, %v1351
        %v1372 = vsel %vm1299, %v1278, %v1352
        %v1373 = vsel %vm1300, %v1278, %v1353
        %v1374 = vsel %vm1301, %v1278, %v1354
        %v1375 = vsel %vm1302, %v1278, %v1355
        %v1376 = vsel %vm1303, %v1278, %v1356
        %v1377 = vsel %vm1304, %v1278, %v1357
        %v1378 = vsel %vm1305, %v1278, %v1358
        %v1379 = vsel %vm1296, %v1283, %v1349
        %v1380 = vsel %vm1297, %v1283, %v1350
        %v1381 = vsel %vm1298, %v1283, %v1351
        %v1382 = vsel %vm1299, %v1283, %v1352
        %v1383 = vsel %vm1300, %v1283, %v1353
        %v1384 = vsel %vm1301, %v1283, %v1354
        %v1385 = vsel %vm1302, %v1283, %v1355
        %v1386 = vsel %vm1303, %v1283, %v1356
        %v1387 = vsel %vm1304, %v1283, %v1357
        %v1388 = vsel %vm1305, %v1283, %v1358
        %v1389 = vmul.f32 %v361, %v972
        %v1390 = vmul.f32 %v361, %v973
        %v1391 = vmul.f32 %v361, %v974
        %v1392 = vmul.f32 %v361, %v975
        %v1393 = vmul.f32 %v361, %v976
        %v1394 = vmul.f32 %v361, %v977
        %v1395 = vmul.f32 %v361, %v978
        %v1396 = vmul.f32 %v361, %v979
        %v1397 = vmul.f32 %v361, %v980
        %v1398 = vmul.f32 %v361, %v981
        %v1399 = vmul.f32 %v372, %v1243
        %v1400 = vmul.f32 %v372, %v1244
        %v1401 = vmul.f32 %v372, %v1245
        %v1402 = vmul.f32 %v372, %v1246
        %v1403 = vmul.f32 %v372, %v1247
        %v1404 = vmul.f32 %v372, %v1248
        %v1405 = vmul.f32 %v372, %v1249
        %v1406 = vmul.f32 %v372, %v1250
        %v1407 = vmul.f32 %v372, %v1251
        %v1408 = vmul.f32 %v372, %v1252
        %v1409 = vadd.f32 %v1389, %v1399
        %v1410 = vadd.f32 %v1390, %v1400
        %v1411 = vadd.f32 %v1391, %v1401
        %v1412 = vadd.f32 %v1392, %v1402
        %v1413 = vadd.f32 %v1393, %v1403
        %v1414 = vadd.f32 %v1394, %v1404
        %v1415 = vadd.f32 %v1395, %v1405
        %v1416 = vadd.f32 %v1396, %v1406
        %v1417 = vadd.f32 %v1397, %v1407
        %v1418 = vadd.f32 %v1398, %v1408
        %v1419 = vmul.f32 %v393, %v1254
        %v1420 = vmul.f32 %v393, %v1255
        %v1421 = vmul.f32 %v393, %v1256
        %v1422 = vmul.f32 %v393, %v1257
        %v1423 = vmul.f32 %v393, %v1258
        %v1424 = vmul.f32 %v393, %v1259
        %v1425 = vmul.f32 %v393, %v1260
        %v1426 = vmul.f32 %v393, %v1261
        %v1427 = vmul.f32 %v393, %v1262
        %v1428 = vmul.f32 %v393, %v1263
        %v1429 = vadd.f32 %v1409, %v1419
        %v1430 = vadd.f32 %v1410, %v1420
        %v1431 = vadd.f32 %v1411, %v1421
        %v1432 = vadd.f32 %v1412, %v1422
        %v1433 = vadd.f32 %v1413, %v1423
        %v1434 = vadd.f32 %v1414, %v1424
        %v1435 = vadd.f32 %v1415, %v1425
        %v1436 = vadd.f32 %v1416, %v1426
        %v1437 = vadd.f32 %v1417, %v1427
        %v1438 = vadd.f32 %v1418, %v1428
        %v1439 = vmul.f32 %v361, %v1254
        %v1440 = vmul.f32 %v361, %v1255
        %v1441 = vmul.f32 %v361, %v1256
        %v1442 = vmul.f32 %v361, %v1257
        %v1443 = vmul.f32 %v361, %v1258
        %v1444 = vmul.f32 %v361, %v1259
        %v1445 = vmul.f32 %v361, %v1260
        %v1446 = vmul.f32 %v361, %v1261
        %v1447 = vmul.f32 %v361, %v1262
        %v1448 = vmul.f32 %v361, %v1263
        %v1449 = vmul.f32 %v372, %v1265
        %v1450 = vmul.f32 %v372, %v1266
        %v1451 = vmul.f32 %v372, %v1267
        %v1452 = vmul.f32 %v372, %v1268
        %v1453 = vmul.f32 %v372, %v1269
        %v1454 = vmul.f32 %v372, %v1270
        %v1455 = vmul.f32 %v372, %v1271
        %v1456 = vmul.f32 %v372, %v1272
        %v1457 = vmul.f32 %v372, %v1273
        %v1458 = vmul.f32 %v372, %v1274
        %v1459 = vadd.f32 %v1439, %v1449
        %v1460 = vadd.f32 %v1440, %v1450
        %v1461 = vadd.f32 %v1441, %v1451
        %v1462 = vadd.f32 %v1442, %v1452
        %v1463 = vadd.f32 %v1443, %v1453
        %v1464 = vadd.f32 %v1444, %v1454
        %v1465 = vadd.f32 %v1445, %v1455
        %v1466 = vadd.f32 %v1446, %v1456
        %v1467 = vadd.f32 %v1447, %v1457
        %v1468 = vadd.f32 %v1448, %v1458
        %v1469 = vmul.f32 %v393, %v1369
        %v1470 = vmul.f32 %v393, %v1370
        %v1471 = vmul.f32 %v393, %v1371
        %v1472 = vmul.f32 %v393, %v1372
        %v1473 = vmul.f32 %v393, %v1373
        %v1474 = vmul.f32 %v393, %v1374
        %v1475 = vmul.f32 %v393, %v1375
        %v1476 = vmul.f32 %v393, %v1376
        %v1477 = vmul.f32 %v393, %v1377
        %v1478 = vmul.f32 %v393, %v1378
        %v1479 = vmul.f32 %v393, %v1379
        %v1480 = vmul.f32 %v393, %v1380
        %v1481 = vmul.f32 %v393, %v1381
        %v1482 = vmul.f32 %v393, %v1382
        %v1483 = vmul.f32 %v393, %v1383
        %v1484 = vmul.f32 %v393, %v1384
        %v1485 = vmul.f32 %v393, %v1385
        %v1486 = vmul.f32 %v393, %v1386
        %v1487 = vmul.f32 %v393, %v1387
        %v1488 = vmul.f32 %v393, %v1388
        %vm1509 = vcmask 1046528
        %v1510 = vrot.slane %v1469, 1
        %v1511 = vrot.slane %v1479, 1
        %v1512 = vsel %vm1509, %v1510, %v1511
        %v1513 = vrot.slane %v1470, 1
        %v1514 = vrot.slane %v1480, 1
        %v1515 = vsel %vm1509, %v1513, %v1514
        %v1516 = vrot.slane %v1471, 1
        %v1517 = vrot.slane %v1481, 1
        %v1518 = vsel %vm1509, %v1516, %v1517
        %v1519 = vrot.slane %v1472, 1
        %v1520 = vrot.slane %v1482, 1
        %v1521 = vsel %vm1509, %v1519, %v1520
        %v1522 = vrot.slane %v1473, 1
        %v1523 = vrot.slane %v1483, 1
        %v1524 = vsel %vm1509, %v1522, %v1523
        %v1525 = vrot.slane %v1474, 1
        %v1526 = vrot.slane %v1484, 1
        %v1527 = vsel %vm1509, %v1525, %v1526
        %v1528 = vrot.slane %v1475, 1
        %v1529 = vrot.slane %v1485, 1
        %v1530 = vsel %vm1509, %v1528, %v1529
        %v1531 = vrot.slane %v1476, 1
        %v1532 = vrot.slane %v1486, 1
        %v1533 = vsel %vm1509, %v1531, %v1532
        %v1534 = vrot.slane %v1477, 1
        %v1535 = vrot.slane %v1487, 1
        %v1536 = vsel %vm1509, %v1534, %v1535
        %v1537 = vrot.slane %v1478, 1
        %v1538 = vrot.slane %v1488, 1
        %v1539 = vsel %vm1509, %v1537, %v1538
        %v1550 = vadd.f32 %v1459, %v1512
        %v1551 = vadd.f32 %v1460, %v1515
        %v1552 = vadd.f32 %v1461, %v1518
        %v1553 = vadd.f32 %v1462, %v1521
        %v1554 = vadd.f32 %v1463, %v1524
        %v1555 = vadd.f32 %v1464, %v1527
        %v1556 = vadd.f32 %v1465, %v1530
        %v1557 = vadd.f32 %v1466, %v1533
        %v1558 = vadd.f32 %v1467, %v1536
        %v1559 = vadd.f32 %v1468, %v1539
        %v1560 = vmax.f32 %v1429, %v1550
        %v1561 = vmax.f32 %v1430, %v1551
        %v1562 = vmax.f32 %v1431, %v1552
        %v1563 = vmax.f32 %v1432, %v1553
        %v1564 = vmax.f32 %v1433, %v1554
        %v1565 = vmax.f32 %v1434, %v1555
        %v1566 = vmax.f32 %v1435, %v1556
        %v1567 = vmax.f32 %v1436, %v1557
        %v1568 = vmax.f32 %v1437, %v1558
        %v1569 = vmax.f32 %v1438, %v1559
        %v1570 = vadd.f32 %v1560, %v475
        %v1571 = vadd.f32 %v1561, %v475
        %v1572 = vadd.f32 %v1562, %v475
        %v1573 = vadd.f32 %v1563, %v475
        %v1574 = vadd.f32 %v1564, %v475
        %v1575 = vadd.f32 %v1565, %v475
        %v1576 = vadd.f32 %v1566, %v475
        %v1577 = vadd.f32 %v1567, %v475
        %v1578 = vadd.f32 %v1568, %v475
        %v1579 = vadd.f32 %v1569, %v475
        %v1580 = vmax.f32 %v1570, 0.0
        %v1581 = vmax.f32 %v1571, 0.0
        %v1582 = vmax.f32 %v1572, 0.0
        %v1583 = vmax.f32 %v1573, 0.0
        %v1584 = vmax.f32 %v1574, 0.0
        %v1585 = vmax.f32 %v1575, 0.0
        %v1586 = vmax.f32 %v1576, 0.0
        %v1587 = vmax.f32 %v1577, 0.0
        %v1588 = vmax.f32 %v1578, 0.0
        %v1589 = vmax.f32 %v1579, 0.0
        %v1590 = vmul.f32 %v499, %v972
        %v1591 = vmul.f32 %v499, %v973
        %v1592 = vmul.f32 %v499, %v974
        %v1593 = vmul.f32 %v499, %v975
        %v1594 = vmul.f32 %v499, %v976
        %v1595 = vmul.f32 %v499, %v977
        %v1596 = vmul.f32 %v499, %v978
        %v1597 = vmul.f32 %v499, %v979
        %v1598 = vmul.f32 %v499, %v980
        %v1599 = vmul.f32 %v499, %v981
        %v1600 = vmul.f32 %v510, %v1243
        %v1601 = vmul.f32 %v510, %v1244
        %v1602 = vmul.f32 %v510, %v1245
        %v1603 = vmul.f32 %v510, %v1246
        %v1604 = vmul.f32 %v510, %v1247
        %v1605 = vmul.f32 %v510, %v1248
        %v1606 = vmul.f32 %v510, %v1249
        %v1607 = vmul.f32 %v510, %v1250
        %v1608 = vmul.f32 %v510, %v1251
        %v1609 = vmul.f32 %v510, %v1252
        %v1610 = vadd.f32 %v1590, %v1600
        %v1611 = vadd.f32 %v1591, %v1601
        %v1612 = vadd.f32 %v1592, %v1602
        %v1613 = vadd.f32 %v1593, %v1603
        %v1614 = vadd.f32 %v1594, %v1604
        %v1615 = vadd.f32 %v1595, %v1605
        %v1616 = vadd.f32 %v1596, %v1606
        %v1617 = vadd.f32 %v1597, %v1607
        %v1618 = vadd.f32 %v1598, %v1608
        %v1619 = vadd.f32 %v1599, %v1609
        %v1620 = vmul.f32 %v531, %v1254
        %v1621 = vmul.f32 %v531, %v1255
        %v1622 = vmul.f32 %v531, %v1256
        %v1623 = vmul.f32 %v531, %v1257
        %v1624 = vmul.f32 %v531, %v1258
        %v1625 = vmul.f32 %v531, %v1259
        %v1626 = vmul.f32 %v531, %v1260
        %v1627 = vmul.f32 %v531, %v1261
        %v1628 = vmul.f32 %v531, %v1262
        %v1629 = vmul.f32 %v531, %v1263
        %v1630 = vadd.f32 %v1610, %v1620
        %v1631 = vadd.f32 %v1611, %v1621
        %v1632 = vadd.f32 %v1612, %v1622
        %v1633 = vadd.f32 %v1613, %v1623
        %v1634 = vadd.f32 %v1614, %v1624
        %v1635 = vadd.f32 %v1615, %v1625
        %v1636 = vadd.f32 %v1616, %v1626
        %v1637 = vadd.f32 %v1617, %v1627
        %v1638 = vadd.f32 %v1618, %v1628
        %v1639 = vadd.f32 %v1619, %v1629
        %v1640 = vmul.f32 %v499, %v1254
        %v1641 = vmul.f32 %v499, %v1255
        %v1642 = vmul.f32 %v499, %v1256
        %v1643 = vmul.f32 %v499, %v1257
        %v1644 = vmul.f32 %v499, %v1258
        %v1645 = vmul.f32 %v499, %v1259
        %v1646 = vmul.f32 %v499, %v1260
        %v1647 = vmul.f32 %v499, %v1261
        %v1648 = vmul.f32 %v499, %v1262
        %v1649 = vmul.f32 %v499, %v1263
        %v1650 = vmul.f32 %v510, %v1265
        %v1651 = vmul.f32 %v510, %v1266
        %v1652 = vmul.f32 %v510, %v1267
        %v1653 = vmul.f32 %v510, %v1268
        %v1654 = vmul.f32 %v510, %v1269
        %v1655 = vmul.f32 %v510, %v1270
        %v1656 = vmul.f32 %v510, %v1271
        %v1657 = vmul.f32 %v510, %v1272
        %v1658 = vmul.f32 %v510, %v1273
        %v1659 = vmul.f32 %v510, %v1274
        %v1660 = vadd.f32 %v1640, %v1650
        %v1661 = vadd.f32 %v1641, %v1651
        %v1662 = vadd.f32 %v1642, %v1652
        %v1663 = vadd.f32 %v1643, %v1653
        %v1664 = vadd.f32 %v1644, %v1654
        %v1665 = vadd.f32 %v1645, %v1655
        %v1666 = vadd.f32 %v1646, %v1656
        %v1667 = vadd.f32 %v1647, %v1657
        %v1668 = vadd.f32 %v1648, %v1658
        %v1669 = vadd.f32 %v1649, %v1659
        %v1670 = vmul.f32 %v531, %v1369
        %v1671 = vmul.f32 %v531, %v1370
        %v1672 = vmul.f32 %v531, %v1371
        %v1673 = vmul.f32 %v531, %v1372
        %v1674 = vmul.f32 %v531, %v1373
        %v1675 = vmul.f32 %v531, %v1374
        %v1676 = vmul.f32 %v531, %v1375
        %v1677 = vmul.f32 %v531, %v1376
        %v1678 = vmul.f32 %v531, %v1377
        %v1679 = vmul.f32 %v531, %v1378
        %v1680 = vmul.f32 %v531, %v1379
        %v1681 = vmul.f32 %v531, %v1380
        %v1682 = vmul.f32 %v531, %v1381
        %v1683 = vmul.f32 %v531, %v1382
        %v1684 = vmul.f32 %v531, %v1383
        %v1685 = vmul.f32 %v531, %v1384
        %v1686 = vmul.f32 %v531, %v1385
        %v1687 = vmul.f32 %v531, %v1386
        %v1688 = vmul.f32 %v531, %v1387
        %v1689 = vmul.f32 %v531, %v1388
        %v1710 = vrot.slane %v1670, 1
        %v1711 = vrot.slane %v1680, 1
        %v1712 = vsel %vm1509, %v1710, %v1711
        %v1713 = vrot.slane %v1671, 1
        %v1714 = vrot.slane %v1681, 1
        %v1715 = vsel %vm1509, %v1713, %v1714
        %v1716 = vrot.slane %v1672, 1
        %v1717 = vrot.slane %v1682, 1
        %v1718 = vsel %vm1509, %v1716, %v1717
        %v1719 = vrot.slane %v1673, 1
        %v1720 = vrot.slane %v1683, 1
        %v1721 = vsel %vm1509, %v1719, %v1720
        %v1722 = vrot.slane %v1674, 1
        %v1723 = vrot.slane %v1684, 1
        %v1724 = vsel %vm1509, %v1722, %v1723
        %v1725 = vrot.slane %v1675, 1
        %v1726 = vrot.slane %v1685, 1
        %v1727 = vsel %vm1509, %v1725, %v1726
        %v1728 = vrot.slane %v1676, 1
        %v1729 = vrot.slane %v1686, 1
        %v1730 = vsel %vm1509, %v1728, %v1729
        %v1731 = vrot.slane %v1677, 1
        %v1732 = vrot.slane %v1687, 1
        %v1733 = vsel %vm1509, %v1731, %v1732
        %v1734 = vrot.slane %v1678, 1
        %v1735 = vrot.slane %v1688, 1
        %v1736 = vsel %vm1509, %v1734, %v1735
        %v1737 = vrot.slane %v1679, 1
        %v1738 = vrot.slane %v1689, 1
        %v1739 = vsel %vm1509, %v1737, %v1738
        %v1750 = vadd.f32 %v1660, %v1712
        %v1751 = vadd.f32 %v1661, %v1715
        %v1752 = vadd.f32 %v1662, %v1718
        %v1753 = vadd.f32 %v1663, %v1721
        %v1754 = vadd.f32 %v1664, %v1724
        %v1755 = vadd.f32 %v1665, %v1727
        %v1756 = vadd.f32 %v1666, %v1730
        %v1757 = vadd.f32 %v1667, %v1733
        %v1758 = vadd.f32 %v1668, %v1736
        %v1759 = vadd.f32 %v1669, %v1739
        %v1760 = vmax.f32 %v1630, %v1750
        %v1761 = vmax.f32 %v1631, %v1751
        %v1762 = vmax.f32 %v1632, %v1752
        %v1763 = vmax.f32 %v1633, %v1753
        %v1764 = vmax.f32 %v1634, %v1754
        %v1765 = vmax.f32 %v1635, %v1755
        %v1766 = vmax.f32 %v1636, %v1756
        %v1767 = vmax.f32 %v1637, %v1757
        %v1768 = vmax.f32 %v1638, %v1758
        %v1769 = vmax.f32 %v1639, %v1759
        %v1770 = vadd.f32 %v1760, %v613
        %v1771 = vadd.f32 %v1761, %v613
        %v1772 = vadd.f32 %v1762, %v613
        %v1773 = vadd.f32 %v1763, %v613
        %v1774 = vadd.f32 %v1764, %v613
        %v1775 = vadd.f32 %v1765, %v613
        %v1776 = vadd.f32 %v1766, %v613
        %v1777 = vadd.f32 %v1767, %v613
        %v1778 = vadd.f32 %v1768, %v613
        %v1779 = vadd.f32 %v1769, %v613
        %v1780 = vmax.f32 %v1770, 0.0
        %v1781 = vmax.f32 %v1771, 0.0
        %v1782 = vmax.f32 %v1772, 0.0
        %v1783 = vmax.f32 %v1773, 0.0
        %v1784 = vmax.f32 %v1774, 0.0
        %v1785 = vmax.f32 %v1775, 0.0
        %v1786 = vmax.f32 %v1776, 0.0
        %v1787 = vmax.f32 %v1777, 0.0
        %v1788 = vmax.f32 %v1778, 0.0
        %v1789 = vmax.f32 %v1779, 0.0
        %1791 = vset.pattern.permute.xlu0 0
        %1792 = vperm.xlu0 %1791, %v486
        %v1793 = vpop.permute.xlu0 %1792
        %v1804 = vrot.slane %v486, 7
        %v1805 = vrot.slane %v487, 7
        %v1806 = vrot.slane %v488, 7
        %v1807 = vrot.slane %v489, 7
        %v1808 = vrot.slane %v490, 7
        %v1809 = vrot.slane %v491, 7
        %v1810 = vrot.slane %v492, 7
        %v1811 = vrot.slane %v493, 7
        %v1812 = vrot.slane %v494, 7
        %v1813 = vrot.slane %v495, 7
        %1814 = vrot.lane.b32.xlu0 %v1804, 127
        %v1815 = vpop.permute.xlu0 %1814
        %1816 = vrot.lane.b32.xlu0 %v1805, 127
        %v1817 = vpop.permute.xlu0 %1816
        %1818 = vrot.lane.b32.xlu0 %v1806, 127
        %v1819 = vpop.permute.xlu0 %1818
        %1820 = vrot.lane.b32.xlu0 %v1807, 127
        %v1821 = vpop.permute.xlu0 %1820
        %1822 = vrot.lane.b32.xlu0 %v1808, 127
        %v1823 = vpop.permute.xlu0 %1822
        %1824 = vrot.lane.b32.xlu0 %v1809, 127
        %v1825 = vpop.permute.xlu0 %1824
        %1826 = vrot.lane.b32.xlu0 %v1810, 127
        %v1827 = vpop.permute.xlu0 %1826
        %1828 = vrot.lane.b32.xlu0 %v1811, 127
        %v1829 = vpop.permute.xlu0 %1828
        %1830 = vrot.lane.b32.xlu0 %v1812, 127
        %v1831 = vpop.permute.xlu0 %1830
        %1832 = vrot.lane.b32.xlu0 %v1813, 127
        %v1833 = vpop.permute.xlu0 %1832
        %v1834 = vsel %vm1348, %v1815, %v1817
        %v1835 = vsel %vm1348, %v1817, %v1819
        %v1836 = vsel %vm1348, %v1819, %v1821
        %v1837 = vsel %vm1348, %v1821, %v1823
        %v1838 = vsel %vm1348, %v1823, %v1825
        %v1839 = vsel %vm1348, %v1825, %v1827
        %v1840 = vsel %vm1348, %v1827, %v1829
        %v1841 = vsel %vm1348, %v1829, %v1831
        %v1842 = vsel %vm1348, %v1831, %v1833
        %v1843 = vsel %vm1348, %v1833, %v1347
        %v1854 = vsel %vm1296, %v1793, %v1834
        %v1855 = vsel %vm1297, %v1793, %v1835
        %v1856 = vsel %vm1298, %v1793, %v1836
        %v1857 = vsel %vm1299, %v1793, %v1837
        %v1858 = vsel %vm1300, %v1793, %v1838
        %v1859 = vsel %vm1301, %v1793, %v1839
        %v1860 = vsel %vm1302, %v1793, %v1840
        %v1861 = vsel %vm1303, %v1793, %v1841
        %v1862 = vsel %vm1304, %v1793, %v1842
        %v1863 = vsel %vm1305, %v1793, %v1843
        %v1864 = vsel %vm1296, %v1283, %v1834
        %v1865 = vsel %vm1297, %v1283, %v1835
        %v1866 = vsel %vm1298, %v1283, %v1836
        %v1867 = vsel %vm1299, %v1283, %v1837
        %v1868 = vsel %vm1300, %v1283, %v1838
        %v1869 = vsel %vm1301, %v1283, %v1839
        %v1870 = vsel %vm1302, %v1283, %v1840
        %v1871 = vsel %vm1303, %v1283, %v1841
        %v1872 = vsel %vm1304, %v1283, %v1842
        %v1873 = vsel %vm1305, %v1283, %v1843
        %1875 = vset.pattern.permute.xlu0 0
        %1876 = vperm.xlu0 %1875, %v624
        %v1877 = vpop.permute.xlu0 %1876
        %v1888 = vrot.slane %v624, 7
        %v1889 = vrot.slane %v625, 7
        %v1890 = vrot.slane %v626, 7
        %v1891 = vrot.slane %v627, 7
        %v1892 = vrot.slane %v628, 7
        %v1893 = vrot.slane %v629, 7
        %v1894 = vrot.slane %v630, 7
        %v1895 = vrot.slane %v631, 7
        %v1896 = vrot.slane %v632, 7
        %v1897 = vrot.slane %v633, 7
        %1898 = vrot.lane.b32.xlu0 %v1888, 127
        %v1899 = vpop.permute.xlu0 %1898
        %1900 = vrot.lane.b32.xlu0 %v1889, 127
        %v1901 = vpop.permute.xlu0 %1900
        %1902 = vrot.lane.b32.xlu0 %v1890, 127
        %v1903 = vpop.permute.xlu0 %1902
        %1904 = vrot.lane.b32.xlu0 %v1891, 127
        %v1905 = vpop.permute.xlu0 %1904
        %1906 = vrot.lane.b32.xlu0 %v1892, 127
        %v1907 = vpop.permute.xlu0 %1906
        %1908 = vrot.lane.b32.xlu0 %v1893, 127
        %v1909 = vpop.permute.xlu0 %1908
        %1910 = vrot.lane.b32.xlu0 %v1894, 127
        %v1911 = vpop.permute.xlu0 %1910
        %1912 = vrot.lane.b32.xlu0 %v1895, 127
        %v1913 = vpop.permute.xlu0 %1912
        %1914 = vrot.lane.b32.xlu0 %v1896, 127
        %v1915 = vpop.permute.xlu0 %1914
        %1916 = vrot.lane.b32.xlu0 %v1897, 127
        %v1917 = vpop.permute.xlu0 %1916
        %v1918 = vsel %vm1348, %v1899, %v1901
        %v1919 = vsel %vm1348, %v1901, %v1903
        %v1920 = vsel %vm1348, %v1903, %v1905
        %v1921 = vsel %vm1348, %v1905, %v1907
        %v1922 = vsel %vm1348, %v1907, %v1909
        %v1923 = vsel %vm1348, %v1909, %v1911
        %v1924 = vsel %vm1348, %v1911, %v1913
        %v1925 = vsel %vm1348, %v1913, %v1915
        %v1926 = vsel %vm1348, %v1915, %v1917
        %v1927 = vsel %vm1348, %v1917, %v1347
        %v1938 = vsel %vm1296, %v1877, %v1918
        %v1939 = vsel %vm1297, %v1877, %v1919
        %v1940 = vsel %vm1298, %v1877, %v1920
        %v1941 = vsel %vm1299, %v1877, %v1921
        %v1942 = vsel %vm1300, %v1877, %v1922
        %v1943 = vsel %vm1301, %v1877, %v1923
        %v1944 = vsel %vm1302, %v1877, %v1924
        %v1945 = vsel %vm1303, %v1877, %v1925
        %v1946 = vsel %vm1304, %v1877, %v1926
        %v1947 = vsel %vm1305, %v1877, %v1927
        %v1948 = vsel %vm1296, %v1283, %v1918
        %v1949 = vsel %vm1297, %v1283, %v1919
        %v1950 = vsel %vm1298, %v1283, %v1920
        %v1951 = vsel %vm1299, %v1283, %v1921
        %v1952 = vsel %vm1300, %v1283, %v1922
        %v1953 = vsel %vm1301, %v1283, %v1923
        %v1954 = vsel %vm1302, %v1283, %v1924
        %v1955 = vsel %vm1303, %v1283, %v1925
        %v1956 = vsel %vm1304, %v1283, %v1926
        %v1957 = vsel %vm1305, %v1283, %v1927
        %s1958 = sld [smem:[#allocation6]]
        %v1959 = vstv %s1958
        %v1960 = vmul.f32 %v1959, %v486
        %v1961 = vmul.f32 %v1959, %v487
        %v1962 = vmul.f32 %v1959, %v488
        %v1963 = vmul.f32 %v1959, %v489
        %v1964 = vmul.f32 %v1959, %v490
        %v1965 = vmul.f32 %v1959, %v491
        %v1966 = vmul.f32 %v1959, %v492
        %v1967 = vmul.f32 %v1959, %v493
        %v1968 = vmul.f32 %v1959, %v494
        %v1969 = vmul.f32 %v1959, %v495
        %v1970 = vmul.f32 %v1959, %v1102
        %v1971 = vmul.f32 %v1959, %v1103
        %v1972 = vmul.f32 %v1959, %v1104
        %v1973 = vmul.f32 %v1959, %v1105
        %v1974 = vmul.f32 %v1959, %v1106
        %v1975 = vmul.f32 %v1959, %v1107
        %v1976 = vmul.f32 %v1959, %v1108
        %v1977 = vmul.f32 %v1959, %v1109
        %v1978 = vmul.f32 %v1959, %v1110
        %v1979 = vmul.f32 %v1959, %v1111
        %s1980 = sld [smem:[#allocation6 + $0x1]]
        %v1981 = vstv %s1980
        %v1982 = vmul.f32 %v1981, %v798
        %v1983 = vmul.f32 %v1981, %v799
        %v1984 = vmul.f32 %v1981, %v800
        %v1985 = vmul.f32 %v1981, %v801
        %v1986 = vmul.f32 %v1981, %v802
        %v1987 = vmul.f32 %v1981, %v803
        %v1988 = vmul.f32 %v1981, %v804
        %v1989 = vmul.f32 %v1981, %v805
        %v1990 = vmul.f32 %v1981, %v806
        %v1991 = vmul.f32 %v1981, %v807
        %v1992 = vmul.f32 %v1981, %v1580
        %v1993 = vmul.f32 %v1981, %v1581
        %v1994 = vmul.f32 %v1981, %v1582
        %v1995 = vmul.f32 %v1981, %v1583
        %v1996 = vmul.f32 %v1981, %v1584
        %v1997 = vmul.f32 %v1981, %v1585
        %v1998 = vmul.f32 %v1981, %v1586
        %v1999 = vmul.f32 %v1981, %v1587
        %v2000 = vmul.f32 %v1981, %v1588
        %v2001 = vmul.f32 %v1981, %v1589
        %v2002 = vadd.f32 %v1960, %v1982
        %v2003 = vadd.f32 %v1961, %v1983
        %v2004 = vadd.f32 %v1962, %v1984
        %v2005 = vadd.f32 %v1963, %v1985
        %v2006 = vadd.f32 %v1964, %v1986
        %v2007 = vadd.f32 %v1965, %v1987
        %v2008 = vadd.f32 %v1966, %v1988
        %v2009 = vadd.f32 %v1967, %v1989
        %v2010 = vadd.f32 %v1968, %v1990
        %v2011 = vadd.f32 %v1969, %v1991
        %v2012 = vadd.f32 %v1970, %v1992
        %v2013 = vadd.f32 %v1971, %v1993
        %v2014 = vadd.f32 %v1972, %v1994
        %v2015 = vadd.f32 %v1973, %v1995
        %v2016 = vadd.f32 %v1974, %v1996
        %v2017 = vadd.f32 %v1975, %v1997
        %v2018 = vadd.f32 %v1976, %v1998
        %v2019 = vadd.f32 %v1977, %v1999
        %v2020 = vadd.f32 %v1978, %v2000
        %v2021 = vadd.f32 %v1979, %v2001
        %s2022 = sld [smem:[#allocation6 + $0x2]]
        %v2023 = vstv %s2022
        %v2024 = vmul.f32 %v2023, %v1102
        %v2025 = vmul.f32 %v2023, %v1103
        %v2026 = vmul.f32 %v2023, %v1104
        %v2027 = vmul.f32 %v2023, %v1105
        %v2028 = vmul.f32 %v2023, %v1106
        %v2029 = vmul.f32 %v2023, %v1107
        %v2030 = vmul.f32 %v2023, %v1108
        %v2031 = vmul.f32 %v2023, %v1109
        %v2032 = vmul.f32 %v2023, %v1110
        %v2033 = vmul.f32 %v2023, %v1111
        %v2034 = vmul.f32 %v2023, %v1854
        %v2035 = vmul.f32 %v2023, %v1855
        %v2036 = vmul.f32 %v2023, %v1856
        %v2037 = vmul.f32 %v2023, %v1857
        %v2038 = vmul.f32 %v2023, %v1858
        %v2039 = vmul.f32 %v2023, %v1859
        %v2040 = vmul.f32 %v2023, %v1860
        %v2041 = vmul.f32 %v2023, %v1861
        %v2042 = vmul.f32 %v2023, %v1862
        %v2043 = vmul.f32 %v2023, %v1863
        %v2044 = vmul.f32 %v2023, %v1864
        %v2045 = vmul.f32 %v2023, %v1865
        %v2046 = vmul.f32 %v2023, %v1866
        %v2047 = vmul.f32 %v2023, %v1867
        %v2048 = vmul.f32 %v2023, %v1868
        %v2049 = vmul.f32 %v2023, %v1869
        %v2050 = vmul.f32 %v2023, %v1870
        %v2051 = vmul.f32 %v2023, %v1871
        %v2052 = vmul.f32 %v2023, %v1872
        %v2053 = vmul.f32 %v2023, %v1873
        %v2054 = vadd.f32 %v2002, %v2024
        %v2055 = vadd.f32 %v2003, %v2025
        %v2056 = vadd.f32 %v2004, %v2026
        %v2057 = vadd.f32 %v2005, %v2027
        %v2058 = vadd.f32 %v2006, %v2028
        %v2059 = vadd.f32 %v2007, %v2029
        %v2060 = vadd.f32 %v2008, %v2030
        %v2061 = vadd.f32 %v2009, %v2031
        %v2062 = vadd.f32 %v2010, %v2032
        %v2063 = vadd.f32 %v2011, %v2033
        %v2084 = vrot.slane %v2034, 1
        %v2085 = vrot.slane %v2044, 1
        %v2086 = vsel %vm1509, %v2084, %v2085
        %v2087 = vrot.slane %v2035, 1
        %v2088 = vrot.slane %v2045, 1
        %v2089 = vsel %vm1509, %v2087, %v2088
        %v2090 = vrot.slane %v2036, 1
        %v2091 = vrot.slane %v2046, 1
        %v2092 = vsel %vm1509, %v2090, %v2091
        %v2093 = vrot.slane %v2037, 1
        %v2094 = vrot.slane %v2047, 1
        %v2095 = vsel %vm1509, %v2093, %v2094
        %v2096 = vrot.slane %v2038, 1
        %v2097 = vrot.slane %v2048, 1
        %v2098 = vsel %vm1509, %v2096, %v2097
        %v2099 = vrot.slane %v2039, 1
        %v2100 = vrot.slane %v2049, 1
        %v2101 = vsel %vm1509, %v2099, %v2100
        %v2102 = vrot.slane %v2040, 1
        %v2103 = vrot.slane %v2050, 1
        %v2104 = vsel %vm1509, %v2102, %v2103
        %v2105 = vrot.slane %v2041, 1
        %v2106 = vrot.slane %v2051, 1
        %v2107 = vsel %vm1509, %v2105, %v2106
        %v2108 = vrot.slane %v2042, 1
        %v2109 = vrot.slane %v2052, 1
        %v2110 = vsel %vm1509, %v2108, %v2109
        %v2111 = vrot.slane %v2043, 1
        %v2112 = vrot.slane %v2053, 1
        %v2113 = vsel %vm1509, %v2111, %v2112
        %v2124 = vadd.f32 %v2012, %v2086
        %v2125 = vadd.f32 %v2013, %v2089
        %v2126 = vadd.f32 %v2014, %v2092
        %v2127 = vadd.f32 %v2015, %v2095
        %v2128 = vadd.f32 %v2016, %v2098
        %v2129 = vadd.f32 %v2017, %v2101
        %v2130 = vadd.f32 %v2018, %v2104
        %v2131 = vadd.f32 %v2019, %v2107
        %v2132 = vadd.f32 %v2020, %v2110
        %v2133 = vadd.f32 %v2021, %v2113
        %s2134 = sld [smem:[#allocation6 + $0x3]]
        %v2135 = vstv %s2134
        %v2136 = vmul.f32 %v2135, %v624
        %v2137 = vmul.f32 %v2135, %v625
        %v2138 = vmul.f32 %v2135, %v626
        %v2139 = vmul.f32 %v2135, %v627
        %v2140 = vmul.f32 %v2135, %v628
        %v2141 = vmul.f32 %v2135, %v629
        %v2142 = vmul.f32 %v2135, %v630
        %v2143 = vmul.f32 %v2135, %v631
        %v2144 = vmul.f32 %v2135, %v632
        %v2145 = vmul.f32 %v2135, %v633
        %v2146 = vmul.f32 %v2135, %v1232
        %v2147 = vmul.f32 %v2135, %v1233
        %v2148 = vmul.f32 %v2135, %v1234
        %v2149 = vmul.f32 %v2135, %v1235
        %v2150 = vmul.f32 %v2135, %v1236
        %v2151 = vmul.f32 %v2135, %v1237
        %v2152 = vmul.f32 %v2135, %v1238
        %v2153 = vmul.f32 %v2135, %v1239
        %v2154 = vmul.f32 %v2135, %v1240
        %v2155 = vmul.f32 %v2135, %v1241
        %v2156 = vadd.f32 %v2054, %v2136
        %v2157 = vadd.f32 %v2055, %v2137
        %v2158 = vadd.f32 %v2056, %v2138
        %v2159 = vadd.f32 %v2057, %v2139
        %v2160 = vadd.f32 %v2058, %v2140
        %v2161 = vadd.f32 %v2059, %v2141
        %v2162 = vadd.f32 %v2060, %v2142
        %v2163 = vadd.f32 %v2061, %v2143
        %v2164 = vadd.f32 %v2062, %v2144
        %v2165 = vadd.f32 %v2063, %v2145
        %v2166 = vadd.f32 %v2124, %v2146
        %v2167 = vadd.f32 %v2125, %v2147
        %v2168 = vadd.f32 %v2126, %v2148
        %v2169 = vadd.f32 %v2127, %v2149
        %v2170 = vadd.f32 %v2128, %v2150
        %v2171 = vadd.f32 %v2129, %v2151
        %v2172 = vadd.f32 %v2130, %v2152
        %v2173 = vadd.f32 %v2131, %v2153
        %v2174 = vadd.f32 %v2132, %v2154
        %v2175 = vadd.f32 %v2133, %v2155
        %s2176 = sld [smem:[#allocation6 + $0x4]]
        %v2177 = vstv %s2176
        %v2178 = vmul.f32 %v2177, %v928
        %v2179 = vmul.f32 %v2177, %v929
        %v2180 = vmul.f32 %v2177, %v930
        %v2181 = vmul.f32 %v2177, %v931
        %v2182 = vmul.f32 %v2177, %v932
        %v2183 = vmul.f32 %v2177, %v933
        %v2184 = vmul.f32 %v2177, %v934
        %v2185 = vmul.f32 %v2177, %v935
        %v2186 = vmul.f32 %v2177, %v936
        %v2187 = vmul.f32 %v2177, %v937
        %v2188 = vmul.f32 %v2177, %v1780
        %v2189 = vmul.f32 %v2177, %v1781
        %v2190 = vmul.f32 %v2177, %v1782
        %v2191 = vmul.f32 %v2177, %v1783
        %v2192 = vmul.f32 %v2177, %v1784
        %v2193 = vmul.f32 %v2177, %v1785
        %v2194 = vmul.f32 %v2177, %v1786
        %v2195 = vmul.f32 %v2177, %v1787
        %v2196 = vmul.f32 %v2177, %v1788
        %v2197 = vmul.f32 %v2177, %v1789
        %v2198 = vadd.f32 %v2156, %v2178
        %v2199 = vadd.f32 %v2157, %v2179
        %v2200 = vadd.f32 %v2158, %v2180
        %v2201 = vadd.f32 %v2159, %v2181
        %v2202 = vadd.f32 %v2160, %v2182
        %v2203 = vadd.f32 %v2161, %v2183
        %v2204 = vadd.f32 %v2162, %v2184
        %v2205 = vadd.f32 %v2163, %v2185
        %v2206 = vadd.f32 %v2164, %v2186
        %v2207 = vadd.f32 %v2165, %v2187
        %v2208 = vadd.f32 %v2166, %v2188
        %v2209 = vadd.f32 %v2167, %v2189
        %v2210 = vadd.f32 %v2168, %v2190
        %v2211 = vadd.f32 %v2169, %v2191
        %v2212 = vadd.f32 %v2170, %v2192
        %v2213 = vadd.f32 %v2171, %v2193
        %v2214 = vadd.f32 %v2172, %v2194
        %v2215 = vadd.f32 %v2173, %v2195
        %v2216 = vadd.f32 %v2174, %v2196
        %v2217 = vadd.f32 %v2175, %v2197
        %s2218 = sld [smem:[#allocation6 + $0x5]]
        %v2219 = vstv %s2218
        %v2220 = vmul.f32 %v2219, %v1232
        %v2221 = vmul.f32 %v2219, %v1233
        %v2222 = vmul.f32 %v2219, %v1234
        %v2223 = vmul.f32 %v2219, %v1235
        %v2224 = vmul.f32 %v2219, %v1236
        %v2225 = vmul.f32 %v2219, %v1237
        %v2226 = vmul.f32 %v2219, %v1238
        %v2227 = vmul.f32 %v2219, %v1239
        %v2228 = vmul.f32 %v2219, %v1240
        %v2229 = vmul.f32 %v2219, %v1241
        %v2230 = vmul.f32 %v2219, %v1938
        %v2231 = vmul.f32 %v2219, %v1939
        %v2232 = vmul.f32 %v2219, %v1940
        %v2233 = vmul.f32 %v2219, %v1941
        %v2234 = vmul.f32 %v2219, %v1942
        %v2235 = vmul.f32 %v2219, %v1943
        %v2236 = vmul.f32 %v2219, %v1944
        %v2237 = vmul.f32 %v2219, %v1945
        %v2238 = vmul.f32 %v2219, %v1946
        %v2239 = vmul.f32 %v2219, %v1947
        %v2240 = vmul.f32 %v2219, %v1948
        %v2241 = vmul.f32 %v2219, %v1949
        %v2242 = vmul.f32 %v2219, %v1950
        %v2243 = vmul.f32 %v2219, %v1951
        %v2244 = vmul.f32 %v2219, %v1952
        %v2245 = vmul.f32 %v2219, %v1953
        %v2246 = vmul.f32 %v2219, %v1954
        %v2247 = vmul.f32 %v2219, %v1955
        %v2248 = vmul.f32 %v2219, %v1956
        %v2249 = vmul.f32 %v2219, %v1957
        %v2250 = vadd.f32 %v2198, %v2220
        %v2251 = vadd.f32 %v2199, %v2221
        %v2252 = vadd.f32 %v2200, %v2222
        %v2253 = vadd.f32 %v2201, %v2223
        %v2254 = vadd.f32 %v2202, %v2224
        %v2255 = vadd.f32 %v2203, %v2225
        %v2256 = vadd.f32 %v2204, %v2226
        %v2257 = vadd.f32 %v2205, %v2227
        %v2258 = vadd.f32 %v2206, %v2228
        %v2259 = vadd.f32 %v2207, %v2229
        %v2280 = vrot.slane %v2230, 1
        %v2281 = vrot.slane %v2240, 1
        %v2282 = vsel %vm1509, %v2280, %v2281
        %v2283 = vrot.slane %v2231, 1
        %v2284 = vrot.slane %v2241, 1
        %v2285 = vsel %vm1509, %v2283, %v2284
        %v2286 = vrot.slane %v2232, 1
        %v2287 = vrot.slane %v2242, 1
        %v2288 = vsel %vm1509, %v2286, %v2287
        %v2289 = vrot.slane %v2233, 1
        %v2290 = vrot.slane %v2243, 1
        %v2291 = vsel %vm1509, %v2289, %v2290
        %v2292 = vrot.slane %v2234, 1
        %v2293 = vrot.slane %v2244, 1
        %v2294 = vsel %vm1509, %v2292, %v2293
        %v2295 = vrot.slane %v2235, 1
        %v2296 = vrot.slane %v2245, 1
        %v2297 = vsel %vm1509, %v2295, %v2296
        %v2298 = vrot.slane %v2236, 1
        %v2299 = vrot.slane %v2246, 1
        %v2300 = vsel %vm1509, %v2298, %v2299
        %v2301 = vrot.slane %v2237, 1
        %v2302 = vrot.slane %v2247, 1
        %v2303 = vsel %vm1509, %v2301, %v2302
        %v2304 = vrot.slane %v2238, 1
        %v2305 = vrot.slane %v2248, 1
        %v2306 = vsel %vm1509, %v2304, %v2305
        %v2307 = vrot.slane %v2239, 1
        %v2308 = vrot.slane %v2249, 1
        %v2309 = vsel %vm1509, %v2307, %v2308
        %v2320 = vadd.f32 %v2208, %v2282
        %v2321 = vadd.f32 %v2209, %v2285
        %v2322 = vadd.f32 %v2210, %v2288
        %v2323 = vadd.f32 %v2211, %v2291
        %v2324 = vadd.f32 %v2212, %v2294
        %v2325 = vadd.f32 %v2213, %v2297
        %v2326 = vadd.f32 %v2214, %v2300
        %v2327 = vadd.f32 %v2215, %v2303
        %v2328 = vadd.f32 %v2216, %v2306
        %v2329 = vadd.f32 %v2217, %v2309
        %v2330 = vmax.f32 %v2250, %v2320
        %v2331 = vmax.f32 %v2251, %v2321
        %v2332 = vmax.f32 %v2252, %v2322
        %v2333 = vmax.f32 %v2253, %v2323
        %v2334 = vmax.f32 %v2254, %v2324
        %v2335 = vmax.f32 %v2255, %v2325
        %v2336 = vmax.f32 %v2256, %v2326
        %v2337 = vmax.f32 %v2257, %v2327
        %v2338 = vmax.f32 %v2258, %v2328
        %v2339 = vmax.f32 %v2259, %v2329
        %s2340 = sld [smem:[#allocation7]]
        %v2341 = vstv %s2340
        %v2342 = vadd.f32 %v2330, %v2341
        %v2343 = vadd.f32 %v2331, %v2341
        %v2344 = vadd.f32 %v2332, %v2341
        %v2345 = vadd.f32 %v2333, %v2341
        %v2346 = vadd.f32 %v2334, %v2341
        %v2347 = vadd.f32 %v2335, %v2341
        %v2348 = vadd.f32 %v2336, %v2341
        %v2349 = vadd.f32 %v2337, %v2341
        %v2350 = vadd.f32 %v2338, %v2341
        %v2351 = vadd.f32 %v2339, %v2341
        %v2352 = vmax.f32 %v2342, 0.0
        %v2353 = vmax.f32 %v2343, 0.0
        %v2354 = vmax.f32 %v2344, 0.0
        %v2355 = vmax.f32 %v2345, 0.0
        %v2356 = vmax.f32 %v2346, 0.0
        %v2357 = vmax.f32 %v2347, 0.0
        %v2358 = vmax.f32 %v2348, 0.0
        %v2359 = vmax.f32 %v2349, 0.0
        %v2360 = vmax.f32 %v2350, 0.0
        %v2361 = vmax.f32 %v2351, 0.0
        %v2362 = vld [vmem:[%s5] sm:$0xff]
        %v2363 = vld [vmem:[%s5 + $0x8] sm:$0xff]
        %v2364 = vld [vmem:[%s5 + $0x10] sm:$0xff]
        %v2365 = vld [vmem:[%s5 + $0x18] sm:$0xff]
        %v2366 = vld [vmem:[%s5 + $0x20] sm:$0xff]
        %v2367 = vld [vmem:[%s5 + $0x28] sm:$0xff]
        %v2368 = vld [vmem:[%s5 + $0x30] sm:$0xff]
        %v2369 = vld [vmem:[%s5 + $0x38] sm:$0xff]
        %v2370 = vld [vmem:[%s5 + $0x40] sm:$0xff]
        %v2371 = vld [vmem:[%s5 + $0x48] sm:$0xff]
        %v2372 = vmul.f32 %v2352, %v2362
        %v2373 = vmul.f32 %v2353, %v2363
        %v2374 = vmul.f32 %v2354, %v2364
        %v2375 = vmul.f32 %v2355, %v2365
        %v2376 = vmul.f32 %v2356, %v2366
        %v2377 = vmul.f32 %v2357, %v2367
        %v2378 = vmul.f32 %v2358, %v2368
        %v2379 = vmul.f32 %v2359, %v2369
        %v2380 = vmul.f32 %v2360, %v2370
        %v2381 = vmul.f32 %v2361, %v2371
        %v2382 = vadd.f32 %v2372, %v2373
        %v2383 = vadd.f32 %v2382, %v2374
        %v2384 = vadd.f32 %v2383, %v2375
        %v2385 = vadd.f32 %v2384, %v2376
        %v2386 = vadd.f32 %v2385, %v2377
        %v2387 = vadd.f32 %v2386, %v2378
        %v2388 = vadd.f32 %v2387, %v2379
        %v2389 = vadd.f32 %v2388, %v2380
        %v2390 = vadd.f32 %v2389, %v2381
        %2391 = vadd.xlane.f32.xlu0 %v2390
        %v2392 = vpop.xlane.xlu0 %2391
        %vm2393 = vcmask 7168
        %2394 = vst.msk [vmem:[%s303] sm:$0xff] %vm2393, %v2392
        %s2395 = scalar_lea.vmem %s5, 80
        %v2396 = vld [vmem:[%s2395] sm:$0xff]
        %v2397 = vld [vmem:[%s2395 + $0x8] sm:$0xff]
        %v2398 = vld [vmem:[%s2395 + $0x10] sm:$0xff]
        %v2399 = vld [vmem:[%s2395 + $0x18] sm:$0xff]
        %v2400 = vld [vmem:[%s2395 + $0x20] sm:$0xff]
        %v2401 = vld [vmem:[%s2395 + $0x28] sm:$0xff]
        %v2402 = vld [vmem:[%s2395 + $0x30] sm:$0xff]
        %v2403 = vld [vmem:[%s2395 + $0x38] sm:$0xff]
        %v2404 = vld [vmem:[%s2395 + $0x40] sm:$0xff]
        %v2405 = vld [vmem:[%s2395 + $0x48] sm:$0xff]
        %v2406 = vmul.f32 %v2352, %v2396
        %v2407 = vmul.f32 %v2353, %v2397
        %v2408 = vmul.f32 %v2354, %v2398
        %v2409 = vmul.f32 %v2355, %v2399
        %v2410 = vmul.f32 %v2356, %v2400
        %v2411 = vmul.f32 %v2357, %v2401
        %v2412 = vmul.f32 %v2358, %v2402
        %v2413 = vmul.f32 %v2359, %v2403
        %v2414 = vmul.f32 %v2360, %v2404
        %v2415 = vmul.f32 %v2361, %v2405
        %v2416 = vadd.f32 %v2406, %v2407
        %v2417 = vadd.f32 %v2416, %v2408
        %v2418 = vadd.f32 %v2417, %v2409
        %v2419 = vadd.f32 %v2418, %v2410
        %v2420 = vadd.f32 %v2419, %v2411
        %v2421 = vadd.f32 %v2420, %v2412
        %v2422 = vadd.f32 %v2421, %v2413
        %v2423 = vadd.f32 %v2422, %v2414
        %v2424 = vadd.f32 %v2423, %v2415
        %2425 = vadd.xlane.f32.xlu0 %v2424
        %v2426 = vpop.xlane.xlu0 %2425
        %s2427 = scalar_lea.vmem %s303, 8
        %2428 = vst.msk [vmem:[%s2427] sm:$0xff] %vm2393, %v2426
        %s2429 = sld [smem:[#allocation6 + $0x6]]
        %v2430 = vstv %s2429
        %v2431 = vmul.f32 %v2430, %v486
        %v2432 = vmul.f32 %v2430, %v487
        %v2433 = vmul.f32 %v2430, %v488
        %v2434 = vmul.f32 %v2430, %v489
        %v2435 = vmul.f32 %v2430, %v490
        %v2436 = vmul.f32 %v2430, %v491
        %v2437 = vmul.f32 %v2430, %v492
        %v2438 = vmul.f32 %v2430, %v493
        %v2439 = vmul.f32 %v2430, %v494
        %v2440 = vmul.f32 %v2430, %v495
        %v2441 = vmul.f32 %v2430, %v1102
        %v2442 = vmul.f32 %v2430, %v1103
        %v2443 = vmul.f32 %v2430, %v1104
        %v2444 = vmul.f32 %v2430, %v1105
        %v2445 = vmul.f32 %v2430, %v1106
        %v2446 = vmul.f32 %v2430, %v1107
        %v2447 = vmul.f32 %v2430, %v1108
        %v2448 = vmul.f32 %v2430, %v1109
        %v2449 = vmul.f32 %v2430, %v1110
        %v2450 = vmul.f32 %v2430, %v1111
        %s2451 = sld [smem:[#allocation6 + $0x7]]
        %v2452 = vstv %s2451
        %v2453 = vmul.f32 %v2452, %v798
        %v2454 = vmul.f32 %v2452, %v799
        %v2455 = vmul.f32 %v2452, %v800
        %v2456 = vmul.f32 %v2452, %v801
        %v2457 = vmul.f32 %v2452, %v802
        %v2458 = vmul.f32 %v2452, %v803
        %v2459 = vmul.f32 %v2452, %v804
        %v2460 = vmul.f32 %v2452, %v805
        %v2461 = vmul.f32 %v2452, %v806
        %v2462 = vmul.f32 %v2452, %v807
        %v2463 = vmul.f32 %v2452, %v1580
        %v2464 = vmul.f32 %v2452, %v1581
        %v2465 = vmul.f32 %v2452, %v1582
        %v2466 = vmul.f32 %v2452, %v1583
        %v2467 = vmul.f32 %v2452, %v1584
        %v2468 = vmul.f32 %v2452, %v1585
        %v2469 = vmul.f32 %v2452, %v1586
        %v2470 = vmul.f32 %v2452, %v1587
        %v2471 = vmul.f32 %v2452, %v1588
        %v2472 = vmul.f32 %v2452, %v1589
        %v2473 = vadd.f32 %v2431, %v2453
        %v2474 = vadd.f32 %v2432, %v2454
        %v2475 = vadd.f32 %v2433, %v2455
        %v2476 = vadd.f32 %v2434, %v2456
        %v2477 = vadd.f32 %v2435, %v2457
        %v2478 = vadd.f32 %v2436, %v2458
        %v2479 = vadd.f32 %v2437, %v2459
        %v2480 = vadd.f32 %v2438, %v2460
        %v2481 = vadd.f32 %v2439, %v2461
        %v2482 = vadd.f32 %v2440, %v2462
        %v2483 = vadd.f32 %v2441, %v2463
        %v2484 = vadd.f32 %v2442, %v2464
        %v2485 = vadd.f32 %v2443, %v2465
        %v2486 = vadd.f32 %v2444, %v2466
        %v2487 = vadd.f32 %v2445, %v2467
        %v2488 = vadd.f32 %v2446, %v2468
        %v2489 = vadd.f32 %v2447, %v2469
        %v2490 = vadd.f32 %v2448, %v2470
        %v2491 = vadd.f32 %v2449, %v2471
        %v2492 = vadd.f32 %v2450, %v2472
        %s2493 = sld [smem:[#allocation6 + $0x8]]
        %v2494 = vstv %s2493
        %v2495 = vmul.f32 %v2494, %v1102
        %v2496 = vmul.f32 %v2494, %v1103
        %v2497 = vmul.f32 %v2494, %v1104
        %v2498 = vmul.f32 %v2494, %v1105
        %v2499 = vmul.f32 %v2494, %v1106
        %v2500 = vmul.f32 %v2494, %v1107
        %v2501 = vmul.f32 %v2494, %v1108
        %v2502 = vmul.f32 %v2494, %v1109
        %v2503 = vmul.f32 %v2494, %v1110
        %v2504 = vmul.f32 %v2494, %v1111
        %v2505 = vmul.f32 %v2494, %v1854
        %v2506 = vmul.f32 %v2494, %v1855
        %v2507 = vmul.f32 %v2494, %v1856
        %v2508 = vmul.f32 %v2494, %v1857
        %v2509 = vmul.f32 %v2494, %v1858
        %v2510 = vmul.f32 %v2494, %v1859
        %v2511 = vmul.f32 %v2494, %v1860
        %v2512 = vmul.f32 %v2494, %v1861
        %v2513 = vmul.f32 %v2494, %v1862
        %v2514 = vmul.f32 %v2494, %v1863
        %v2515 = vmul.f32 %v2494, %v1864
        %v2516 = vmul.f32 %v2494, %v1865
        %v2517 = vmul.f32 %v2494, %v1866
        %v2518 = vmul.f32 %v2494, %v1867
        %v2519 = vmul.f32 %v2494, %v1868
        %v2520 = vmul.f32 %v2494, %v1869
        %v2521 = vmul.f32 %v2494, %v1870
        %v2522 = vmul.f32 %v2494, %v1871
        %v2523 = vmul.f32 %v2494, %v1872
        %v2524 = vmul.f32 %v2494, %v1873
        %v2525 = vadd.f32 %v2473, %v2495
        %v2526 = vadd.f32 %v2474, %v2496
        %v2527 = vadd.f32 %v2475, %v2497
        %v2528 = vadd.f32 %v2476, %v2498
        %v2529 = vadd.f32 %v2477, %v2499
        %v2530 = vadd.f32 %v2478, %v2500
        %v2531 = vadd.f32 %v2479, %v2501
        %v2532 = vadd.f32 %v2480, %v2502
        %v2533 = vadd.f32 %v2481, %v2503
        %v2534 = vadd.f32 %v2482, %v2504
        %v2555 = vrot.slane %v2505, 1
        %v2556 = vrot.slane %v2515, 1
        %v2557 = vsel %vm1509, %v2555, %v2556
        %v2558 = vrot.slane %v2506, 1
        %v2559 = vrot.slane %v2516, 1
        %v2560 = vsel %vm1509, %v2558, %v2559
        %v2561 = vrot.slane %v2507, 1
        %v2562 = vrot.slane %v2517, 1
        %v2563 = vsel %vm1509, %v2561, %v2562
        %v2564 = vrot.slane %v2508, 1
        %v2565 = vrot.slane %v2518, 1
        %v2566 = vsel %vm1509, %v2564, %v2565
        %v2567 = vrot.slane %v2509, 1
        %v2568 = vrot.slane %v2519, 1
        %v2569 = vsel %vm1509, %v2567, %v2568
        %v2570 = vrot.slane %v2510, 1
        %v2571 = vrot.slane %v2520, 1
        %v2572 = vsel %vm1509, %v2570, %v2571
        %v2573 = vrot.slane %v2511, 1
        %v2574 = vrot.slane %v2521, 1
        %v2575 = vsel %vm1509, %v2573, %v2574
        %v2576 = vrot.slane %v2512, 1
        %v2577 = vrot.slane %v2522, 1
        %v2578 = vsel %vm1509, %v2576, %v2577
        %v2579 = vrot.slane %v2513, 1
        %v2580 = vrot.slane %v2523, 1
        %v2581 = vsel %vm1509, %v2579, %v2580
        %v2582 = vrot.slane %v2514, 1
        %v2583 = vrot.slane %v2524, 1
        %v2584 = vsel %vm1509, %v2582, %v2583
        %v2595 = vadd.f32 %v2483, %v2557
        %v2596 = vadd.f32 %v2484, %v2560
        %v2597 = vadd.f32 %v2485, %v2563
        %v2598 = vadd.f32 %v2486, %v2566
        %v2599 = vadd.f32 %v2487, %v2569
        %v2600 = vadd.f32 %v2488, %v2572
        %v2601 = vadd.f32 %v2489, %v2575
        %v2602 = vadd.f32 %v2490, %v2578
        %v2603 = vadd.f32 %v2491, %v2581
        %v2604 = vadd.f32 %v2492, %v2584
        %s2605 = sld [smem:[#allocation6 + $0x9]]
        %v2606 = vstv %s2605
        %v2607 = vmul.f32 %v2606, %v624
        %v2608 = vmul.f32 %v2606, %v625
        %v2609 = vmul.f32 %v2606, %v626
        %v2610 = vmul.f32 %v2606, %v627
        %v2611 = vmul.f32 %v2606, %v628
        %v2612 = vmul.f32 %v2606, %v629
        %v2613 = vmul.f32 %v2606, %v630
        %v2614 = vmul.f32 %v2606, %v631
        %v2615 = vmul.f32 %v2606, %v632
        %v2616 = vmul.f32 %v2606, %v633
        %v2617 = vmul.f32 %v2606, %v1232
        %v2618 = vmul.f32 %v2606, %v1233
        %v2619 = vmul.f32 %v2606, %v1234
        %v2620 = vmul.f32 %v2606, %v1235
        %v2621 = vmul.f32 %v2606, %v1236
        %v2622 = vmul.f32 %v2606, %v1237
        %v2623 = vmul.f32 %v2606, %v1238
        %v2624 = vmul.f32 %v2606, %v1239
        %v2625 = vmul.f32 %v2606, %v1240
        %v2626 = vmul.f32 %v2606, %v1241
        %v2627 = vadd.f32 %v2525, %v2607
        %v2628 = vadd.f32 %v2526, %v2608
        %v2629 = vadd.f32 %v2527, %v2609
        %v2630 = vadd.f32 %v2528, %v2610
        %v2631 = vadd.f32 %v2529, %v2611
        %v2632 = vadd.f32 %v2530, %v2612
        %v2633 = vadd.f32 %v2531, %v2613
        %v2634 = vadd.f32 %v2532, %v2614
        %v2635 = vadd.f32 %v2533, %v2615
        %v2636 = vadd.f32 %v2534, %v2616
        %v2637 = vadd.f32 %v2595, %v2617
        %v2638 = vadd.f32 %v2596, %v2618
        %v2639 = vadd.f32 %v2597, %v2619
        %v2640 = vadd.f32 %v2598, %v2620
        %v2641 = vadd.f32 %v2599, %v2621
        %v2642 = vadd.f32 %v2600, %v2622
        %v2643 = vadd.f32 %v2601, %v2623
        %v2644 = vadd.f32 %v2602, %v2624
        %v2645 = vadd.f32 %v2603, %v2625
        %v2646 = vadd.f32 %v2604, %v2626
        %s2647 = sld [smem:[#allocation6 + $0xa]]
        %v2648 = vstv %s2647
        %v2649 = vmul.f32 %v2648, %v928
        %v2650 = vmul.f32 %v2648, %v929
        %v2651 = vmul.f32 %v2648, %v930
        %v2652 = vmul.f32 %v2648, %v931
        %v2653 = vmul.f32 %v2648, %v932
        %v2654 = vmul.f32 %v2648, %v933
        %v2655 = vmul.f32 %v2648, %v934
        %v2656 = vmul.f32 %v2648, %v935
        %v2657 = vmul.f32 %v2648, %v936
        %v2658 = vmul.f32 %v2648, %v937
        %v2659 = vmul.f32 %v2648, %v1780
        %v2660 = vmul.f32 %v2648, %v1781
        %v2661 = vmul.f32 %v2648, %v1782
        %v2662 = vmul.f32 %v2648, %v1783
        %v2663 = vmul.f32 %v2648, %v1784
        %v2664 = vmul.f32 %v2648, %v1785
        %v2665 = vmul.f32 %v2648, %v1786
        %v2666 = vmul.f32 %v2648, %v1787
        %v2667 = vmul.f32 %v2648, %v1788
        %v2668 = vmul.f32 %v2648, %v1789
        %v2669 = vadd.f32 %v2627, %v2649
        %v2670 = vadd.f32 %v2628, %v2650
        %v2671 = vadd.f32 %v2629, %v2651
        %v2672 = vadd.f32 %v2630, %v2652
        %v2673 = vadd.f32 %v2631, %v2653
        %v2674 = vadd.f32 %v2632, %v2654
        %v2675 = vadd.f32 %v2633, %v2655
        %v2676 = vadd.f32 %v2634, %v2656
        %v2677 = vadd.f32 %v2635, %v2657
        %v2678 = vadd.f32 %v2636, %v2658
        %v2679 = vadd.f32 %v2637, %v2659
        %v2680 = vadd.f32 %v2638, %v2660
        %v2681 = vadd.f32 %v2639, %v2661
        %v2682 = vadd.f32 %v2640, %v2662
        %v2683 = vadd.f32 %v2641, %v2663
        %v2684 = vadd.f32 %v2642, %v2664
        %v2685 = vadd.f32 %v2643, %v2665
        %v2686 = vadd.f32 %v2644, %v2666
        %v2687 = vadd.f32 %v2645, %v2667
        %v2688 = vadd.f32 %v2646, %v2668
        %s2689 = sld [smem:[#allocation6 + $0xb]]
        %v2690 = vstv %s2689
        %v2691 = vmul.f32 %v2690, %v1232
        %v2692 = vmul.f32 %v2690, %v1233
        %v2693 = vmul.f32 %v2690, %v1234
        %v2694 = vmul.f32 %v2690, %v1235
        %v2695 = vmul.f32 %v2690, %v1236
        %v2696 = vmul.f32 %v2690, %v1237
        %v2697 = vmul.f32 %v2690, %v1238
        %v2698 = vmul.f32 %v2690, %v1239
        %v2699 = vmul.f32 %v2690, %v1240
        %v2700 = vmul.f32 %v2690, %v1241
        %v2701 = vmul.f32 %v2690, %v1938
        %v2702 = vmul.f32 %v2690, %v1939
        %v2703 = vmul.f32 %v2690, %v1940
        %v2704 = vmul.f32 %v2690, %v1941
        %v2705 = vmul.f32 %v2690, %v1942
        %v2706 = vmul.f32 %v2690, %v1943
        %v2707 = vmul.f32 %v2690, %v1944
        %v2708 = vmul.f32 %v2690, %v1945
        %v2709 = vmul.f32 %v2690, %v1946
        %v2710 = vmul.f32 %v2690, %v1947
        %v2711 = vmul.f32 %v2690, %v1948
        %v2712 = vmul.f32 %v2690, %v1949
        %v2713 = vmul.f32 %v2690, %v1950
        %v2714 = vmul.f32 %v2690, %v1951
        %v2715 = vmul.f32 %v2690, %v1952
        %v2716 = vmul.f32 %v2690, %v1953
        %v2717 = vmul.f32 %v2690, %v1954
        %v2718 = vmul.f32 %v2690, %v1955
        %v2719 = vmul.f32 %v2690, %v1956
        %v2720 = vmul.f32 %v2690, %v1957
        %v2721 = vadd.f32 %v2669, %v2691
        %v2722 = vadd.f32 %v2670, %v2692
        %v2723 = vadd.f32 %v2671, %v2693
        %v2724 = vadd.f32 %v2672, %v2694
        %v2725 = vadd.f32 %v2673, %v2695
        %v2726 = vadd.f32 %v2674, %v2696
        %v2727 = vadd.f32 %v2675, %v2697
        %v2728 = vadd.f32 %v2676, %v2698
        %v2729 = vadd.f32 %v2677, %v2699
        %v2730 = vadd.f32 %v2678, %v2700
        %v2751 = vrot.slane %v2701, 1
        %v2752 = vrot.slane %v2711, 1
        %v2753 = vsel %vm1509, %v2751, %v2752
        %v2754 = vrot.slane %v2702, 1
        %v2755 = vrot.slane %v2712, 1
        %v2756 = vsel %vm1509, %v2754, %v2755
        %v2757 = vrot.slane %v2703, 1
        %v2758 = vrot.slane %v2713, 1
        %v2759 = vsel %vm1509, %v2757, %v2758
        %v2760 = vrot.slane %v2704, 1
        %v2761 = vrot.slane %v2714, 1
        %v2762 = vsel %vm1509, %v2760, %v2761
        %v2763 = vrot.slane %v2705, 1
        %v2764 = vrot.slane %v2715, 1
        %v2765 = vsel %vm1509, %v2763, %v2764
        %v2766 = vrot.slane %v2706, 1
        %v2767 = vrot.slane %v2716, 1
        %v2768 = vsel %vm1509, %v2766, %v2767
        %v2769 = vrot.slane %v2707, 1
        %v2770 = vrot.slane %v2717, 1
        %v2771 = vsel %vm1509, %v2769, %v2770
        %v2772 = vrot.slane %v2708, 1
        %v2773 = vrot.slane %v2718, 1
        %v2774 = vsel %vm1509, %v2772, %v2773
        %v2775 = vrot.slane %v2709, 1
        %v2776 = vrot.slane %v2719, 1
        %v2777 = vsel %vm1509, %v2775, %v2776
        %v2778 = vrot.slane %v2710, 1
        %v2779 = vrot.slane %v2720, 1
        %v2780 = vsel %vm1509, %v2778, %v2779
        %v2791 = vadd.f32 %v2679, %v2753
        %v2792 = vadd.f32 %v2680, %v2756
        %v2793 = vadd.f32 %v2681, %v2759
        %v2794 = vadd.f32 %v2682, %v2762
        %v2795 = vadd.f32 %v2683, %v2765
        %v2796 = vadd.f32 %v2684, %v2768
        %v2797 = vadd.f32 %v2685, %v2771
        %v2798 = vadd.f32 %v2686, %v2774
        %v2799 = vadd.f32 %v2687, %v2777
        %v2800 = vadd.f32 %v2688, %v2780
        %v2801 = vmax.f32 %v2721, %v2791
        %v2802 = vmax.f32 %v2722, %v2792
        %v2803 = vmax.f32 %v2723, %v2793
        %v2804 = vmax.f32 %v2724, %v2794
        %v2805 = vmax.f32 %v2725, %v2795
        %v2806 = vmax.f32 %v2726, %v2796
        %v2807 = vmax.f32 %v2727, %v2797
        %v2808 = vmax.f32 %v2728, %v2798
        %v2809 = vmax.f32 %v2729, %v2799
        %v2810 = vmax.f32 %v2730, %v2800
        %s2811 = sld [smem:[#allocation7 + $0x1]]
        %v2812 = vstv %s2811
        %v2813 = vadd.f32 %v2801, %v2812
        %v2814 = vadd.f32 %v2802, %v2812
        %v2815 = vadd.f32 %v2803, %v2812
        %v2816 = vadd.f32 %v2804, %v2812
        %v2817 = vadd.f32 %v2805, %v2812
        %v2818 = vadd.f32 %v2806, %v2812
        %v2819 = vadd.f32 %v2807, %v2812
        %v2820 = vadd.f32 %v2808, %v2812
        %v2821 = vadd.f32 %v2809, %v2812
        %v2822 = vadd.f32 %v2810, %v2812
        %v2823 = vmax.f32 %v2813, 0.0
        %v2824 = vmax.f32 %v2814, 0.0
        %v2825 = vmax.f32 %v2815, 0.0
        %v2826 = vmax.f32 %v2816, 0.0
        %v2827 = vmax.f32 %v2817, 0.0
        %v2828 = vmax.f32 %v2818, 0.0
        %v2829 = vmax.f32 %v2819, 0.0
        %v2830 = vmax.f32 %v2820, 0.0
        %v2831 = vmax.f32 %v2821, 0.0
        %v2832 = vmax.f32 %v2822, 0.0
        %v2833 = vld [vmem:[%s5] sm:$0xff]
        %v2834 = vld [vmem:[%s5 + $0x8] sm:$0xff]
        %v2835 = vld [vmem:[%s5 + $0x10] sm:$0xff]
        %v2836 = vld [vmem:[%s5 + $0x18] sm:$0xff]
        %v2837 = vld [vmem:[%s5 + $0x20] sm:$0xff]
        %v2838 = vld [vmem:[%s5 + $0x28] sm:$0xff]
        %v2839 = vld [vmem:[%s5 + $0x30] sm:$0xff]
        %v2840 = vld [vmem:[%s5 + $0x38] sm:$0xff]
        %v2841 = vld [vmem:[%s5 + $0x40] sm:$0xff]
        %v2842 = vld [vmem:[%s5 + $0x48] sm:$0xff]
        %v2843 = vmul.f32 %v2823, %v2833
        %v2844 = vmul.f32 %v2824, %v2834
        %v2845 = vmul.f32 %v2825, %v2835
        %v2846 = vmul.f32 %v2826, %v2836
        %v2847 = vmul.f32 %v2827, %v2837
        %v2848 = vmul.f32 %v2828, %v2838
        %v2849 = vmul.f32 %v2829, %v2839
        %v2850 = vmul.f32 %v2830, %v2840
        %v2851 = vmul.f32 %v2831, %v2841
        %v2852 = vmul.f32 %v2832, %v2842
        %v2853 = vadd.f32 %v2843, %v2844
        %v2854 = vadd.f32 %v2853, %v2845
        %v2855 = vadd.f32 %v2854, %v2846
        %v2856 = vadd.f32 %v2855, %v2847
        %v2857 = vadd.f32 %v2856, %v2848
        %v2858 = vadd.f32 %v2857, %v2849
        %v2859 = vadd.f32 %v2858, %v2850
        %v2860 = vadd.f32 %v2859, %v2851
        %v2861 = vadd.f32 %v2860, %v2852
        %2862 = vadd.xlane.f32.xlu0 %v2861
        %v2863 = vpop.xlane.xlu0 %2862
        %s2864 = scalar_lea.vmem %s303, 16
        %2865 = vst.msk [vmem:[%s2864] sm:$0xff] %vm2393, %v2863
        %v2866 = vld [vmem:[%s2395] sm:$0xff]
        %v2867 = vld [vmem:[%s2395 + $0x8] sm:$0xff]
        %v2868 = vld [vmem:[%s2395 + $0x10] sm:$0xff]
        %v2869 = vld [vmem:[%s2395 + $0x18] sm:$0xff]
        %v2870 = vld [vmem:[%s2395 + $0x20] sm:$0xff]
        %v2871 = vld [vmem:[%s2395 + $0x28] sm:$0xff]
        %v2872 = vld [vmem:[%s2395 + $0x30] sm:$0xff]
        %v2873 = vld [vmem:[%s2395 + $0x38] sm:$0xff]
        %v2874 = vld [vmem:[%s2395 + $0x40] sm:$0xff]
        %v2875 = vld [vmem:[%s2395 + $0x48] sm:$0xff]
        %v2876 = vmul.f32 %v2823, %v2866
        %v2877 = vmul.f32 %v2824, %v2867
        %v2878 = vmul.f32 %v2825, %v2868
        %v2879 = vmul.f32 %v2826, %v2869
        %v2880 = vmul.f32 %v2827, %v2870
        %v2881 = vmul.f32 %v2828, %v2871
        %v2882 = vmul.f32 %v2829, %v2872
        %v2883 = vmul.f32 %v2830, %v2873
        %v2884 = vmul.f32 %v2831, %v2874
        %v2885 = vmul.f32 %v2832, %v2875
        %v2886 = vadd.f32 %v2876, %v2877
        %v2887 = vadd.f32 %v2886, %v2878
        %v2888 = vadd.f32 %v2887, %v2879
        %v2889 = vadd.f32 %v2888, %v2880
        %v2890 = vadd.f32 %v2889, %v2881
        %v2891 = vadd.f32 %v2890, %v2882
        %v2892 = vadd.f32 %v2891, %v2883
        %v2893 = vadd.f32 %v2892, %v2884
        %v2894 = vadd.f32 %v2893, %v2885
        %2895 = vadd.xlane.f32.xlu0 %v2894
        %v2896 = vpop.xlane.xlu0 %2895
        %s2897 = scalar_lea.vmem %s303, 24
        %2898 = vst.msk [vmem:[%s2897] sm:$0xff] %vm2393, %v2896
        %s2899 = sld [smem:[#allocation6 + $0xc]]
        %v2900 = vstv %s2899
        %v2901 = vmul.f32 %v2900, %v486
        %v2902 = vmul.f32 %v2900, %v487
        %v2903 = vmul.f32 %v2900, %v488
        %v2904 = vmul.f32 %v2900, %v489
        %v2905 = vmul.f32 %v2900, %v490
        %v2906 = vmul.f32 %v2900, %v491
        %v2907 = vmul.f32 %v2900, %v492
        %v2908 = vmul.f32 %v2900, %v493
        %v2909 = vmul.f32 %v2900, %v494
        %v2910 = vmul.f32 %v2900, %v495
        %v2911 = vmul.f32 %v2900, %v1102
        %v2912 = vmul.f32 %v2900, %v1103
        %v2913 = vmul.f32 %v2900, %v1104
        %v2914 = vmul.f32 %v2900, %v1105
        %v2915 = vmul.f32 %v2900, %v1106
        %v2916 = vmul.f32 %v2900, %v1107
        %v2917 = vmul.f32 %v2900, %v1108
        %v2918 = vmul.f32 %v2900, %v1109
        %v2919 = vmul.f32 %v2900, %v1110
        %v2920 = vmul.f32 %v2900, %v1111
        %s2921 = sld [smem:[#allocation6 + $0xd]]
        %v2922 = vstv %s2921
        %v2923 = vmul.f32 %v2922, %v798
        %v2924 = vmul.f32 %v2922, %v799
        %v2925 = vmul.f32 %v2922, %v800
        %v2926 = vmul.f32 %v2922, %v801
        %v2927 = vmul.f32 %v2922, %v802
        %v2928 = vmul.f32 %v2922, %v803
        %v2929 = vmul.f32 %v2922, %v804
        %v2930 = vmul.f32 %v2922, %v805
        %v2931 = vmul.f32 %v2922, %v806
        %v2932 = vmul.f32 %v2922, %v807
        %v2933 = vmul.f32 %v2922, %v1580
        %v2934 = vmul.f32 %v2922, %v1581
        %v2935 = vmul.f32 %v2922, %v1582
        %v2936 = vmul.f32 %v2922, %v1583
        %v2937 = vmul.f32 %v2922, %v1584
        %v2938 = vmul.f32 %v2922, %v1585
        %v2939 = vmul.f32 %v2922, %v1586
        %v2940 = vmul.f32 %v2922, %v1587
        %v2941 = vmul.f32 %v2922, %v1588
        %v2942 = vmul.f32 %v2922, %v1589
        %v2943 = vadd.f32 %v2901, %v2923
        %v2944 = vadd.f32 %v2902, %v2924
        %v2945 = vadd.f32 %v2903, %v2925
        %v2946 = vadd.f32 %v2904, %v2926
        %v2947 = vadd.f32 %v2905, %v2927
        %v2948 = vadd.f32 %v2906, %v2928
        %v2949 = vadd.f32 %v2907, %v2929
        %v2950 = vadd.f32 %v2908, %v2930
        %v2951 = vadd.f32 %v2909, %v2931
        %v2952 = vadd.f32 %v2910, %v2932
        %v2953 = vadd.f32 %v2911, %v2933
        %v2954 = vadd.f32 %v2912, %v2934
        %v2955 = vadd.f32 %v2913, %v2935
        %v2956 = vadd.f32 %v2914, %v2936
        %v2957 = vadd.f32 %v2915, %v2937
        %v2958 = vadd.f32 %v2916, %v2938
        %v2959 = vadd.f32 %v2917, %v2939
        %v2960 = vadd.f32 %v2918, %v2940
        %v2961 = vadd.f32 %v2919, %v2941
        %v2962 = vadd.f32 %v2920, %v2942
        %s2963 = sld [smem:[#allocation6 + $0xe]]
        %v2964 = vstv %s2963
        %v2965 = vmul.f32 %v2964, %v1102
        %v2966 = vmul.f32 %v2964, %v1103
        %v2967 = vmul.f32 %v2964, %v1104
        %v2968 = vmul.f32 %v2964, %v1105
        %v2969 = vmul.f32 %v2964, %v1106
        %v2970 = vmul.f32 %v2964, %v1107
        %v2971 = vmul.f32 %v2964, %v1108
        %v2972 = vmul.f32 %v2964, %v1109
        %v2973 = vmul.f32 %v2964, %v1110
        %v2974 = vmul.f32 %v2964, %v1111
        %v2975 = vmul.f32 %v2964, %v1854
        %v2976 = vmul.f32 %v2964, %v1855
        %v2977 = vmul.f32 %v2964, %v1856
        %v2978 = vmul.f32 %v2964, %v1857
        %v2979 = vmul.f32 %v2964, %v1858
        %v2980 = vmul.f32 %v2964, %v1859
        %v2981 = vmul.f32 %v2964, %v1860
        %v2982 = vmul.f32 %v2964, %v1861
        %v2983 = vmul.f32 %v2964, %v1862
        %v2984 = vmul.f32 %v2964, %v1863
        %v2985 = vmul.f32 %v2964, %v1864
        %v2986 = vmul.f32 %v2964, %v1865
        %v2987 = vmul.f32 %v2964, %v1866
        %v2988 = vmul.f32 %v2964, %v1867
        %v2989 = vmul.f32 %v2964, %v1868
        %v2990 = vmul.f32 %v2964, %v1869
        %v2991 = vmul.f32 %v2964, %v1870
        %v2992 = vmul.f32 %v2964, %v1871
        %v2993 = vmul.f32 %v2964, %v1872
        %v2994 = vmul.f32 %v2964, %v1873
        %v2995 = vadd.f32 %v2943, %v2965
        %v2996 = vadd.f32 %v2944, %v2966
        %v2997 = vadd.f32 %v2945, %v2967
        %v2998 = vadd.f32 %v2946, %v2968
        %v2999 = vadd.f32 %v2947, %v2969
        %v3000 = vadd.f32 %v2948, %v2970
        %v3001 = vadd.f32 %v2949, %v2971
        %v3002 = vadd.f32 %v2950, %v2972
        %v3003 = vadd.f32 %v2951, %v2973
        %v3004 = vadd.f32 %v2952, %v2974
        %v3025 = vrot.slane %v2975, 1
        %v3026 = vrot.slane %v2985, 1
        %v3027 = vsel %vm1509, %v3025, %v3026
        %v3028 = vrot.slane %v2976, 1
        %v3029 = vrot.slane %v2986, 1
        %v3030 = vsel %vm1509, %v3028, %v3029
        %v3031 = vrot.slane %v2977, 1
        %v3032 = vrot.slane %v2987, 1
        %v3033 = vsel %vm1509, %v3031, %v3032
        %v3034 = vrot.slane %v2978, 1
        %v3035 = vrot.slane %v2988, 1
        %v3036 = vsel %vm1509, %v3034, %v3035
        %v3037 = vrot.slane %v2979, 1
        %v3038 = vrot.slane %v2989, 1
        %v3039 = vsel %vm1509, %v3037, %v3038
        %v3040 = vrot.slane %v2980, 1
        %v3041 = vrot.slane %v2990, 1
        %v3042 = vsel %vm1509, %v3040, %v3041
        %v3043 = vrot.slane %v2981, 1
        %v3044 = vrot.slane %v2991, 1
        %v3045 = vsel %vm1509, %v3043, %v3044
        %v3046 = vrot.slane %v2982, 1
        %v3047 = vrot.slane %v2992, 1
        %v3048 = vsel %vm1509, %v3046, %v3047
        %v3049 = vrot.slane %v2983, 1
        %v3050 = vrot.slane %v2993, 1
        %v3051 = vsel %vm1509, %v3049, %v3050
        %v3052 = vrot.slane %v2984, 1
        %v3053 = vrot.slane %v2994, 1
        %v3054 = vsel %vm1509, %v3052, %v3053
        %v3065 = vadd.f32 %v2953, %v3027
        %v3066 = vadd.f32 %v2954, %v3030
        %v3067 = vadd.f32 %v2955, %v3033
        %v3068 = vadd.f32 %v2956, %v3036
        %v3069 = vadd.f32 %v2957, %v3039
        %v3070 = vadd.f32 %v2958, %v3042
        %v3071 = vadd.f32 %v2959, %v3045
        %v3072 = vadd.f32 %v2960, %v3048
        %v3073 = vadd.f32 %v2961, %v3051
        %v3074 = vadd.f32 %v2962, %v3054
        %s3075 = sld [smem:[#allocation6 + $0xf]]
        %v3076 = vstv %s3075
        %v3077 = vmul.f32 %v3076, %v624
        %v3078 = vmul.f32 %v3076, %v625
        %v3079 = vmul.f32 %v3076, %v626
        %v3080 = vmul.f32 %v3076, %v627
        %v3081 = vmul.f32 %v3076, %v628
        %v3082 = vmul.f32 %v3076, %v629
        %v3083 = vmul.f32 %v3076, %v630
        %v3084 = vmul.f32 %v3076, %v631
        %v3085 = vmul.f32 %v3076, %v632
        %v3086 = vmul.f32 %v3076, %v633
        %v3087 = vmul.f32 %v3076, %v1232
        %v3088 = vmul.f32 %v3076, %v1233
        %v3089 = vmul.f32 %v3076, %v1234
        %v3090 = vmul.f32 %v3076, %v1235
        %v3091 = vmul.f32 %v3076, %v1236
        %v3092 = vmul.f32 %v3076, %v1237
        %v3093 = vmul.f32 %v3076, %v1238
        %v3094 = vmul.f32 %v3076, %v1239
        %v3095 = vmul.f32 %v3076, %v1240
        %v3096 = vmul.f32 %v3076, %v1241
        %v3097 = vadd.f32 %v2995, %v3077
        %v3098 = vadd.f32 %v2996, %v3078
        %v3099 = vadd.f32 %v2997, %v3079
        %v3100 = vadd.f32 %v2998, %v3080
        %v3101 = vadd.f32 %v2999, %v3081
        %v3102 = vadd.f32 %v3000, %v3082
        %v3103 = vadd.f32 %v3001, %v3083
        %v3104 = vadd.f32 %v3002, %v3084
        %v3105 = vadd.f32 %v3003, %v3085
        %v3106 = vadd.f32 %v3004, %v3086
        %v3107 = vadd.f32 %v3065, %v3087
        %v3108 = vadd.f32 %v3066, %v3088
        %v3109 = vadd.f32 %v3067, %v3089
        %v3110 = vadd.f32 %v3068, %v3090
        %v3111 = vadd.f32 %v3069, %v3091
        %v3112 = vadd.f32 %v3070, %v3092
        %v3113 = vadd.f32 %v3071, %v3093
        %v3114 = vadd.f32 %v3072, %v3094
        %v3115 = vadd.f32 %v3073, %v3095
        %v3116 = vadd.f32 %v3074, %v3096
        %s3117 = sld [smem:[#allocation6 + $0x10]]
        %v3118 = vstv %s3117
        %v3119 = vmul.f32 %v3118, %v928
        %v3120 = vmul.f32 %v3118, %v929
        %v3121 = vmul.f32 %v3118, %v930
        %v3122 = vmul.f32 %v3118, %v931
        %v3123 = vmul.f32 %v3118, %v932
        %v3124 = vmul.f32 %v3118, %v933
        %v3125 = vmul.f32 %v3118, %v934
        %v3126 = vmul.f32 %v3118, %v935
        %v3127 = vmul.f32 %v3118, %v936
        %v3128 = vmul.f32 %v3118, %v937
        %v3129 = vmul.f32 %v3118, %v1780
        %v3130 = vmul.f32 %v3118, %v1781
        %v3131 = vmul.f32 %v3118, %v1782
        %v3132 = vmul.f32 %v3118, %v1783
        %v3133 = vmul.f32 %v3118, %v1784
        %v3134 = vmul.f32 %v3118, %v1785
        %v3135 = vmul.f32 %v3118, %v1786
        %v3136 = vmul.f32 %v3118, %v1787
        %v3137 = vmul.f32 %v3118, %v1788
        %v3138 = vmul.f32 %v3118, %v1789
        %v3139 = vadd.f32 %v3097, %v3119
        %v3140 = vadd.f32 %v3098, %v3120
        %v3141 = vadd.f32 %v3099, %v3121
        %v3142 = vadd.f32 %v3100, %v3122
        %v3143 = vadd.f32 %v3101, %v3123
        %v3144 = vadd.f32 %v3102, %v3124
        %v3145 = vadd.f32 %v3103, %v3125
        %v3146 = vadd.f32 %v3104, %v3126
        %v3147 = vadd.f32 %v3105, %v3127
        %v3148 = vadd.f32 %v3106, %v3128
        %v3149 = vadd.f32 %v3107, %v3129
        %v3150 = vadd.f32 %v3108, %v3130
        %v3151 = vadd.f32 %v3109, %v3131
        %v3152 = vadd.f32 %v3110, %v3132
        %v3153 = vadd.f32 %v3111, %v3133
        %v3154 = vadd.f32 %v3112, %v3134
        %v3155 = vadd.f32 %v3113, %v3135
        %v3156 = vadd.f32 %v3114, %v3136
        %v3157 = vadd.f32 %v3115, %v3137
        %v3158 = vadd.f32 %v3116, %v3138
        %s3159 = sld [smem:[#allocation6 + $0x11]]
        %v3160 = vstv %s3159
        %v3161 = vmul.f32 %v3160, %v1232
        %v3162 = vmul.f32 %v3160, %v1233
        %v3163 = vmul.f32 %v3160, %v1234
        %v3164 = vmul.f32 %v3160, %v1235
        %v3165 = vmul.f32 %v3160, %v1236
        %v3166 = vmul.f32 %v3160, %v1237
        %v3167 = vmul.f32 %v3160, %v1238
        %v3168 = vmul.f32 %v3160, %v1239
        %v3169 = vmul.f32 %v3160, %v1240
        %v3170 = vmul.f32 %v3160, %v1241
        %v3171 = vmul.f32 %v3160, %v1938
        %v3172 = vmul.f32 %v3160, %v1939
        %v3173 = vmul.f32 %v3160, %v1940
        %v3174 = vmul.f32 %v3160, %v1941
        %v3175 = vmul.f32 %v3160, %v1942
        %v3176 = vmul.f32 %v3160, %v1943
        %v3177 = vmul.f32 %v3160, %v1944
        %v3178 = vmul.f32 %v3160, %v1945
        %v3179 = vmul.f32 %v3160, %v1946
        %v3180 = vmul.f32 %v3160, %v1947
        %v3181 = vmul.f32 %v3160, %v1948
        %v3182 = vmul.f32 %v3160, %v1949
        %v3183 = vmul.f32 %v3160, %v1950
        %v3184 = vmul.f32 %v3160, %v1951
        %v3185 = vmul.f32 %v3160, %v1952
        %v3186 = vmul.f32 %v3160, %v1953
        %v3187 = vmul.f32 %v3160, %v1954
        %v3188 = vmul.f32 %v3160, %v1955
        %v3189 = vmul.f32 %v3160, %v1956
        %v3190 = vmul.f32 %v3160, %v1957
        %v3191 = vadd.f32 %v3139, %v3161
        %v3192 = vadd.f32 %v3140, %v3162
        %v3193 = vadd.f32 %v3141, %v3163
        %v3194 = vadd.f32 %v3142, %v3164
        %v3195 = vadd.f32 %v3143, %v3165
        %v3196 = vadd.f32 %v3144, %v3166
        %v3197 = vadd.f32 %v3145, %v3167
        %v3198 = vadd.f32 %v3146, %v3168
        %v3199 = vadd.f32 %v3147, %v3169
        %v3200 = vadd.f32 %v3148, %v3170
        %v3221 = vrot.slane %v3171, 1
        %v3222 = vrot.slane %v3181, 1
        %v3223 = vsel %vm1509, %v3221, %v3222
        %v3224 = vrot.slane %v3172, 1
        %v3225 = vrot.slane %v3182, 1
        %v3226 = vsel %vm1509, %v3224, %v3225
        %v3227 = vrot.slane %v3173, 1
        %v3228 = vrot.slane %v3183, 1
        %v3229 = vsel %vm1509, %v3227, %v3228
        %v3230 = vrot.slane %v3174, 1
        %v3231 = vrot.slane %v3184, 1
        %v3232 = vsel %vm1509, %v3230, %v3231
        %v3233 = vrot.slane %v3175, 1
        %v3234 = vrot.slane %v3185, 1
        %v3235 = vsel %vm1509, %v3233, %v3234
        %v3236 = vrot.slane %v3176, 1
        %v3237 = vrot.slane %v3186, 1
        %v3238 = vsel %vm1509, %v3236, %v3237
        %v3239 = vrot.slane %v3177, 1
        %v3240 = vrot.slane %v3187, 1
        %v3241 = vsel %vm1509, %v3239, %v3240
        %v3242 = vrot.slane %v3178, 1
        %v3243 = vrot.slane %v3188, 1
        %v3244 = vsel %vm1509, %v3242, %v3243
        %v3245 = vrot.slane %v3179, 1
        %v3246 = vrot.slane %v3189, 1
        %v3247 = vsel %vm1509, %v3245, %v3246
        %v3248 = vrot.slane %v3180, 1
        %v3249 = vrot.slane %v3190, 1
        %v3250 = vsel %vm1509, %v3248, %v3249
        %v3261 = vadd.f32 %v3149, %v3223
        %v3262 = vadd.f32 %v3150, %v3226
        %v3263 = vadd.f32 %v3151, %v3229
        %v3264 = vadd.f32 %v3152, %v3232
        %v3265 = vadd.f32 %v3153, %v3235
        %v3266 = vadd.f32 %v3154, %v3238
        %v3267 = vadd.f32 %v3155, %v3241
        %v3268 = vadd.f32 %v3156, %v3244
        %v3269 = vadd.f32 %v3157, %v3247
        %v3270 = vadd.f32 %v3158, %v3250
        %v3271 = vmax.f32 %v3191, %v3261
        %v3272 = vmax.f32 %v3192, %v3262
        %v3273 = vmax.f32 %v3193, %v3263
        %v3274 = vmax.f32 %v3194, %v3264
        %v3275 = vmax.f32 %v3195, %v3265
        %v3276 = vmax.f32 %v3196, %v3266
        %v3277 = vmax.f32 %v3197, %v3267
        %v3278 = vmax.f32 %v3198, %v3268
        %v3279 = vmax.f32 %v3199, %v3269
        %v3280 = vmax.f32 %v3200, %v3270
        %s3281 = sld [smem:[#allocation7 + $0x2]]
        %v3282 = vstv %s3281
        %v3283 = vadd.f32 %v3271, %v3282
        %v3284 = vadd.f32 %v3272, %v3282
        %v3285 = vadd.f32 %v3273, %v3282
        %v3286 = vadd.f32 %v3274, %v3282
        %v3287 = vadd.f32 %v3275, %v3282
        %v3288 = vadd.f32 %v3276, %v3282
        %v3289 = vadd.f32 %v3277, %v3282
        %v3290 = vadd.f32 %v3278, %v3282
        %v3291 = vadd.f32 %v3279, %v3282
        %v3292 = vadd.f32 %v3280, %v3282
        %v3293 = vmax.f32 %v3283, 0.0
        %v3294 = vmax.f32 %v3284, 0.0
        %v3295 = vmax.f32 %v3285, 0.0
        %v3296 = vmax.f32 %v3286, 0.0
        %v3297 = vmax.f32 %v3287, 0.0
        %v3298 = vmax.f32 %v3288, 0.0
        %v3299 = vmax.f32 %v3289, 0.0
        %v3300 = vmax.f32 %v3290, 0.0
        %v3301 = vmax.f32 %v3291, 0.0
        %v3302 = vmax.f32 %v3292, 0.0
        %v3303 = vld [vmem:[%s5] sm:$0xff]
        %v3304 = vld [vmem:[%s5 + $0x8] sm:$0xff]
        %v3305 = vld [vmem:[%s5 + $0x10] sm:$0xff]
        %v3306 = vld [vmem:[%s5 + $0x18] sm:$0xff]
        %v3307 = vld [vmem:[%s5 + $0x20] sm:$0xff]
        %v3308 = vld [vmem:[%s5 + $0x28] sm:$0xff]
        %v3309 = vld [vmem:[%s5 + $0x30] sm:$0xff]
        %v3310 = vld [vmem:[%s5 + $0x38] sm:$0xff]
        %v3311 = vld [vmem:[%s5 + $0x40] sm:$0xff]
        %v3312 = vld [vmem:[%s5 + $0x48] sm:$0xff]
        %v3313 = vmul.f32 %v3293, %v3303
        %v3314 = vmul.f32 %v3294, %v3304
        %v3315 = vmul.f32 %v3295, %v3305
        %v3316 = vmul.f32 %v3296, %v3306
        %v3317 = vmul.f32 %v3297, %v3307
        %v3318 = vmul.f32 %v3298, %v3308
        %v3319 = vmul.f32 %v3299, %v3309
        %v3320 = vmul.f32 %v3300, %v3310
        %v3321 = vmul.f32 %v3301, %v3311
        %v3322 = vmul.f32 %v3302, %v3312
        %v3323 = vadd.f32 %v3313, %v3314
        %v3324 = vadd.f32 %v3323, %v3315
        %v3325 = vadd.f32 %v3324, %v3316
        %v3326 = vadd.f32 %v3325, %v3317
        %v3327 = vadd.f32 %v3326, %v3318
        %v3328 = vadd.f32 %v3327, %v3319
        %v3329 = vadd.f32 %v3328, %v3320
        %v3330 = vadd.f32 %v3329, %v3321
        %v3331 = vadd.f32 %v3330, %v3322
        %3332 = vadd.xlane.f32.xlu0 %v3331
        %v3333 = vpop.xlane.xlu0 %3332
        %s3334 = scalar_lea.vmem %s303, 32
        %3335 = vst.msk [vmem:[%s3334] sm:$0xff] %vm2393, %v3333
        %v3336 = vld [vmem:[%s2395] sm:$0xff]
        %v3337 = vld [vmem:[%s2395 + $0x8] sm:$0xff]
        %v3338 = vld [vmem:[%s2395 + $0x10] sm:$0xff]
        %v3339 = vld [vmem:[%s2395 + $0x18] sm:$0xff]
        %v3340 = vld [vmem:[%s2395 + $0x20] sm:$0xff]
        %v3341 = vld [vmem:[%s2395 + $0x28] sm:$0xff]
        %v3342 = vld [vmem:[%s2395 + $0x30] sm:$0xff]
        %v3343 = vld [vmem:[%s2395 + $0x38] sm:$0xff]
        %v3344 = vld [vmem:[%s2395 + $0x40] sm:$0xff]
        %v3345 = vld [vmem:[%s2395 + $0x48] sm:$0xff]
        %v3346 = vmul.f32 %v3293, %v3336
        %v3347 = vmul.f32 %v3294, %v3337
        %v3348 = vmul.f32 %v3295, %v3338
        %v3349 = vmul.f32 %v3296, %v3339
        %v3350 = vmul.f32 %v3297, %v3340
        %v3351 = vmul.f32 %v3298, %v3341
        %v3352 = vmul.f32 %v3299, %v3342
        %v3353 = vmul.f32 %v3300, %v3343
        %v3354 = vmul.f32 %v3301, %v3344
        %v3355 = vmul.f32 %v3302, %v3345
        %v3356 = vadd.f32 %v3346, %v3347
        %v3357 = vadd.f32 %v3356, %v3348
        %v3358 = vadd.f32 %v3357, %v3349
        %v3359 = vadd.f32 %v3358, %v3350
        %v3360 = vadd.f32 %v3359, %v3351
        %v3361 = vadd.f32 %v3360, %v3352
        %v3362 = vadd.f32 %v3361, %v3353
        %v3363 = vadd.f32 %v3362, %v3354
        %v3364 = vadd.f32 %v3363, %v3355
        %3365 = vadd.xlane.f32.xlu0 %v3364
        %v3366 = vpop.xlane.xlu0 %3365
        %s3367 = scalar_lea.vmem %s303, 40
        %3368 = vst.msk [vmem:[%s3367] sm:$0xff] %vm2393, %v3366
        %s3369 = sld [smem:[#allocation6 + $0x12]]
        %v3370 = vstv %s3369
        %v3371 = vmul.f32 %v3370, %v486
        %v3372 = vmul.f32 %v3370, %v487
        %v3373 = vmul.f32 %v3370, %v488
        %v3374 = vmul.f32 %v3370, %v489
        %v3375 = vmul.f32 %v3370, %v490
        %v3376 = vmul.f32 %v3370, %v491
        %v3377 = vmul.f32 %v3370, %v492
        %v3378 = vmul.f32 %v3370, %v493
        %v3379 = vmul.f32 %v3370, %v494
        %v3380 = vmul.f32 %v3370, %v495
        %v3381 = vmul.f32 %v3370, %v1102
        %v3382 = vmul.f32 %v3370, %v1103
        %v3383 = vmul.f32 %v3370, %v1104
        %v3384 = vmul.f32 %v3370, %v1105
        %v3385 = vmul.f32 %v3370, %v1106
        %v3386 = vmul.f32 %v3370, %v1107
        %v3387 = vmul.f32 %v3370, %v1108
        %v3388 = vmul.f32 %v3370, %v1109
        %v3389 = vmul.f32 %v3370, %v1110
        %v3390 = vmul.f32 %v3370, %v1111
        %s3391 = sld [smem:[#allocation6 + $0x13]]
        %v3392 = vstv %s3391
        %v3393 = vmul.f32 %v3392, %v798
        %v3394 = vmul.f32 %v3392, %v799
        %v3395 = vmul.f32 %v3392, %v800
        %v3396 = vmul.f32 %v3392, %v801
        %v3397 = vmul.f32 %v3392, %v802
        %v3398 = vmul.f32 %v3392, %v803
        %v3399 = vmul.f32 %v3392, %v804
        %v3400 = vmul.f32 %v3392, %v805
        %v3401 = vmul.f32 %v3392, %v806
        %v3402 = vmul.f32 %v3392, %v807
        %v3403 = vmul.f32 %v3392, %v1580
        %v3404 = vmul.f32 %v3392, %v1581
        %v3405 = vmul.f32 %v3392, %v1582
        %v3406 = vmul.f32 %v3392, %v1583
        %v3407 = vmul.f32 %v3392, %v1584
        %v3408 = vmul.f32 %v3392, %v1585
        %v3409 = vmul.f32 %v3392, %v1586
        %v3410 = vmul.f32 %v3392, %v1587
        %v3411 = vmul.f32 %v3392, %v1588
        %v3412 = vmul.f32 %v3392, %v1589
        %v3413 = vadd.f32 %v3371, %v3393
        %v3414 = vadd.f32 %v3372, %v3394
        %v3415 = vadd.f32 %v3373, %v3395
        %v3416 = vadd.f32 %v3374, %v3396
        %v3417 = vadd.f32 %v3375, %v3397
        %v3418 = vadd.f32 %v3376, %v3398
        %v3419 = vadd.f32 %v3377, %v3399
        %v3420 = vadd.f32 %v3378, %v3400
        %v3421 = vadd.f32 %v3379, %v3401
        %v3422 = vadd.f32 %v3380, %v3402
        %v3423 = vadd.f32 %v3381, %v3403
        %v3424 = vadd.f32 %v3382, %v3404
        %v3425 = vadd.f32 %v3383, %v3405
        %v3426 = vadd.f32 %v3384, %v3406
        %v3427 = vadd.f32 %v3385, %v3407
        %v3428 = vadd.f32 %v3386, %v3408
        %v3429 = vadd.f32 %v3387, %v3409
        %v3430 = vadd.f32 %v3388, %v3410
        %v3431 = vadd.f32 %v3389, %v3411
        %v3432 = vadd.f32 %v3390, %v3412
        %s3433 = sld [smem:[#allocation6 + $0x14]]
        %v3434 = vstv %s3433
        %v3435 = vmul.f32 %v3434, %v1102
        %v3436 = vmul.f32 %v3434, %v1103
        %v3437 = vmul.f32 %v3434, %v1104
        %v3438 = vmul.f32 %v3434, %v1105
        %v3439 = vmul.f32 %v3434, %v1106
        %v3440 = vmul.f32 %v3434, %v1107
        %v3441 = vmul.f32 %v3434, %v1108
        %v3442 = vmul.f32 %v3434, %v1109
        %v3443 = vmul.f32 %v3434, %v1110
        %v3444 = vmul.f32 %v3434, %v1111
        %v3445 = vmul.f32 %v3434, %v1854
        %v3446 = vmul.f32 %v3434, %v1855
        %v3447 = vmul.f32 %v3434, %v1856
        %v3448 = vmul.f32 %v3434, %v1857
        %v3449 = vmul.f32 %v3434, %v1858
        %v3450 = vmul.f32 %v3434, %v1859
        %v3451 = vmul.f32 %v3434, %v1860
        %v3452 = vmul.f32 %v3434, %v1861
        %v3453 = vmul.f32 %v3434, %v1862
        %v3454 = vmul.f32 %v3434, %v1863
        %v3455 = vmul.f32 %v3434, %v1864
        %v3456 = vmul.f32 %v3434, %v1865
        %v3457 = vmul.f32 %v3434, %v1866
        %v3458 = vmul.f32 %v3434, %v1867
        %v3459 = vmul.f32 %v3434, %v1868
        %v3460 = vmul.f32 %v3434, %v1869
        %v3461 = vmul.f32 %v3434, %v1870
        %v3462 = vmul.f32 %v3434, %v1871
        %v3463 = vmul.f32 %v3434, %v1872
        %v3464 = vmul.f32 %v3434, %v1873
        %v3465 = vadd.f32 %v3413, %v3435
        %v3466 = vadd.f32 %v3414, %v3436
        %v3467 = vadd.f32 %v3415, %v3437
        %v3468 = vadd.f32 %v3416, %v3438
        %v3469 = vadd.f32 %v3417, %v3439
        %v3470 = vadd.f32 %v3418, %v3440
        %v3471 = vadd.f32 %v3419, %v3441
        %v3472 = vadd.f32 %v3420, %v3442
        %v3473 = vadd.f32 %v3421, %v3443
        %v3474 = vadd.f32 %v3422, %v3444
        %v3495 = vrot.slane %v3445, 1
        %v3496 = vrot.slane %v3455, 1
        %v3497 = vsel %vm1509, %v3495, %v3496
        %v3498 = vrot.slane %v3446, 1
        %v3499 = vrot.slane %v3456, 1
        %v3500 = vsel %vm1509, %v3498, %v3499
        %v3501 = vrot.slane %v3447, 1
        %v3502 = vrot.slane %v3457, 1
        %v3503 = vsel %vm1509, %v3501, %v3502
        %v3504 = vrot.slane %v3448, 1
        %v3505 = vrot.slane %v3458, 1
        %v3506 = vsel %vm1509, %v3504, %v3505
        %v3507 = vrot.slane %v3449, 1
        %v3508 = vrot.slane %v3459, 1
        %v3509 = vsel %vm1509, %v3507, %v3508
        %v3510 = vrot.slane %v3450, 1
        %v3511 = vrot.slane %v3460, 1
        %v3512 = vsel %vm1509, %v3510, %v3511
        %v3513 = vrot.slane %v3451, 1
        %v3514 = vrot.slane %v3461, 1
        %v3515 = vsel %vm1509, %v3513, %v3514
        %v3516 = vrot.slane %v3452, 1
        %v3517 = vrot.slane %v3462, 1
        %v3518 = vsel %vm1509, %v3516, %v3517
        %v3519 = vrot.slane %v3453, 1
        %v3520 = vrot.slane %v3463, 1
        %v3521 = vsel %vm1509, %v3519, %v3520
        %v3522 = vrot.slane %v3454, 1
        %v3523 = vrot.slane %v3464, 1
        %v3524 = vsel %vm1509, %v3522, %v3523
        %v3535 = vadd.f32 %v3423, %v3497
        %v3536 = vadd.f32 %v3424, %v3500
        %v3537 = vadd.f32 %v3425, %v3503
        %v3538 = vadd.f32 %v3426, %v3506
        %v3539 = vadd.f32 %v3427, %v3509
        %v3540 = vadd.f32 %v3428, %v3512
        %v3541 = vadd.f32 %v3429, %v3515
        %v3542 = vadd.f32 %v3430, %v3518
        %v3543 = vadd.f32 %v3431, %v3521
        %v3544 = vadd.f32 %v3432, %v3524
        %s3545 = sld [smem:[#allocation6 + $0x15]]
        %v3546 = vstv %s3545
        %v3547 = vmul.f32 %v3546, %v624
        %v3548 = vmul.f32 %v3546, %v625
        %v3549 = vmul.f32 %v3546, %v626
        %v3550 = vmul.f32 %v3546, %v627
        %v3551 = vmul.f32 %v3546, %v628
        %v3552 = vmul.f32 %v3546, %v629
        %v3553 = vmul.f32 %v3546, %v630
        %v3554 = vmul.f32 %v3546, %v631
        %v3555 = vmul.f32 %v3546, %v632
        %v3556 = vmul.f32 %v3546, %v633
        %v3557 = vmul.f32 %v3546, %v1232
        %v3558 = vmul.f32 %v3546, %v1233
        %v3559 = vmul.f32 %v3546, %v1234
        %v3560 = vmul.f32 %v3546, %v1235
        %v3561 = vmul.f32 %v3546, %v1236
        %v3562 = vmul.f32 %v3546, %v1237
        %v3563 = vmul.f32 %v3546, %v1238
        %v3564 = vmul.f32 %v3546, %v1239
        %v3565 = vmul.f32 %v3546, %v1240
        %v3566 = vmul.f32 %v3546, %v1241
        %v3567 = vadd.f32 %v3465, %v3547
        %v3568 = vadd.f32 %v3466, %v3548
        %v3569 = vadd.f32 %v3467, %v3549
        %v3570 = vadd.f32 %v3468, %v3550
        %v3571 = vadd.f32 %v3469, %v3551
        %v3572 = vadd.f32 %v3470, %v3552
        %v3573 = vadd.f32 %v3471, %v3553
        %v3574 = vadd.f32 %v3472, %v3554
        %v3575 = vadd.f32 %v3473, %v3555
        %v3576 = vadd.f32 %v3474, %v3556
        %v3577 = vadd.f32 %v3535, %v3557
        %v3578 = vadd.f32 %v3536, %v3558
        %v3579 = vadd.f32 %v3537, %v3559
        %v3580 = vadd.f32 %v3538, %v3560
        %v3581 = vadd.f32 %v3539, %v3561
        %v3582 = vadd.f32 %v3540, %v3562
        %v3583 = vadd.f32 %v3541, %v3563
        %v3584 = vadd.f32 %v3542, %v3564
        %v3585 = vadd.f32 %v3543, %v3565
        %v3586 = vadd.f32 %v3544, %v3566
        %s3587 = sld [smem:[#allocation6 + $0x16]]
        %v3588 = vstv %s3587
        %v3589 = vmul.f32 %v3588, %v928
        %v3590 = vmul.f32 %v3588, %v929
        %v3591 = vmul.f32 %v3588, %v930
        %v3592 = vmul.f32 %v3588, %v931
        %v3593 = vmul.f32 %v3588, %v932
        %v3594 = vmul.f32 %v3588, %v933
        %v3595 = vmul.f32 %v3588, %v934
        %v3596 = vmul.f32 %v3588, %v935
        %v3597 = vmul.f32 %v3588, %v936
        %v3598 = vmul.f32 %v3588, %v937
        %v3599 = vmul.f32 %v3588, %v1780
        %v3600 = vmul.f32 %v3588, %v1781
        %v3601 = vmul.f32 %v3588, %v1782
        %v3602 = vmul.f32 %v3588, %v1783
        %v3603 = vmul.f32 %v3588, %v1784
        %v3604 = vmul.f32 %v3588, %v1785
        %v3605 = vmul.f32 %v3588, %v1786
        %v3606 = vmul.f32 %v3588, %v1787
        %v3607 = vmul.f32 %v3588, %v1788
        %v3608 = vmul.f32 %v3588, %v1789
        %v3609 = vadd.f32 %v3567, %v3589
        %v3610 = vadd.f32 %v3568, %v3590
        %v3611 = vadd.f32 %v3569, %v3591
        %v3612 = vadd.f32 %v3570, %v3592
        %v3613 = vadd.f32 %v3571, %v3593
        %v3614 = vadd.f32 %v3572, %v3594
        %v3615 = vadd.f32 %v3573, %v3595
        %v3616 = vadd.f32 %v3574, %v3596
        %v3617 = vadd.f32 %v3575, %v3597
        %v3618 = vadd.f32 %v3576, %v3598
        %v3619 = vadd.f32 %v3577, %v3599
        %v3620 = vadd.f32 %v3578, %v3600
        %v3621 = vadd.f32 %v3579, %v3601
        %v3622 = vadd.f32 %v3580, %v3602
        %v3623 = vadd.f32 %v3581, %v3603
        %v3624 = vadd.f32 %v3582, %v3604
        %v3625 = vadd.f32 %v3583, %v3605
        %v3626 = vadd.f32 %v3584, %v3606
        %v3627 = vadd.f32 %v3585, %v3607
        %v3628 = vadd.f32 %v3586, %v3608
        %s3629 = sld [smem:[#allocation6 + $0x17]]
        %v3630 = vstv %s3629
        %v3631 = vmul.f32 %v3630, %v1232
        %v3632 = vmul.f32 %v3630, %v1233
        %v3633 = vmul.f32 %v3630, %v1234
        %v3634 = vmul.f32 %v3630, %v1235
        %v3635 = vmul.f32 %v3630, %v1236
        %v3636 = vmul.f32 %v3630, %v1237
        %v3637 = vmul.f32 %v3630, %v1238
        %v3638 = vmul.f32 %v3630, %v1239
        %v3639 = vmul.f32 %v3630, %v1240
        %v3640 = vmul.f32 %v3630, %v1241
        %v3641 = vmul.f32 %v3630, %v1938
        %v3642 = vmul.f32 %v3630, %v1939
        %v3643 = vmul.f32 %v3630, %v1940
        %v3644 = vmul.f32 %v3630, %v1941
        %v3645 = vmul.f32 %v3630, %v1942
        %v3646 = vmul.f32 %v3630, %v1943
        %v3647 = vmul.f32 %v3630, %v1944
        %v3648 = vmul.f32 %v3630, %v1945
        %v3649 = vmul.f32 %v3630, %v1946
        %v3650 = vmul.f32 %v3630, %v1947
        %v3651 = vmul.f32 %v3630, %v1948
        %v3652 = vmul.f32 %v3630, %v1949
        %v3653 = vmul.f32 %v3630, %v1950
        %v3654 = vmul.f32 %v3630, %v1951
        %v3655 = vmul.f32 %v3630, %v1952
        %v3656 = vmul.f32 %v3630, %v1953
        %v3657 = vmul.f32 %v3630, %v1954
        %v3658 = vmul.f32 %v3630, %v1955
        %v3659 = vmul.f32 %v3630, %v1956
        %v3660 = vmul.f32 %v3630, %v1957
        %v3661 = vadd.f32 %v3609, %v3631
        %v3662 = vadd.f32 %v3610, %v3632
        %v3663 = vadd.f32 %v3611, %v3633
        %v3664 = vadd.f32 %v3612, %v3634
        %v3665 = vadd.f32 %v3613, %v3635
        %v3666 = vadd.f32 %v3614, %v3636
        %v3667 = vadd.f32 %v3615, %v3637
        %v3668 = vadd.f32 %v3616, %v3638
        %v3669 = vadd.f32 %v3617, %v3639
        %v3670 = vadd.f32 %v3618, %v3640
        %v3691 = vrot.slane %v3641, 1
        %v3692 = vrot.slane %v3651, 1
        %v3693 = vsel %vm1509, %v3691, %v3692
        %v3694 = vrot.slane %v3642, 1
        %v3695 = vrot.slane %v3652, 1
        %v3696 = vsel %vm1509, %v3694, %v3695
        %v3697 = vrot.slane %v3643, 1
        %v3698 = vrot.slane %v3653, 1
        %v3699 = vsel %vm1509, %v3697, %v3698
        %v3700 = vrot.slane %v3644, 1
        %v3701 = vrot.slane %v3654, 1
        %v3702 = vsel %vm1509, %v3700, %v3701
        %v3703 = vrot.slane %v3645, 1
        %v3704 = vrot.slane %v3655, 1
        %v3705 = vsel %vm1509, %v3703, %v3704
        %v3706 = vrot.slane %v3646, 1
        %v3707 = vrot.slane %v3656, 1
        %v3708 = vsel %vm1509, %v3706, %v3707
        %v3709 = vrot.slane %v3647, 1
        %v3710 = vrot.slane %v3657, 1
        %v3711 = vsel %vm1509, %v3709, %v3710
        %v3712 = vrot.slane %v3648, 1
        %v3713 = vrot.slane %v3658, 1
        %v3714 = vsel %vm1509, %v3712, %v3713
        %v3715 = vrot.slane %v3649, 1
        %v3716 = vrot.slane %v3659, 1
        %v3717 = vsel %vm1509, %v3715, %v3716
        %v3718 = vrot.slane %v3650, 1
        %v3719 = vrot.slane %v3660, 1
        %v3720 = vsel %vm1509, %v3718, %v3719
        %v3731 = vadd.f32 %v3619, %v3693
        %v3732 = vadd.f32 %v3620, %v3696
        %v3733 = vadd.f32 %v3621, %v3699
        %v3734 = vadd.f32 %v3622, %v3702
        %v3735 = vadd.f32 %v3623, %v3705
        %v3736 = vadd.f32 %v3624, %v3708
        %v3737 = vadd.f32 %v3625, %v3711
        %v3738 = vadd.f32 %v3626, %v3714
        %v3739 = vadd.f32 %v3627, %v3717
        %v3740 = vadd.f32 %v3628, %v3720
        %v3741 = vmax.f32 %v3661, %v3731
        %v3742 = vmax.f32 %v3662, %v3732
        %v3743 = vmax.f32 %v3663, %v3733
        %v3744 = vmax.f32 %v3664, %v3734
        %v3745 = vmax.f32 %v3665, %v3735
        %v3746 = vmax.f32 %v3666, %v3736
        %v3747 = vmax.f32 %v3667, %v3737
        %v3748 = vmax.f32 %v3668, %v3738
        %v3749 = vmax.f32 %v3669, %v3739
        %v3750 = vmax.f32 %v3670, %v3740
        %s3751 = sld [smem:[#allocation7 + $0x3]]
        %v3752 = vstv %s3751
        %v3753 = vadd.f32 %v3741, %v3752
        %v3754 = vadd.f32 %v3742, %v3752
        %v3755 = vadd.f32 %v3743, %v3752
        %v3756 = vadd.f32 %v3744, %v3752
        %v3757 = vadd.f32 %v3745, %v3752
        %v3758 = vadd.f32 %v3746, %v3752
        %v3759 = vadd.f32 %v3747, %v3752
        %v3760 = vadd.f32 %v3748, %v3752
        %v3761 = vadd.f32 %v3749, %v3752
        %v3762 = vadd.f32 %v3750, %v3752
        %v3763 = vmax.f32 %v3753, 0.0
        %v3764 = vmax.f32 %v3754, 0.0
        %v3765 = vmax.f32 %v3755, 0.0
        %v3766 = vmax.f32 %v3756, 0.0
        %v3767 = vmax.f32 %v3757, 0.0
        %v3768 = vmax.f32 %v3758, 0.0
        %v3769 = vmax.f32 %v3759, 0.0
        %v3770 = vmax.f32 %v3760, 0.0
        %v3771 = vmax.f32 %v3761, 0.0
        %v3772 = vmax.f32 %v3762, 0.0
        %v3773 = vld [vmem:[%s5] sm:$0xff]
        %v3774 = vld [vmem:[%s5 + $0x8] sm:$0xff]
        %v3775 = vld [vmem:[%s5 + $0x10] sm:$0xff]
        %v3776 = vld [vmem:[%s5 + $0x18] sm:$0xff]
        %v3777 = vld [vmem:[%s5 + $0x20] sm:$0xff]
        %v3778 = vld [vmem:[%s5 + $0x28] sm:$0xff]
        %v3779 = vld [vmem:[%s5 + $0x30] sm:$0xff]
        %v3780 = vld [vmem:[%s5 + $0x38] sm:$0xff]
        %v3781 = vld [vmem:[%s5 + $0x40] sm:$0xff]
        %v3782 = vld [vmem:[%s5 + $0x48] sm:$0xff]
        %v3783 = vmul.f32 %v3763, %v3773
        %v3784 = vmul.f32 %v3764, %v3774
        %v3785 = vmul.f32 %v3765, %v3775
        %v3786 = vmul.f32 %v3766, %v3776
        %v3787 = vmul.f32 %v3767, %v3777
        %v3788 = vmul.f32 %v3768, %v3778
        %v3789 = vmul.f32 %v3769, %v3779
        %v3790 = vmul.f32 %v3770, %v3780
        %v3791 = vmul.f32 %v3771, %v3781
        %v3792 = vmul.f32 %v3772, %v3782
        %v3793 = vadd.f32 %v3783, %v3784
        %v3794 = vadd.f32 %v3793, %v3785
        %v3795 = vadd.f32 %v3794, %v3786
        %v3796 = vadd.f32 %v3795, %v3787
        %v3797 = vadd.f32 %v3796, %v3788
        %v3798 = vadd.f32 %v3797, %v3789
        %v3799 = vadd.f32 %v3798, %v3790
        %v3800 = vadd.f32 %v3799, %v3791
        %v3801 = vadd.f32 %v3800, %v3792
        %3802 = vadd.xlane.f32.xlu0 %v3801
        %v3803 = vpop.xlane.xlu0 %3802
        %s3804 = scalar_lea.vmem %s303, 48
        %3805 = vst.msk [vmem:[%s3804] sm:$0xff] %vm2393, %v3803
        %v3806 = vld [vmem:[%s2395] sm:$0xff]
        %v3807 = vld [vmem:[%s2395 + $0x8] sm:$0xff]
        %v3808 = vld [vmem:[%s2395 + $0x10] sm:$0xff]
        %v3809 = vld [vmem:[%s2395 + $0x18] sm:$0xff]
        %v3810 = vld [vmem:[%s2395 + $0x20] sm:$0xff]
        %v3811 = vld [vmem:[%s2395 + $0x28] sm:$0xff]
        %v3812 = vld [vmem:[%s2395 + $0x30] sm:$0xff]
        %v3813 = vld [vmem:[%s2395 + $0x38] sm:$0xff]
        %v3814 = vld [vmem:[%s2395 + $0x40] sm:$0xff]
        %v3815 = vld [vmem:[%s2395 + $0x48] sm:$0xff]
        %v3816 = vmul.f32 %v3763, %v3806
        %v3817 = vmul.f32 %v3764, %v3807
        %v3818 = vmul.f32 %v3765, %v3808
        %v3819 = vmul.f32 %v3766, %v3809
        %v3820 = vmul.f32 %v3767, %v3810
        %v3821 = vmul.f32 %v3768, %v3811
        %v3822 = vmul.f32 %v3769, %v3812
        %v3823 = vmul.f32 %v3770, %v3813
        %v3824 = vmul.f32 %v3771, %v3814
        %v3825 = vmul.f32 %v3772, %v3815
        %v3826 = vadd.f32 %v3816, %v3817
        %v3827 = vadd.f32 %v3826, %v3818
        %v3828 = vadd.f32 %v3827, %v3819
        %v3829 = vadd.f32 %v3828, %v3820
        %v3830 = vadd.f32 %v3829, %v3821
        %v3831 = vadd.f32 %v3830, %v3822
        %v3832 = vadd.f32 %v3831, %v3823
        %v3833 = vadd.f32 %v3832, %v3824
        %v3834 = vadd.f32 %v3833, %v3825
        %3835 = vadd.xlane.f32.xlu0 %v3834
        %v3836 = vpop.xlane.xlu0 %3835
        %s3837 = scalar_lea.vmem %s303, 56
        %3838 = vst.msk [vmem:[%s3837] sm:$0xff] %vm2393, %v3836
        %p3839 = scmp.lt.s32.totalorder %s20, 1
        %s3840 = scalar_select %p3839, %s20, 1
        %s3841 = smul.addr %s3840, 8
        %s3842 = smul.addr %s3841, 8
        %s3843 = scalar_lea.vmem %s6, %s3842
        // Predicated region
        $region61: #{cnn_forward.1} parent=43 // pred_check
          %p3844 = pneg %p169
        $region62: #{cnn_forward.1} parent=43 // pred_check_branch
          %3846 = sbr.rel (%p3844) target = $region64
        $region63: #{cnn_forward.1} parent=43 // pred_region
          _
        $region64: #{cnn_forward.1} parent=43 // pred_fallthru
          _
      $region44: #{cnn_forward.1} parent=5 // pred_fallthru
        _
      %p3847 = scmp.le.s32.totalorder 2, %s15
      // Predicated region
      $region65: #{cnn_forward.1} parent=5 // pred_check
        %p3848 = pneg %p3847
      $region66: #{cnn_forward.1} parent=5 // pred_check_branch
        %3850 = sbr.rel (%p3848) target = $region68
      $region67: #{cnn_forward.1} parent=5 // pred_region
        %s3851 = ssub.s32 %s15, 2
        // Predicated region
        $region69: #{cnn_forward.1} parent=67 // pred_check
          %p3852 = pneg %p175
        $region70: #{cnn_forward.1} parent=67 // pred_check_branch
          %3854 = sbr.rel (%p3852) target = $region72
        $region71: #{cnn_forward.1} parent=67 // pred_region
          %p3855 = scmp.lt.s32.totalorder %s21, 1
          %s3856 = scalar_select %p3855, %s21, 1
          %s3857 = smul.addr %s3856, 8
          %s3858 = smul.addr %s3857, 8
          %s3859 = scalar_lea.vmem %s6, %s3858
        $region72: #{cnn_forward.1} parent=67 // pred_fallthru
          _
      $region68: #{cnn_forward.1} parent=5 // pred_fallthru
        _
    $region6: #{cnn_forward.1} parent=1 // loop_footer
      %s19 = sadd.s32 1, %s15
    $region7: #{cnn_forward.1} parent=1 // loop_footer_branch
      %14 = sbr.rel target = $region3
    $region8: #{cnn_forward.1} parent=1 // loop_exit
      _
    %3860 = vsyncpa [#allocation3], 1
    %s3861 = scalar_lea.sflag [#allocation3], 1
    %3862 = vsyncpa %s3861, 1
    %3863 = vsyncpa [#allocation5], 1
    %3864 = vsyncpa [#allocation8], 1

</llo_original>
